<compile_context>
chip_gen: v6e
topology: v6e:2x2x1
jax: 0.10.0
libtpu: 0.0.40
codegen_flags: <defaults>
</compile_context>

<pallas_src>
import jax
import jax.numpy as jnp
from jax.experimental import pallas as pl
from jax.experimental.pallas import tpu as pltpu


# ------------------------------ fused kernel --------------------------------
#
# Per grid step (one batch tile of TB images), everything is a 2-D VMEM value;
# only static slices and MXU matmuls with M = TB.
#
# Layouts (per tile):
#   x_ref : (7, TB, 72)   x_ref[r, n, kh*12+a] = x[n, r+kh, a]        (im2row, host-side)
#   h1[r] : (TB, 224)     h1[r][n, c*32+ch]    = relu(conv1)[n, r, c, ch]
#   h2[i] : (TB, 320)     h2[i][n, j*64+co]    = relu(conv2)[n, i, j, co]
#   fc1   : consumes the flat 1600-vector as 5 contiguous K-chunks of 320 (the h2 slabs)

def _fused_dqn_kernel(x_ref, w1_ref, b1_ref, w2_ref, b2_ref,
                      wf1_ref, bf1_ref, wf2_ref, bf2_ref, o_ref):
    f32 = jnp.float32

    # conv1 (6x6 valid): one (TB,72)@(72,224) GEMM per output row r (fused K=72 band).
    w1 = w1_ref[...]                                   # (72, 224)
    b1 = b1_ref[...]                                   # (1, 224)
    h1 = [jnp.maximum(jnp.dot(x_ref[r], w1, preferred_element_type=f32) + b1, 0.0)
          for r in range(7)]                           # 7 x (TB, 224)

    # conv2 (3x3 valid): per output row i, 3 accumulated (TB,224)@(224,320) GEMMs.
    w2c = [w2_ref[di * 224:(di + 1) * 224, :] for di in range(3)]
    b2 = b2_ref[...]                                   # (1, 320)
    h2 = []
    for i in range(5):
        acc = jnp.dot(h1[i], w2c[0], preferred_element_type=f32)
        acc = acc + jnp.dot(h1[i + 1], w2c[1], preferred_element_type=f32)
        acc = acc + jnp.dot(h1[i + 2], w2c[2], preferred_element_type=f32)
        h2.append(jnp.maximum(acc + b2, 0.0))          # (TB, 320)

    # fc1: (TB,1600)@(1600,256) as 5 contiguous K=320 chunks (no h2 relayout needed;
    # wf1 rows were permuted at init to the (h, w, c) flatten order).
    wf1c = [wf1_ref[i * 320:(i + 1) * 320, :] for i in range(5)]
    acc = jnp.dot(h2[0], wf1c[0], preferred_element_type=f32)
    for i in range(1, 5):
        acc = acc + jnp.dot(h2[i], wf1c[i], preferred_element_type=f32)
    h3 = jnp.maximum(acc + bf1_ref[...], 0.0)          # (TB, 256)

    # fc2 into a lane-dense 128-wide padded output tile (first 4 lanes = Q-values).
    out = jnp.dot(h3, wf2_ref[...], preferred_element_type=f32) + bf2_ref[...]
    o_ref[...] = out.astype(o_ref.dtype)


# --------------------------- init-time weight prep ---------------------------

def init_params(key):
    """Deterministic synthetic parameters in the original PyTorch layouts."""
    ks = jax.random.split(key, 8)

    def w(k, shape, fan_in):
        return jax.random.normal(k, shape, jnp.float32) / jnp.sqrt(float(fan_in))

    return {
        "conv1_w": w(ks[0], (32, 1, 6, 6), 36),       # (C_out, C_in, kh, kw)
        "conv1_b": w(ks[1], (32,), 36),
        "conv2_w": w(ks[2], (64, 32, 3, 3), 288),
        "conv2_b": w(ks[3], (64,), 288),
        "fc1_w":   w(ks[4], (256, 1600), 1600),        # (out, in) torch Linear
        "fc1_b":   w(ks[5], (256,), 1600),
        "fc2_w":   w(ks[6], (4, 256), 256),
        "fc2_b":   w(ks[7], (4,), 256),
    }


def prepare_params(p):
    """One-time repacking of torch-layout params into kernel GEMM operands."""
    f32 = jnp.float32

    # conv1 banded weight (fused K=72): row kh*12 + a, col c*32 + ch holds
    # conv1_w[ch, 0, kh, a-c] for 0 <= a-c < 6, else 0.
    w1_k = jnp.transpose(p["conv1_w"][:, 0, :, :], (1, 2, 0))    # (6, 6, 32) [kh, kw, ch]
    w1b = jnp.zeros((6, 12, 7, 32), f32)
    for kh in range(6):
        for c in range(7):
            w1b = w1b.at[kh, c:c + 6, c, :].set(w1_k[kh])
    w1b = w1b.reshape(72, 224)
    b1t = jnp.tile(p["conv1_b"], 7).reshape(1, 224)

    # conv2 banded weight: row di*224 + a*32 + ch, col j*64 + co holds
    # conv2_w[co, ch, di, a-j] for 0 <= a-j < 3, else 0.
    w2_k = jnp.transpose(p["conv2_w"], (2, 3, 1, 0))             # (3, 3, 32, 64) [di, dj, ch, co]
    w2b = jnp.zeros((3, 7, 32, 5, 64), f32)
    for di in range(3):
        for j in range(5):
            w2b = w2b.at[di, j:j + 3, :, j, :].set(w2_k[di])
    w2b = w2b.reshape(672, 320)
    b2t = jnp.tile(p["conv2_b"], 5).reshape(1, 320)

    # fc1 rows permuted from PyTorch's NCHW flatten order (c, h, w) to (h, w, c),
    # so the kernel's NHWC-ordered chunks multiply it directly (no runtime transpose).
    wf1 = jnp.transpose(p["fc1_w"].reshape(256, 64, 5, 5), (2, 3, 1, 0)).reshape(1600, 256)
    bf1 = p["fc1_b"].reshape(1, 256)

    # fc2 pre-transposed and zero-padded to 128 output lanes (lane-dense store).
    wf2p = jnp.zeros((256, 128), f32).at[:, :4].set(p["fc2_w"].T)
    bf2p = jnp.zeros((1, 128), f32).at[:, :4].set(p["fc2_b"])

    return {"w1b": w1b, "b1t": b1t, "w2b": w2b, "b2t": b2t,
            "wf1": wf1, "bf1": bf1, "wf2p": wf2p, "bf2p": bf2p}


# --------------------------------- forward ----------------------------------

def _round_up(n, m):
    return ((n + m - 1) // m) * m


def net_forward(prepared, x_nchw, *, max_tb=128):
    N = x_nchw.shape[0]

    # Host-side im2row for conv1: x_rows[r, n, :] = x[n, 0, r:r+6, :].reshape(72).
    # Lane-dense slab; removes per-image (12,12) tiles and in-kernel row slicing.
    x2 = x_nchw[:, 0, :, :]                                       # (N, 12, 12)
    x_rows = jnp.stack([x2[:, r:r + 6, :].reshape(N, 72) for r in range(7)], axis=0)

    tb = min(max_tb, _round_up(N, 8))      # batch tile: multiple of 8 sublanes, <= 128
    n_pad = _round_up(N, tb)
    if n_pad != N:
        x_rows = jnp.pad(x_rows, ((0, 0), (0, n_pad - N), (0, 0)))

    out = pl.pallas_call(
        _fused_dqn_kernel,
        out_shape=jax.ShapeDtypeStruct((n_pad, 128), jnp.float32),
        grid_spec=pltpu.PrefetchScalarGridSpec(
            num_scalar_prefetch=0,
            grid=(pl.cdiv(n_pad, tb),),
            in_specs=[
                # per-step batch tile of the im2row'd input (~258 KB at tb=128)
                pl.BlockSpec((7, tb, 72), lambda i: (0, i, 0)),
                # weights/biases: full blocks, constant index maps -> resident in VMEM
                pl.BlockSpec((72, 224), lambda i: (0, 0)),
                pl.BlockSpec((1, 224), lambda i: (0, 0)),
                pl.BlockSpec((672, 320), lambda i: (0, 0)),
                pl.BlockSpec((1, 320), lambda i: (0, 0)),
                pl.BlockSpec((1600, 256), lambda i: (0, 0)),
                pl.BlockSpec((1, 256), lambda i: (0, 0)),
                pl.BlockSpec((256, 128), lambda i: (0, 0)),
                pl.BlockSpec((1, 128), lambda i: (0, 0)),
            ],
            out_specs=pl.BlockSpec((tb, 128), lambda i: (i, 0)),
        ),
        compiler_params=pltpu.CompilerParams(
            dimension_semantics=("parallel",),        # batch tiles -> both TCs on v7x
            vmem_limit_bytes=32 * 1024 * 1024,        # ~10 MB used; safe on v5e/v6e/v7x
        ),
    )(x_rows, prepared["w1b"], prepared["b1t"], prepared["w2b"], prepared["b2t"],
      prepared["wf1"], prepared["bf1"], prepared["wf2p"], prepared["bf2p"])

    return out[:N, :4]


def reference_forward(params, x):
    """Pure-JAX/XLA reference reproducing the PyTorch forward (torch layouts)."""
    dn = ("NCHW", "OIHW", "NCHW")
    y = jax.lax.conv_general_dilated(x, params["conv1_w"], (1, 1), "VALID",
                                     dimension_numbers=dn)
    y = jax.nn.relu(y + params["conv1_b"][None, :, None, None])
    y = jax.lax.conv_general_dilated(y, params["conv2_w"], (1, 1), "VALID",
                                     dimension_numbers=dn)
    y = jax.nn.relu(y + params["conv2_b"][None, :, None, None])
    y = y.reshape(y.shape[0], -1)
    y = jax.nn.relu(y @ params["fc1_w"].T + params["fc1_b"])
    return y @ params["fc2_w"].T + params["fc2_b"]


if __name__ == "__main__":
    key = jax.random.PRNGKey(0)
    k_x, k_p = jax.random.split(key)

    # batch=2, single channel, 12x12 board (implied by the 64*5*5 flatten)
    x = jax.random.normal(k_x, (2, 1, 12, 12), jnp.float32)
    params = init_params(k_p)
    prepared = prepare_params(params)          # one-time weight repacking (hoisted)

    fwd = jax.jit(net_forward)
    out = jax.block_until_ready(fwd(prepared, x))
    assert out.shape == (2, 4) and out.dtype == jnp.float32

    ref = jax.block_until_ready(reference_forward(params, x))
    assert jnp.allclose(out, ref, atol=1e-3, rtol=1e-3), "mismatch vs reference"

    # act() equivalent: argmax over Q-values (plain JAX glue)
    _ = jnp.argmax(out, axis=1)

    print("KERNEL_OK")
</pallas_src>

<mosaic_0001>
module attributes {stable_mosaic.version = 11 : i64} {
  func.func @_fused_dqn_kernel(%arg0: i32, %arg1: memref<7x8x72xf32, #tpu.memory_space<vmem>>, %arg2: memref<72x224xf32, #tpu.memory_space<vmem>>, %arg3: memref<1x224xf32, #tpu.memory_space<vmem>>, %arg4: memref<672x320xf32, #tpu.memory_space<vmem>>, %arg5: memref<1x320xf32, #tpu.memory_space<vmem>>, %arg6: memref<1600x256xf32, #tpu.memory_space<vmem>>, %arg7: memref<1x256xf32, #tpu.memory_space<vmem>>, %arg8: memref<256x128xf32, #tpu.memory_space<vmem>>, %arg9: memref<1x128xf32, #tpu.memory_space<vmem>>, %arg10: memref<8x128xf32, #tpu.memory_space<vmem>>) attributes {dimension_semantics = [#tpu.dimension_semantics<parallel>], iteration_bounds = array<i64: 1>, scalar_prefetch = 0 : i64, scratch_operands = 0 : i64, tpu.core_type = #tpu.core_type<tc>, window_params = [{transform_indices = @transform_0, window_bounds = array<i64: 7, 8, 72>}, {pipeline_mode = #tpu.pipeline_mode<synchronous>, transform_indices = @transform_1, window_bounds = array<i64: 72, 224>}, {pipeline_mode = #tpu.pipeline_mode<synchronous>, transform_indices = @transform_2, window_bounds = array<i64: 1, 224>}, {pipeline_mode = #tpu.pipeline_mode<synchronous>, transform_indices = @transform_3, window_bounds = array<i64: 672, 320>}, {pipeline_mode = #tpu.pipeline_mode<synchronous>, transform_indices = @transform_4, window_bounds = array<i64: 1, 320>}, {pipeline_mode = #tpu.pipeline_mode<synchronous>, transform_indices = @transform_5, window_bounds = array<i64: 1600, 256>}, {pipeline_mode = #tpu.pipeline_mode<synchronous>, transform_indices = @transform_6, window_bounds = array<i64: 1, 256>}, {pipeline_mode = #tpu.pipeline_mode<synchronous>, transform_indices = @transform_7, window_bounds = array<i64: 256, 128>}, {pipeline_mode = #tpu.pipeline_mode<synchronous>, transform_indices = @transform_8, window_bounds = array<i64: 1, 128>}, {transform_indices = @transform_9, window_bounds = array<i64: 8, 128>}]} {
    %c0 = arith.constant 0 : index
    %c0_0 = arith.constant 0 : index
    %0 = vector.load %arg2[%c0, %c0_0] : memref<72x224xf32, #tpu.memory_space<vmem>>, vector<72x224xf32>
    %c0_1 = arith.constant 0 : index
    %c0_2 = arith.constant 0 : index
    %1 = vector.load %arg3[%c0_1, %c0_2] : memref<1x224xf32, #tpu.memory_space<vmem>>, vector<1x224xf32>
    %c0_3 = arith.constant 0 : index
    %c0_4 = arith.constant 0 : index
    %c0_5 = arith.constant 0 : index
    %2 = vector.load %arg1[%c0_3, %c0_4, %c0_5] : memref<7x8x72xf32, #tpu.memory_space<vmem>>, vector<1x8x72xf32>
    %3 = vector.shape_cast %2 : vector<1x8x72xf32> to vector<8x72xf32>
    %cst = arith.constant dense<0.000000e+00> : vector<8x224xf32>
    %4 = tpu.matmul %3, %0, %cst {dimension_numbers = #tpu.dot_dimension_numbers<[1], [0], [0], [1], [0, 0, 1, 1], [], []>} : vector<8x72xf32>, vector<72x224xf32>, vector<8x224xf32> -> vector<8x224xf32>
    %5 = vector.broadcast %1 : vector<1x224xf32> to vector<8x224xf32>
    %6 = arith.addf %4, %5 : vector<8x224xf32>
    %cst_6 = arith.constant 0.000000e+00 : f32
    %7 = vector.broadcast %cst_6 : f32 to vector<8x224xf32>
    %8 = arith.maximumf %6, %7 : vector<8x224xf32>
    %c1 = arith.constant 1 : index
    %c0_7 = arith.constant 0 : index
    %c0_8 = arith.constant 0 : index
    %9 = vector.load %arg1[%c1, %c0_7, %c0_8] : memref<7x8x72xf32, #tpu.memory_space<vmem>>, vector<1x8x72xf32>
    %10 = vector.shape_cast %9 : vector<1x8x72xf32> to vector<8x72xf32>
    %cst_9 = arith.constant dense<0.000000e+00> : vector<8x224xf32>
    %11 = tpu.matmul %10, %0, %cst_9 {dimension_numbers = #tpu.dot_dimension_numbers<[1], [0], [0], [1], [0, 0, 1, 1], [], []>} : vector<8x72xf32>, vector<72x224xf32>, vector<8x224xf32> -> vector<8x224xf32>
    %12 = vector.broadcast %1 : vector<1x224xf32> to vector<8x224xf32>
    %13 = arith.addf %11, %12 : vector<8x224xf32>
    %cst_10 = arith.constant 0.000000e+00 : f32
    %14 = vector.broadcast %cst_10 : f32 to vector<8x224xf32>
    %15 = arith.maximumf %13, %14 : vector<8x224xf32>
    %c2 = arith.constant 2 : index
    %c0_11 = arith.constant 0 : index
    %c0_12 = arith.constant 0 : index
    %16 = vector.load %arg1[%c2, %c0_11, %c0_12] : memref<7x8x72xf32, #tpu.memory_space<vmem>>, vector<1x8x72xf32>
    %17 = vector.shape_cast %16 : vector<1x8x72xf32> to vector<8x72xf32>
    %cst_13 = arith.constant dense<0.000000e+00> : vector<8x224xf32>
    %18 = tpu.matmul %17, %0, %cst_13 {dimension_numbers = #tpu.dot_dimension_numbers<[1], [0], [0], [1], [0, 0, 1, 1], [], []>} : vector<8x72xf32>, vector<72x224xf32>, vector<8x224xf32> -> vector<8x224xf32>
    %19 = vector.broadcast %1 : vector<1x224xf32> to vector<8x224xf32>
    %20 = arith.addf %18, %19 : vector<8x224xf32>
    %cst_14 = arith.constant 0.000000e+00 : f32
    %21 = vector.broadcast %cst_14 : f32 to vector<8x224xf32>
    %22 = arith.maximumf %20, %21 : vector<8x224xf32>
    %c3 = arith.constant 3 : index
    %c0_15 = arith.constant 0 : index
    %c0_16 = arith.constant 0 : index
    %23 = vector.load %arg1[%c3, %c0_15, %c0_16] : memref<7x8x72xf32, #tpu.memory_space<vmem>>, vector<1x8x72xf32>
    %24 = vector.shape_cast %23 : vector<1x8x72xf32> to vector<8x72xf32>
    %cst_17 = arith.constant dense<0.000000e+00> : vector<8x224xf32>
    %25 = tpu.matmul %24, %0, %cst_17 {dimension_numbers = #tpu.dot_dimension_numbers<[1], [0], [0], [1], [0, 0, 1, 1], [], []>} : vector<8x72xf32>, vector<72x224xf32>, vector<8x224xf32> -> vector<8x224xf32>
    %26 = vector.broadcast %1 : vector<1x224xf32> to vector<8x224xf32>
    %27 = arith.addf %25, %26 : vector<8x224xf32>
    %cst_18 = arith.constant 0.000000e+00 : f32
    %28 = vector.broadcast %cst_18 : f32 to vector<8x224xf32>
    %29 = arith.maximumf %27, %28 : vector<8x224xf32>
    %c4 = arith.constant 4 : index
    %c0_19 = arith.constant 0 : index
    %c0_20 = arith.constant 0 : index
    %30 = vector.load %arg1[%c4, %c0_19, %c0_20] : memref<7x8x72xf32, #tpu.memory_space<vmem>>, vector<1x8x72xf32>
    %31 = vector.shape_cast %30 : vector<1x8x72xf32> to vector<8x72xf32>
    %cst_21 = arith.constant dense<0.000000e+00> : vector<8x224xf32>
    %32 = tpu.matmul %31, %0, %cst_21 {dimension_numbers = #tpu.dot_dimension_numbers<[1], [0], [0], [1], [0, 0, 1, 1], [], []>} : vector<8x72xf32>, vector<72x224xf32>, vector<8x224xf32> -> vector<8x224xf32>
    %33 = vector.broadcast %1 : vector<1x224xf32> to vector<8x224xf32>
    %34 = arith.addf %32, %33 : vector<8x224xf32>
    %cst_22 = arith.constant 0.000000e+00 : f32
    %35 = vector.broadcast %cst_22 : f32 to vector<8x224xf32>
    %36 = arith.maximumf %34, %35 : vector<8x224xf32>
    %c5 = arith.constant 5 : index
    %c0_23 = arith.constant 0 : index
    %c0_24 = arith.constant 0 : index
    %37 = vector.load %arg1[%c5, %c0_23, %c0_24] : memref<7x8x72xf32, #tpu.memory_space<vmem>>, vector<1x8x72xf32>
    %38 = vector.shape_cast %37 : vector<1x8x72xf32> to vector<8x72xf32>
    %cst_25 = arith.constant dense<0.000000e+00> : vector<8x224xf32>
    %39 = tpu.matmul %38, %0, %cst_25 {dimension_numbers = #tpu.dot_dimension_numbers<[1], [0], [0], [1], [0, 0, 1, 1], [], []>} : vector<8x72xf32>, vector<72x224xf32>, vector<8x224xf32> -> vector<8x224xf32>
    %40 = vector.broadcast %1 : vector<1x224xf32> to vector<8x224xf32>
    %41 = arith.addf %39, %40 : vector<8x224xf32>
    %cst_26 = arith.constant 0.000000e+00 : f32
    %42 = vector.broadcast %cst_26 : f32 to vector<8x224xf32>
    %43 = arith.maximumf %41, %42 : vector<8x224xf32>
    %c6 = arith.constant 6 : index
    %c0_27 = arith.constant 0 : index
    %c0_28 = arith.constant 0 : index
    %44 = vector.load %arg1[%c6, %c0_27, %c0_28] : memref<7x8x72xf32, #tpu.memory_space<vmem>>, vector<1x8x72xf32>
    %45 = vector.shape_cast %44 : vector<1x8x72xf32> to vector<8x72xf32>
    %cst_29 = arith.constant dense<0.000000e+00> : vector<8x224xf32>
    %46 = tpu.matmul %45, %0, %cst_29 {dimension_numbers = #tpu.dot_dimension_numbers<[1], [0], [0], [1], [0, 0, 1, 1], [], []>} : vector<8x72xf32>, vector<72x224xf32>, vector<8x224xf32> -> vector<8x224xf32>
    %47 = vector.broadcast %1 : vector<1x224xf32> to vector<8x224xf32>
    %48 = arith.addf %46, %47 : vector<8x224xf32>
    %cst_30 = arith.constant 0.000000e+00 : f32
    %49 = vector.broadcast %cst_30 : f32 to vector<8x224xf32>
    %50 = arith.maximumf %48, %49 : vector<8x224xf32>
    %c0_31 = arith.constant 0 : index
    %c0_32 = arith.constant 0 : index
    %51 = vector.load %arg4[%c0_31, %c0_32] : memref<672x320xf32, #tpu.memory_space<vmem>>, vector<224x320xf32>
    %c224 = arith.constant 224 : index
    %c0_33 = arith.constant 0 : index
    %52 = vector.load %arg4[%c224, %c0_33] : memref<672x320xf32, #tpu.memory_space<vmem>>, vector<224x320xf32>
    %c448 = arith.constant 448 : index
    %c0_34 = arith.constant 0 : index
    %53 = vector.load %arg4[%c448, %c0_34] : memref<672x320xf32, #tpu.memory_space<vmem>>, vector<224x320xf32>
    %c0_35 = arith.constant 0 : index
    %c0_36 = arith.constant 0 : index
    %54 = vector.load %arg5[%c0_35, %c0_36] : memref<1x320xf32, #tpu.memory_space<vmem>>, vector<1x320xf32>
    %cst_37 = arith.constant dense<0.000000e+00> : vector<8x320xf32>
    %55 = tpu.matmul %8, %51, %cst_37 {dimension_numbers = #tpu.dot_dimension_numbers<[1], [0], [0], [1], [0, 0, 1, 1], [], []>} : vector<8x224xf32>, vector<224x320xf32>, vector<8x320xf32> -> vector<8x320xf32>
    %cst_38 = arith.constant dense<0.000000e+00> : vector<8x320xf32>
    %56 = tpu.matmul %15, %52, %cst_38 {dimension_numbers = #tpu.dot_dimension_numbers<[1], [0], [0], [1], [0, 0, 1, 1], [], []>} : vector<8x224xf32>, vector<224x320xf32>, vector<8x320xf32> -> vector<8x320xf32>
    %57 = arith.addf %55, %56 : vector<8x320xf32>
    %cst_39 = arith.constant dense<0.000000e+00> : vector<8x320xf32>
    %58 = tpu.matmul %22, %53, %cst_39 {dimension_numbers = #tpu.dot_dimension_numbers<[1], [0], [0], [1], [0, 0, 1, 1], [], []>} : vector<8x224xf32>, vector<224x320xf32>, vector<8x320xf32> -> vector<8x320xf32>
    %59 = arith.addf %57, %58 : vector<8x320xf32>
    %60 = vector.broadcast %54 : vector<1x320xf32> to vector<8x320xf32>
    %61 = arith.addf %59, %60 : vector<8x320xf32>
    %cst_40 = arith.constant 0.000000e+00 : f32
    %62 = vector.broadcast %cst_40 : f32 to vector<8x320xf32>
    %63 = arith.maximumf %61, %62 : vector<8x320xf32>
    %cst_41 = arith.constant dense<0.000000e+00> : vector<8x320xf32>
    %64 = tpu.matmul %15, %51, %cst_41 {dimension_numbers = #tpu.dot_dimension_numbers<[1], [0], [0], [1], [0, 0, 1, 1], [], []>} : vector<8x224xf32>, vector<224x320xf32>, vector<8x320xf32> -> vector<8x320xf32>
    %cst_42 = arith.constant dense<0.000000e+00> : vector<8x320xf32>
    %65 = tpu.matmul %22, %52, %cst_42 {dimension_numbers = #tpu.dot_dimension_numbers<[1], [0], [0], [1], [0, 0, 1, 1], [], []>} : vector<8x224xf32>, vector<224x320xf32>, vector<8x320xf32> -> vector<8x320xf32>
    %66 = arith.addf %64, %65 : vector<8x320xf32>
    %cst_43 = arith.constant dense<0.000000e+00> : vector<8x320xf32>
    %67 = tpu.matmul %29, %53, %cst_43 {dimension_numbers = #tpu.dot_dimension_numbers<[1], [0], [0], [1], [0, 0, 1, 1], [], []>} : vector<8x224xf32>, vector<224x320xf32>, vector<8x320xf32> -> vector<8x320xf32>
    %68 = arith.addf %66, %67 : vector<8x320xf32>
    %69 = vector.broadcast %54 : vector<1x320xf32> to vector<8x320xf32>
    %70 = arith.addf %68, %69 : vector<8x320xf32>
    %cst_44 = arith.constant 0.000000e+00 : f32
    %71 = vector.broadcast %cst_44 : f32 to vector<8x320xf32>
    %72 = arith.maximumf %70, %71 : vector<8x320xf32>
    %cst_45 = arith.constant dense<0.000000e+00> : vector<8x320xf32>
    %73 = tpu.matmul %22, %51, %cst_45 {dimension_numbers = #tpu.dot_dimension_numbers<[1], [0], [0], [1], [0, 0, 1, 1], [], []>} : vector<8x224xf32>, vector<224x320xf32>, vector<8x320xf32> -> vector<8x320xf32>
    %cst_46 = arith.constant dense<0.000000e+00> : vector<8x320xf32>
    %74 = tpu.matmul %29, %52, %cst_46 {dimension_numbers = #tpu.dot_dimension_numbers<[1], [0], [0], [1], [0, 0, 1, 1], [], []>} : vector<8x224xf32>, vector<224x320xf32>, vector<8x320xf32> -> vector<8x320xf32>
    %75 = arith.addf %73, %74 : vector<8x320xf32>
    %cst_47 = arith.constant dense<0.000000e+00> : vector<8x320xf32>
    %76 = tpu.matmul %36, %53, %cst_47 {dimension_numbers = #tpu.dot_dimension_numbers<[1], [0], [0], [1], [0, 0, 1, 1], [], []>} : vector<8x224xf32>, vector<224x320xf32>, vector<8x320xf32> -> vector<8x320xf32>
    %77 = arith.addf %75, %76 : vector<8x320xf32>
    %78 = vector.broadcast %54 : vector<1x320xf32> to vector<8x320xf32>
    %79 = arith.addf %77, %78 : vector<8x320xf32>
    %cst_48 = arith.constant 0.000000e+00 : f32
    %80 = vector.broadcast %cst_48 : f32 to vector<8x320xf32>
    %81 = arith.maximumf %79, %80 : vector<8x320xf32>
    %cst_49 = arith.constant dense<0.000000e+00> : vector<8x320xf32>
    %82 = tpu.matmul %29, %51, %cst_49 {dimension_numbers = #tpu.dot_dimension_numbers<[1], [0], [0], [1], [0, 0, 1, 1], [], []>} : vector<8x224xf32>, vector<224x320xf32>, vector<8x320xf32> -> vector<8x320xf32>
    %cst_50 = arith.constant dense<0.000000e+00> : vector<8x320xf32>
    %83 = tpu.matmul %36, %52, %cst_50 {dimension_numbers = #tpu.dot_dimension_numbers<[1], [0], [0], [1], [0, 0, 1, 1], [], []>} : vector<8x224xf32>, vector<224x320xf32>, vector<8x320xf32> -> vector<8x320xf32>
    %84 = arith.addf %82, %83 : vector<8x320xf32>
    %cst_51 = arith.constant dense<0.000000e+00> : vector<8x320xf32>
    %85 = tpu.matmul %43, %53, %cst_51 {dimension_numbers = #tpu.dot_dimension_numbers<[1], [0], [0], [1], [0, 0, 1, 1], [], []>} : vector<8x224xf32>, vector<224x320xf32>, vector<8x320xf32> -> vector<8x320xf32>
    %86 = arith.addf %84, %85 : vector<8x320xf32>
    %87 = vector.broadcast %54 : vector<1x320xf32> to vector<8x320xf32>
    %88 = arith.addf %86, %87 : vector<8x320xf32>
    %cst_52 = arith.constant 0.000000e+00 : f32
    %89 = vector.broadcast %cst_52 : f32 to vector<8x320xf32>
    %90 = arith.maximumf %88, %89 : vector<8x320xf32>
    %cst_53 = arith.constant dense<0.000000e+00> : vector<8x320xf32>
    %91 = tpu.matmul %36, %51, %cst_53 {dimension_numbers = #tpu.dot_dimension_numbers<[1], [0], [0], [1], [0, 0, 1, 1], [], []>} : vector<8x224xf32>, vector<224x320xf32>, vector<8x320xf32> -> vector<8x320xf32>
    %cst_54 = arith.constant dense<0.000000e+00> : vector<8x320xf32>
    %92 = tpu.matmul %43, %52, %cst_54 {dimension_numbers = #tpu.dot_dimension_numbers<[1], [0], [0], [1], [0, 0, 1, 1], [], []>} : vector<8x224xf32>, vector<224x320xf32>, vector<8x320xf32> -> vector<8x320xf32>
    %93 = arith.addf %91, %92 : vector<8x320xf32>
    %cst_55 = arith.constant dense<0.000000e+00> : vector<8x320xf32>
    %94 = tpu.matmul %50, %53, %cst_55 {dimension_numbers = #tpu.dot_dimension_numbers<[1], [0], [0], [1], [0, 0, 1, 1], [], []>} : vector<8x224xf32>, vector<224x320xf32>, vector<8x320xf32> -> vector<8x320xf32>
    %95 = arith.addf %93, %94 : vector<8x320xf32>
    %96 = vector.broadcast %54 : vector<1x320xf32> to vector<8x320xf32>
    %97 = arith.addf %95, %96 : vector<8x320xf32>
    %cst_56 = arith.constant 0.000000e+00 : f32
    %98 = vector.broadcast %cst_56 : f32 to vector<8x320xf32>
    %99 = arith.maximumf %97, %98 : vector<8x320xf32>
    %c0_57 = arith.constant 0 : index
    %c0_58 = arith.constant 0 : index
    %100 = vector.load %arg6[%c0_57, %c0_58] : memref<1600x256xf32, #tpu.memory_space<vmem>>, vector<320x256xf32>
    %c320 = arith.constant 320 : index
    %c0_59 = arith.constant 0 : index
    %101 = vector.load %arg6[%c320, %c0_59] : memref<1600x256xf32, #tpu.memory_space<vmem>>, vector<320x256xf32>
    %c640 = arith.constant 640 : index
    %c0_60 = arith.constant 0 : index
    %102 = vector.load %arg6[%c640, %c0_60] : memref<1600x256xf32, #tpu.memory_space<vmem>>, vector<320x256xf32>
    %c960 = arith.constant 960 : index
    %c0_61 = arith.constant 0 : index
    %103 = vector.load %arg6[%c960, %c0_61] : memref<1600x256xf32, #tpu.memory_space<vmem>>, vector<320x256xf32>
    %c1280 = arith.constant 1280 : index
    %c0_62 = arith.constant 0 : index
    %104 = vector.load %arg6[%c1280, %c0_62] : memref<1600x256xf32, #tpu.memory_space<vmem>>, vector<320x256xf32>
    %cst_63 = arith.constant dense<0.000000e+00> : vector<8x256xf32>
    %105 = tpu.matmul %63, %100, %cst_63 {dimension_numbers = #tpu.dot_dimension_numbers<[1], [0], [0], [1], [0, 0, 1, 1], [], []>} : vector<8x320xf32>, vector<320x256xf32>, vector<8x256xf32> -> vector<8x256xf32>
    %cst_64 = arith.constant dense<0.000000e+00> : vector<8x256xf32>
    %106 = tpu.matmul %72, %101, %cst_64 {dimension_numbers = #tpu.dot_dimension_numbers<[1], [0], [0], [1], [0, 0, 1, 1], [], []>} : vector<8x320xf32>, vector<320x256xf32>, vector<8x256xf32> -> vector<8x256xf32>
    %107 = arith.addf %105, %106 : vector<8x256xf32>
    %cst_65 = arith.constant dense<0.000000e+00> : vector<8x256xf32>
    %108 = tpu.matmul %81, %102, %cst_65 {dimension_numbers = #tpu.dot_dimension_numbers<[1], [0], [0], [1], [0, 0, 1, 1], [], []>} : vector<8x320xf32>, vector<320x256xf32>, vector<8x256xf32> -> vector<8x256xf32>
    %109 = arith.addf %107, %108 : vector<8x256xf32>
    %cst_66 = arith.constant dense<0.000000e+00> : vector<8x256xf32>
    %110 = tpu.matmul %90, %103, %cst_66 {dimension_numbers = #tpu.dot_dimension_numbers<[1], [0], [0], [1], [0, 0, 1, 1], [], []>} : vector<8x320xf32>, vector<320x256xf32>, vector<8x256xf32> -> vector<8x256xf32>
    %111 = arith.addf %109, %110 : vector<8x256xf32>
    %cst_67 = arith.constant dense<0.000000e+00> : vector<8x256xf32>
    %112 = tpu.matmul %99, %104, %cst_67 {dimension_numbers = #tpu.dot_dimension_numbers<[1], [0], [0], [1], [0, 0, 1, 1], [], []>} : vector<8x320xf32>, vector<320x256xf32>, vector<8x256xf32> -> vector<8x256xf32>
    %113 = arith.addf %111, %112 : vector<8x256xf32>
    %c0_68 = arith.constant 0 : index
    %c0_69 = arith.constant 0 : index
    %114 = vector.load %arg7[%c0_68, %c0_69] : memref<1x256xf32, #tpu.memory_space<vmem>>, vector<1x256xf32>
    %115 = vector.broadcast %114 : vector<1x256xf32> to vector<8x256xf32>
    %116 = arith.addf %113, %115 : vector<8x256xf32>
    %cst_70 = arith.constant 0.000000e+00 : f32
    %117 = vector.broadcast %cst_70 : f32 to vector<8x256xf32>
    %118 = arith.maximumf %116, %117 : vector<8x256xf32>
    %c0_71 = arith.constant 0 : index
    %c0_72 = arith.constant 0 : index
    %119 = vector.load %arg8[%c0_71, %c0_72] : memref<256x128xf32, #tpu.memory_space<vmem>>, vector<256x128xf32>
    %cst_73 = arith.constant dense<0.000000e+00> : vector<8x128xf32>
    %120 = tpu.matmul %118, %119, %cst_73 {dimension_numbers = #tpu.dot_dimension_numbers<[1], [0], [0], [1], [0, 0, 1, 1], [], []>} : vector<8x256xf32>, vector<256x128xf32>, vector<8x128xf32> -> vector<8x128xf32>
    %c0_74 = arith.constant 0 : index
    %c0_75 = arith.constant 0 : index
    %121 = vector.load %arg9[%c0_74, %c0_75] : memref<1x128xf32, #tpu.memory_space<vmem>>, vector<1x128xf32>
    %122 = vector.broadcast %121 : vector<1x128xf32> to vector<8x128xf32>
    %123 = arith.addf %120, %122 : vector<8x128xf32>
    %c0_76 = arith.constant 0 : index
    %c0_77 = arith.constant 0 : index
    %124 = vector.load %arg10[%c0_76, %c0_77] : memref<8x128xf32, #tpu.memory_space<vmem>>, vector<8x128xf32>
    tpu.vector_store %arg10[%c0_76, %c0_77], %123 {strides = array<i32>} : memref<8x128xf32, #tpu.memory_space<vmem>>, vector<8x128xf32>,
    return
  }
  func.func @transform_0(%arg0: i32) -> (i32, i32, i32) {
    %c0_i32 = arith.constant 0 : i32
    %c0_i32_0 = arith.constant 0 : i32
    %c0_i32_1 = arith.constant 0 : i32
    return %c0_i32, %arg0, %c0_i32_0 : i32, i32, i32
  }
  func.func @transform_1(%arg0: i32) -> (i32, i32) {
    %c0_i32 = arith.constant 0 : i32
    %c0_i32_0 = arith.constant 0 : i32
    %c0_i32_1 = arith.constant 0 : i32
    return %c0_i32, %c0_i32_0 : i32, i32
  }
  func.func @transform_2(%arg0: i32) -> (i32, i32) {
    %c0_i32 = arith.constant 0 : i32
    %c0_i32_0 = arith.constant 0 : i32
    %c0_i32_1 = arith.constant 0 : i32
    return %c0_i32, %c0_i32_0 : i32, i32
  }
  func.func @transform_3(%arg0: i32) -> (i32, i32) {
    %c0_i32 = arith.constant 0 : i32
    %c0_i32_0 = arith.constant 0 : i32
    %c0_i32_1 = arith.constant 0 : i32
    return %c0_i32, %c0_i32_0 : i32, i32
  }
  func.func @transform_4(%arg0: i32) -> (i32, i32) {
    %c0_i32 = arith.constant 0 : i32
    %c0_i32_0 = arith.constant 0 : i32
    %c0_i32_1 = arith.constant 0 : i32
    return %c0_i32, %c0_i32_0 : i32, i32
  }
  func.func @transform_5(%arg0: i32) -> (i32, i32) {
    %c0_i32 = arith.constant 0 : i32
    %c0_i32_0 = arith.constant 0 : i32
    %c0_i32_1 = arith.constant 0 : i32
    return %c0_i32, %c0_i32_0 : i32, i32
  }
  func.func @transform_6(%arg0: i32) -> (i32, i32) {
    %c0_i32 = arith.constant 0 : i32
    %c0_i32_0 = arith.constant 0 : i32
    %c0_i32_1 = arith.constant 0 : i32
    return %c0_i32, %c0_i32_0 : i32, i32
  }
  func.func @transform_7(%arg0: i32) -> (i32, i32) {
    %c0_i32 = arith.constant 0 : i32
    %c0_i32_0 = arith.constant 0 : i32
    %c0_i32_1 = arith.constant 0 : i32
    return %c0_i32, %c0_i32_0 : i32, i32
  }
  func.func @transform_8(%arg0: i32) -> (i32, i32) {
    %c0_i32 = arith.constant 0 : i32
    %c0_i32_0 = arith.constant 0 : i32
    %c0_i32_1 = arith.constant 0 : i32
    return %c0_i32, %c0_i32_0 : i32, i32
  }
  func.func @transform_9(%arg0: i32) -> (i32, i32) {
    %c0_i32 = arith.constant 0 : i32
    %c0_i32_0 = arith.constant 0 : i32
    return %arg0, %c0_i32 : i32, i32
  }
}

</mosaic_0001>

<llo_original>
// kernel: net_forward.1
$region0: #{net_forward.1}
  #allocation0 [shape = 'u32[]', space=smem, size = 0x4, offset = 0x4, fixed_abs, tag = 'smem constant byte address 0x4 - core index']
  #allocation1 [shape = 'u32[144,128]{1,0:T(1,128)}', space=vmem, size = 0x12000, scoped, tag = 'internal scratch']
  %s0 = inlined_call_operand.vmem [shape: f32[7,8,72], index: 0, kind: input, shape index: {}]
  %s1 = inlined_call_operand.vmem [shape: f32[72,224], index: 1, kind: input, shape index: {}]
  %s2 = inlined_call_operand.vmem [shape: f32[1,224], index: 2, kind: input, shape index: {}]
  %s3 = inlined_call_operand.vmem [shape: f32[672,320], index: 3, kind: input, shape index: {}]
  %s4 = inlined_call_operand.vmem [shape: f32[1,320], index: 4, kind: input, shape index: {}]
  %s5 = inlined_call_operand.vmem [shape: f32[1600,256], index: 5, kind: input, shape index: {}]
  %s6 = inlined_call_operand.vmem [shape: f32[1,256], index: 6, kind: input, shape index: {}]
  %s7 = inlined_call_operand.vmem [shape: f32[256,128], index: 7, kind: input, shape index: {}]
  %s8 = inlined_call_operand.vmem [shape: f32[1,128], index: 8, kind: input, shape index: {}]
  %s9 = inlined_call_operand.vmem [shape: f32[8,128], index: 9, kind: output, shape index: {}]
  %s10 = sld [smem:[#allocation0]]
  $region46: #{net_forward.1} parent=0
    _
  %s12 = ssub.s32 1, %s10
  %s13 = scalar_select 0, %s12, %s10
  // Predicated region
  $region2: #{net_forward.1} parent=0 // pred_check
    _
  $region3: #{net_forward.1} parent=0 // pred_check_branch
    %15 = sbr.rel (0) target = $region5
  $region4: #{net_forward.1} parent=0 // pred_region
    _
  $region5: #{net_forward.1} parent=0 // pred_fallthru
    _
  // Predicated region
  $region6: #{net_forward.1} parent=0 // pred_check
    _
  $region7: #{net_forward.1} parent=0 // pred_check_branch
    %17 = sbr.rel (0) target = $region9
  $region8: #{net_forward.1} parent=0 // pred_region
    _
  $region9: #{net_forward.1} parent=0 // pred_fallthru
    _
  // Predicated region
  $region10: #{net_forward.1} parent=0 // pred_check
    _
  $region11: #{net_forward.1} parent=0 // pred_check_branch
    %19 = sbr.rel (0) target = $region13
  $region12: #{net_forward.1} parent=0 // pred_region
    _
  $region13: #{net_forward.1} parent=0 // pred_fallthru
    _
  // Predicated region
  $region14: #{net_forward.1} parent=0 // pred_check
    _
  $region15: #{net_forward.1} parent=0 // pred_check_branch
    %21 = sbr.rel (0) target = $region17
  $region16: #{net_forward.1} parent=0 // pred_region
    _
  $region17: #{net_forward.1} parent=0 // pred_fallthru
    _
  // Predicated region
  $region18: #{net_forward.1} parent=0 // pred_check
    _
  $region19: #{net_forward.1} parent=0 // pred_check_branch
    %23 = sbr.rel (0) target = $region21
  $region20: #{net_forward.1} parent=0 // pred_region
    _
  $region21: #{net_forward.1} parent=0 // pred_fallthru
    _
  // Predicated region
  $region22: #{net_forward.1} parent=0 // pred_check
    _
  $region23: #{net_forward.1} parent=0 // pred_check_branch
    %25 = sbr.rel (0) target = $region25
  $region24: #{net_forward.1} parent=0 // pred_region
    _
  $region25: #{net_forward.1} parent=0 // pred_fallthru
    _
  // Predicated region
  $region26: #{net_forward.1} parent=0 // pred_check
    _
  $region27: #{net_forward.1} parent=0 // pred_check_branch
    %27 = sbr.rel (0) target = $region29
  $region28: #{net_forward.1} parent=0 // pred_region
    _
  $region29: #{net_forward.1} parent=0 // pred_fallthru
    _
  // Predicated region
  $region30: #{net_forward.1} parent=0 // pred_check
    _
  $region31: #{net_forward.1} parent=0 // pred_check_branch
    %29 = sbr.rel (0) target = $region33
  $region32: #{net_forward.1} parent=0 // pred_region
    _
  $region33: #{net_forward.1} parent=0 // pred_fallthru
    _
  // Predicated region
  $region34: #{net_forward.1} parent=0 // pred_check
    _
  $region35: #{net_forward.1} parent=0 // pred_check_branch
    %31 = sbr.rel (0) target = $region37
  $region36: #{net_forward.1} parent=0 // pred_region
    _
  $region37: #{net_forward.1} parent=0 // pred_fallthru
    _
  %v32 = vld [vmem:[%s1] sm:$0xff]
  %v33 = vld [vmem:[%s1 + $0x8] sm:$0xff]
  %v34 = vld [vmem:[%s1 + $0x10] sm:$0xff]
  %v35 = vld [vmem:[%s1 + $0x18] sm:$0xff]
  %v36 = vld [vmem:[%s1 + $0x20] sm:$0xff]
  %v37 = vld [vmem:[%s1 + $0x28] sm:$0xff]
  %v38 = vld [vmem:[%s1 + $0x30] sm:$0xff]
  %v39 = vld [vmem:[%s1 + $0x38] sm:$0xff]
  %v40 = vld [vmem:[%s1 + $0x40] sm:$0xff]
  %v41 = vld [vmem:[%s1 + $0x48] sm:$0xff]
  %v42 = vld [vmem:[%s1 + $0x50] sm:$0xff]
  %v43 = vld [vmem:[%s1 + $0x58] sm:$0xff]
  %v44 = vld [vmem:[%s1 + $0x60] sm:$0xff]
  %v45 = vld [vmem:[%s1 + $0x68] sm:$0xff]
  %v46 = vld [vmem:[%s1 + $0x70] sm:$0xff]
  %v47 = vld [vmem:[%s1 + $0x78] sm:$0xff]
  %v48 = vld [vmem:[%s1 + $0x80] sm:$0xff]
  %v49 = vld [vmem:[%s1 + $0x88] sm:$0xff]
  %v50 = vld [vmem:[%s2] sm:$0x3]
  %v51 = vld [vmem:[%s0] sm:$0xff]
  %v53 = vlaneseq
  %v54 = vshrl.u32 %v53, 7
  %v55 = vsub.s32 0, %v54
  %v56 = vrot.slane %v50, %v55
  %v57 = vlaneseq
  %v58 = vshrl.u32 %v57, 7
  %v59 = vsub.s32 1, %v58
  %v60 = vrot.slane %v50, %v59
  %vm63 = vcmask 588800
  %v65 = vsel %vm63, %v51, 0
  %67 = vmatprep.subr.mxu0 0.0
  %68 = vmatpush1.msra.mxu0 0.0
  %69 = vmatprep.subr.mxu0 0.0
  %70 = vmatpush1.msra.mxu0 0.0
  %71 = vmatprep.subr.mxu0 0.0
  %72 = vmatpush1.msra.mxu0 0.0
  %73 = vmatprep.subr.mxu0 0.0
  %74 = vmatpush1.msra.mxu0 0.0
  %75 = vmatprep.subr.mxu0 0.0
  %76 = vmatpush1.msra.mxu0 0.0
  %77 = vmatprep.subr.mxu0 0.0
  %78 = vmatpush1.msra.mxu0 0.0
  %79 = vmatprep.subr.mxu0 0.0
  %80 = vmatpush1.msra.mxu0 0.0
  %81 = vmatprep.subr.mxu0 %v49
  %82 = vmatpush1.msra.mxu0 %v48
  %83 = vmatprep.subr.mxu0 %v47
  %84 = vmatpush1.msra.mxu0 %v46
  %85 = vmatprep.subr.mxu0 %v45
  %86 = vmatpush1.msra.mxu0 %v44
  %87 = vmatprep.subr.mxu0 %v43
  %88 = vmatpush1.msra.mxu0 %v42
  %89 = vmatprep.subr.mxu0 %v41
  %90 = vmatpush1.msra.mxu0 %v40
  %91 = vmatprep.subr.mxu0 %v39
  %92 = vmatpush1.msra.mxu0 %v38
  %93 = vmatprep.subr.mxu0 %v37
  %94 = vmatpush1.msra.mxu0 %v36
  %95 = vmatprep.subr.mxu0 %v35
  %96 = vmatpush1.msra.mxu0 %v34
  %97 = vmatprep.subr.mxu0 %v33
  %98 = vmatpush1.msra.mxu0 %v32
  %99 = vmatprep.subr.mxu0 0.0
  %100 = vmatpush2.msra.mxu0 0.0
  %101 = vmatprep.subr.mxu0 0.0
  %102 = vmatpush2.msra.mxu0 0.0
  %103 = vmatprep.subr.mxu0 0.0
  %104 = vmatpush2.msra.mxu0 0.0
  %105 = vmatprep.subr.mxu0 0.0
  %106 = vmatpush2.msra.mxu0 0.0
  %107 = vmatprep.subr.mxu0 0.0
  %108 = vmatpush2.msra.mxu0 0.0
  %109 = vmatprep.subr.mxu0 0.0
  %110 = vmatpush2.msra.mxu0 0.0
  %111 = vmatprep.subr.mxu0 0.0
  %112 = vmatpush2.msra.mxu0 0.0
  %113 = vmatprep.subr.mxu0 0.0
  %114 = vmatpush2.msra.mxu0 0.0
  %115 = vmatprep.subr.mxu0 0.0
  %116 = vmatpush2.msra.mxu0 0.0
  %117 = vmatprep.subr.mxu0 0.0
  %118 = vmatpush2.msra.mxu0 0.0
  %119 = vmatprep.subr.mxu0 0.0
  %120 = vmatpush2.msra.mxu0 0.0
  %121 = vmatprep.subr.mxu0 0.0
  %122 = vmatpush2.msra.mxu0 0.0
  %123 = vmatprep.subr.mxu0 0.0
  %124 = vmatpush2.msra.mxu0 0.0
  %125 = vmatprep.subr.mxu0 0.0
  %126 = vmatpush2.msra.mxu0 0.0
  %127 = vmatprep.subr.mxu0 0.0
  %128 = vmatpush2.msra.mxu0 0.0
  %129 = vmatprep.subr.mxu0 0.0
  %130 = vmatpush2.msra.mxu0 0.0
  %131 = vmatprep.mubr.f32.mxu0 0.0
  %132 = vmatmul.mubr.f32.gmra.mxu0 %v65
  %v133 = vpop.f32.mrf.mxu0
  %v134 = vadd.f32 %v56, %v133
  %v135 = vpop.f32.mrf.mxu0
  %v136 = vadd.f32 %v60, %v135
  %137 = vdwg.mxu0
  %v138 = vmax.f32 %v134, 0.0
  %v139 = vmax.f32 %v136, 0.0
  %s140 = scalar_lea.vmem %s0, 8
  %v141 = vld [vmem:[%s140] sm:$0xff]
  %v143 = vsel %vm63, %v141, 0
  %145 = vmatprep.subr.mxu0 0.0
  %146 = vmatpush1.msra.mxu0 0.0
  %147 = vmatprep.subr.mxu0 0.0
  %148 = vmatpush1.msra.mxu0 0.0
  %149 = vmatprep.subr.mxu0 0.0
  %150 = vmatpush1.msra.mxu0 0.0
  %151 = vmatprep.subr.mxu0 0.0
  %152 = vmatpush1.msra.mxu0 0.0
  %153 = vmatprep.subr.mxu0 0.0
  %154 = vmatpush1.msra.mxu0 0.0
  %155 = vmatprep.subr.mxu0 0.0
  %156 = vmatpush1.msra.mxu0 0.0
  %157 = vmatprep.subr.mxu0 0.0
  %158 = vmatpush1.msra.mxu0 0.0
  %159 = vmatprep.subr.mxu0 %v49
  %160 = vmatpush1.msra.mxu0 %v48
  %161 = vmatprep.subr.mxu0 %v47
  %162 = vmatpush1.msra.mxu0 %v46
  %163 = vmatprep.subr.mxu0 %v45
  %164 = vmatpush1.msra.mxu0 %v44
  %165 = vmatprep.subr.mxu0 %v43
  %166 = vmatpush1.msra.mxu0 %v42
  %167 = vmatprep.subr.mxu0 %v41
  %168 = vmatpush1.msra.mxu0 %v40
  %169 = vmatprep.subr.mxu0 %v39
  %170 = vmatpush1.msra.mxu0 %v38
  %171 = vmatprep.subr.mxu0 %v37
  %172 = vmatpush1.msra.mxu0 %v36
  %173 = vmatprep.subr.mxu0 %v35
  %174 = vmatpush1.msra.mxu0 %v34
  %175 = vmatprep.subr.mxu0 %v33
  %176 = vmatpush1.msra.mxu0 %v32
  %177 = vmatprep.subr.mxu0 0.0
  %178 = vmatpush2.msra.mxu0 0.0
  %179 = vmatprep.subr.mxu0 0.0
  %180 = vmatpush2.msra.mxu0 0.0
  %181 = vmatprep.subr.mxu0 0.0
  %182 = vmatpush2.msra.mxu0 0.0
  %183 = vmatprep.subr.mxu0 0.0
  %184 = vmatpush2.msra.mxu0 0.0
  %185 = vmatprep.subr.mxu0 0.0
  %186 = vmatpush2.msra.mxu0 0.0
  %187 = vmatprep.subr.mxu0 0.0
  %188 = vmatpush2.msra.mxu0 0.0
  %189 = vmatprep.subr.mxu0 0.0
  %190 = vmatpush2.msra.mxu0 0.0
  %191 = vmatprep.subr.mxu0 0.0
  %192 = vmatpush2.msra.mxu0 0.0
  %193 = vmatprep.subr.mxu0 0.0
  %194 = vmatpush2.msra.mxu0 0.0
  %195 = vmatprep.subr.mxu0 0.0
  %196 = vmatpush2.msra.mxu0 0.0
  %197 = vmatprep.subr.mxu0 0.0
  %198 = vmatpush2.msra.mxu0 0.0
  %199 = vmatprep.subr.mxu0 0.0
  %200 = vmatpush2.msra.mxu0 0.0
  %201 = vmatprep.subr.mxu0 0.0
  %202 = vmatpush2.msra.mxu0 0.0
  %203 = vmatprep.subr.mxu0 0.0
  %204 = vmatpush2.msra.mxu0 0.0
  %205 = vmatprep.subr.mxu0 0.0
  %206 = vmatpush2.msra.mxu0 0.0
  %207 = vmatprep.subr.mxu0 0.0
  %208 = vmatpush2.msra.mxu0 0.0
  %209 = vmatprep.mubr.f32.mxu0 0.0
  %210 = vmatmul.mubr.f32.gmra.mxu0 %v143
  %v211 = vpop.f32.mrf.mxu0
  %v212 = vadd.f32 %v56, %v211
  %v213 = vpop.f32.mrf.mxu0
  %v214 = vadd.f32 %v60, %v213
  %215 = vdwg.mxu0
  %v216 = vmax.f32 %v212, 0.0
  %v217 = vmax.f32 %v214, 0.0
  %s218 = scalar_lea.vmem %s0, 16
  %v219 = vld [vmem:[%s218] sm:$0xff]
  %v221 = vsel %vm63, %v219, 0
  %223 = vmatprep.subr.mxu0 0.0
  %224 = vmatpush1.msra.mxu0 0.0
  %225 = vmatprep.subr.mxu0 0.0
  %226 = vmatpush1.msra.mxu0 0.0
  %227 = vmatprep.subr.mxu0 0.0
  %228 = vmatpush1.msra.mxu0 0.0
  %229 = vmatprep.subr.mxu0 0.0
  %230 = vmatpush1.msra.mxu0 0.0
  %231 = vmatprep.subr.mxu0 0.0
  %232 = vmatpush1.msra.mxu0 0.0
  %233 = vmatprep.subr.mxu0 0.0
  %234 = vmatpush1.msra.mxu0 0.0
  %235 = vmatprep.subr.mxu0 0.0
  %236 = vmatpush1.msra.mxu0 0.0
  %237 = vmatprep.subr.mxu0 %v49
  %238 = vmatpush1.msra.mxu0 %v48
  %239 = vmatprep.subr.mxu0 %v47
  %240 = vmatpush1.msra.mxu0 %v46
  %241 = vmatprep.subr.mxu0 %v45
  %242 = vmatpush1.msra.mxu0 %v44
  %243 = vmatprep.subr.mxu0 %v43
  %244 = vmatpush1.msra.mxu0 %v42
  %245 = vmatprep.subr.mxu0 %v41
  %246 = vmatpush1.msra.mxu0 %v40
  %247 = vmatprep.subr.mxu0 %v39
  %248 = vmatpush1.msra.mxu0 %v38
  %249 = vmatprep.subr.mxu0 %v37
  %250 = vmatpush1.msra.mxu0 %v36
  %251 = vmatprep.subr.mxu0 %v35
  %252 = vmatpush1.msra.mxu0 %v34
  %253 = vmatprep.subr.mxu0 %v33
  %254 = vmatpush1.msra.mxu0 %v32
  %255 = vmatprep.subr.mxu0 0.0
  %256 = vmatpush2.msra.mxu0 0.0
  %257 = vmatprep.subr.mxu0 0.0
  %258 = vmatpush2.msra.mxu0 0.0
  %259 = vmatprep.subr.mxu0 0.0
  %260 = vmatpush2.msra.mxu0 0.0
  %261 = vmatprep.subr.mxu0 0.0
  %262 = vmatpush2.msra.mxu0 0.0
  %263 = vmatprep.subr.mxu0 0.0
  %264 = vmatpush2.msra.mxu0 0.0
  %265 = vmatprep.subr.mxu0 0.0
  %266 = vmatpush2.msra.mxu0 0.0
  %267 = vmatprep.subr.mxu0 0.0
  %268 = vmatpush2.msra.mxu0 0.0
  %269 = vmatprep.subr.mxu0 0.0
  %270 = vmatpush2.msra.mxu0 0.0
  %271 = vmatprep.subr.mxu0 0.0
  %272 = vmatpush2.msra.mxu0 0.0
  %273 = vmatprep.subr.mxu0 0.0
  %274 = vmatpush2.msra.mxu0 0.0
  %275 = vmatprep.subr.mxu0 0.0
  %276 = vmatpush2.msra.mxu0 0.0
  %277 = vmatprep.subr.mxu0 0.0
  %278 = vmatpush2.msra.mxu0 0.0
  %279 = vmatprep.subr.mxu0 0.0
  %280 = vmatpush2.msra.mxu0 0.0
  %281 = vmatprep.subr.mxu0 0.0
  %282 = vmatpush2.msra.mxu0 0.0
  %283 = vmatprep.subr.mxu0 0.0
  %284 = vmatpush2.msra.mxu0 0.0
  %285 = vmatprep.subr.mxu0 0.0
  %286 = vmatpush2.msra.mxu0 0.0
  %287 = vmatprep.mubr.f32.mxu0 0.0
  %288 = vmatmul.mubr.f32.gmra.mxu0 %v221
  %v289 = vpop.f32.mrf.mxu0
  %v290 = vadd.f32 %v56, %v289
  %v291 = vpop.f32.mrf.mxu0
  %v292 = vadd.f32 %v60, %v291
  %293 = vdwg.mxu0
  %v294 = vmax.f32 %v290, 0.0
  %v295 = vmax.f32 %v292, 0.0
  %s296 = scalar_lea.vmem %s0, 24
  %v297 = vld [vmem:[%s296] sm:$0xff]
  %v299 = vsel %vm63, %v297, 0
  %301 = vmatprep.subr.mxu0 0.0
  %302 = vmatpush1.msra.mxu0 0.0
  %303 = vmatprep.subr.mxu0 0.0
  %304 = vmatpush1.msra.mxu0 0.0
  %305 = vmatprep.subr.mxu0 0.0
  %306 = vmatpush1.msra.mxu0 0.0
  %307 = vmatprep.subr.mxu0 0.0
  %308 = vmatpush1.msra.mxu0 0.0
  %309 = vmatprep.subr.mxu0 0.0
  %310 = vmatpush1.msra.mxu0 0.0
  %311 = vmatprep.subr.mxu0 0.0
  %312 = vmatpush1.msra.mxu0 0.0
  %313 = vmatprep.subr.mxu0 0.0
  %314 = vmatpush1.msra.mxu0 0.0
  %315 = vmatprep.subr.mxu0 %v49
  %316 = vmatpush1.msra.mxu0 %v48
  %317 = vmatprep.subr.mxu0 %v47
  %318 = vmatpush1.msra.mxu0 %v46
  %319 = vmatprep.subr.mxu0 %v45
  %320 = vmatpush1.msra.mxu0 %v44
  %321 = vmatprep.subr.mxu0 %v43
  %322 = vmatpush1.msra.mxu0 %v42
  %323 = vmatprep.subr.mxu0 %v41
  %324 = vmatpush1.msra.mxu0 %v40
  %325 = vmatprep.subr.mxu0 %v39
  %326 = vmatpush1.msra.mxu0 %v38
  %327 = vmatprep.subr.mxu0 %v37
  %328 = vmatpush1.msra.mxu0 %v36
  %329 = vmatprep.subr.mxu0 %v35
  %330 = vmatpush1.msra.mxu0 %v34
  %331 = vmatprep.subr.mxu0 %v33
  %332 = vmatpush1.msra.mxu0 %v32
  %333 = vmatprep.subr.mxu0 0.0
  %334 = vmatpush2.msra.mxu0 0.0
  %335 = vmatprep.subr.mxu0 0.0
  %336 = vmatpush2.msra.mxu0 0.0
  %337 = vmatprep.subr.mxu0 0.0
  %338 = vmatpush2.msra.mxu0 0.0
  %339 = vmatprep.subr.mxu0 0.0
  %340 = vmatpush2.msra.mxu0 0.0
  %341 = vmatprep.subr.mxu0 0.0
  %342 = vmatpush2.msra.mxu0 0.0
  %343 = vmatprep.subr.mxu0 0.0
  %344 = vmatpush2.msra.mxu0 0.0
  %345 = vmatprep.subr.mxu0 0.0
  %346 = vmatpush2.msra.mxu0 0.0
  %347 = vmatprep.subr.mxu0 0.0
  %348 = vmatpush2.msra.mxu0 0.0
  %349 = vmatprep.subr.mxu0 0.0
  %350 = vmatpush2.msra.mxu0 0.0
  %351 = vmatprep.subr.mxu0 0.0
  %352 = vmatpush2.msra.mxu0 0.0
  %353 = vmatprep.subr.mxu0 0.0
  %354 = vmatpush2.msra.mxu0 0.0
  %355 = vmatprep.subr.mxu0 0.0
  %356 = vmatpush2.msra.mxu0 0.0
  %357 = vmatprep.subr.mxu0 0.0
  %358 = vmatpush2.msra.mxu0 0.0
  %359 = vmatprep.subr.mxu0 0.0
  %360 = vmatpush2.msra.mxu0 0.0
  %361 = vmatprep.subr.mxu0 0.0
  %362 = vmatpush2.msra.mxu0 0.0
  %363 = vmatprep.subr.mxu0 0.0
  %364 = vmatpush2.msra.mxu0 0.0
  %365 = vmatprep.mubr.f32.mxu0 0.0
  %366 = vmatmul.mubr.f32.gmra.mxu0 %v299
  %v367 = vpop.f32.mrf.mxu0
  %v368 = vadd.f32 %v56, %v367
  %v369 = vpop.f32.mrf.mxu0
  %v370 = vadd.f32 %v60, %v369
  %371 = vdwg.mxu0
  %v372 = vmax.f32 %v368, 0.0
  %v373 = vmax.f32 %v370, 0.0
  %s374 = scalar_lea.vmem %s0, 32
  %v375 = vld [vmem:[%s374] sm:$0xff]
  %v377 = vsel %vm63, %v375, 0
  %379 = vmatprep.subr.mxu0 0.0
  %380 = vmatpush1.msra.mxu0 0.0
  %381 = vmatprep.subr.mxu0 0.0
  %382 = vmatpush1.msra.mxu0 0.0
  %383 = vmatprep.subr.mxu0 0.0
  %384 = vmatpush1.msra.mxu0 0.0
  %385 = vmatprep.subr.mxu0 0.0
  %386 = vmatpush1.msra.mxu0 0.0
  %387 = vmatprep.subr.mxu0 0.0
  %388 = vmatpush1.msra.mxu0 0.0
  %389 = vmatprep.subr.mxu0 0.0
  %390 = vmatpush1.msra.mxu0 0.0
  %391 = vmatprep.subr.mxu0 0.0
  %392 = vmatpush1.msra.mxu0 0.0
  %393 = vmatprep.subr.mxu0 %v49
  %394 = vmatpush1.msra.mxu0 %v48
  %395 = vmatprep.subr.mxu0 %v47
  %396 = vmatpush1.msra.mxu0 %v46
  %397 = vmatprep.subr.mxu0 %v45
  %398 = vmatpush1.msra.mxu0 %v44
  %399 = vmatprep.subr.mxu0 %v43
  %400 = vmatpush1.msra.mxu0 %v42
  %401 = vmatprep.subr.mxu0 %v41
  %402 = vmatpush1.msra.mxu0 %v40
  %403 = vmatprep.subr.mxu0 %v39
  %404 = vmatpush1.msra.mxu0 %v38
  %405 = vmatprep.subr.mxu0 %v37
  %406 = vmatpush1.msra.mxu0 %v36
  %407 = vmatprep.subr.mxu0 %v35
  %408 = vmatpush1.msra.mxu0 %v34
  %409 = vmatprep.subr.mxu0 %v33
  %410 = vmatpush1.msra.mxu0 %v32
  %411 = vmatprep.subr.mxu0 0.0
  %412 = vmatpush2.msra.mxu0 0.0
  %413 = vmatprep.subr.mxu0 0.0
  %414 = vmatpush2.msra.mxu0 0.0
  %415 = vmatprep.subr.mxu0 0.0
  %416 = vmatpush2.msra.mxu0 0.0
  %417 = vmatprep.subr.mxu0 0.0
  %418 = vmatpush2.msra.mxu0 0.0
  %419 = vmatprep.subr.mxu0 0.0
  %420 = vmatpush2.msra.mxu0 0.0
  %421 = vmatprep.subr.mxu0 0.0
  %422 = vmatpush2.msra.mxu0 0.0
  %423 = vmatprep.subr.mxu0 0.0
  %424 = vmatpush2.msra.mxu0 0.0
  %425 = vmatprep.subr.mxu0 0.0
  %426 = vmatpush2.msra.mxu0 0.0
  %427 = vmatprep.subr.mxu0 0.0
  %428 = vmatpush2.msra.mxu0 0.0
  %429 = vmatprep.subr.mxu0 0.0
  %430 = vmatpush2.msra.mxu0 0.0
  %431 = vmatprep.subr.mxu0 0.0
  %432 = vmatpush2.msra.mxu0 0.0
  %433 = vmatprep.subr.mxu0 0.0
  %434 = vmatpush2.msra.mxu0 0.0
  %435 = vmatprep.subr.mxu0 0.0
  %436 = vmatpush2.msra.mxu0 0.0
  %437 = vmatprep.subr.mxu0 0.0
  %438 = vmatpush2.msra.mxu0 0.0
  %439 = vmatprep.subr.mxu0 0.0
  %440 = vmatpush2.msra.mxu0 0.0
  %441 = vmatprep.subr.mxu0 0.0
  %442 = vmatpush2.msra.mxu0 0.0
  %443 = vmatprep.mubr.f32.mxu0 0.0
  %444 = vmatmul.mubr.f32.gmra.mxu0 %v377
  %v445 = vpop.f32.mrf.mxu0
  %v446 = vadd.f32 %v56, %v445
  %v447 = vpop.f32.mrf.mxu0
  %v448 = vadd.f32 %v60, %v447
  %449 = vdwg.mxu0
  %v450 = vmax.f32 %v446, 0.0
  %v451 = vmax.f32 %v448, 0.0
  %s452 = scalar_lea.vmem %s0, 40
  %v453 = vld [vmem:[%s452] sm:$0xff]
  %v455 = vsel %vm63, %v453, 0
  %457 = vmatprep.subr.mxu0 0.0
  %458 = vmatpush1.msra.mxu0 0.0
  %459 = vmatprep.subr.mxu0 0.0
  %460 = vmatpush1.msra.mxu0 0.0
  %461 = vmatprep.subr.mxu0 0.0
  %462 = vmatpush1.msra.mxu0 0.0
  %463 = vmatprep.subr.mxu0 0.0
  %464 = vmatpush1.msra.mxu0 0.0
  %465 = vmatprep.subr.mxu0 0.0
  %466 = vmatpush1.msra.mxu0 0.0
  %467 = vmatprep.subr.mxu0 0.0
  %468 = vmatpush1.msra.mxu0 0.0
  %469 = vmatprep.subr.mxu0 0.0
  %470 = vmatpush1.msra.mxu0 0.0
  %471 = vmatprep.subr.mxu0 %v49
  %472 = vmatpush1.msra.mxu0 %v48
  %473 = vmatprep.subr.mxu0 %v47
  %474 = vmatpush1.msra.mxu0 %v46
  %475 = vmatprep.subr.mxu0 %v45
  %476 = vmatpush1.msra.mxu0 %v44
  %477 = vmatprep.subr.mxu0 %v43
  %478 = vmatpush1.msra.mxu0 %v42
  %479 = vmatprep.subr.mxu0 %v41
  %480 = vmatpush1.msra.mxu0 %v40
  %481 = vmatprep.subr.mxu0 %v39
  %482 = vmatpush1.msra.mxu0 %v38
  %483 = vmatprep.subr.mxu0 %v37
  %484 = vmatpush1.msra.mxu0 %v36
  %485 = vmatprep.subr.mxu0 %v35
  %486 = vmatpush1.msra.mxu0 %v34
  %487 = vmatprep.subr.mxu0 %v33
  %488 = vmatpush1.msra.mxu0 %v32
  %489 = vmatprep.subr.mxu0 0.0
  %490 = vmatpush2.msra.mxu0 0.0
  %491 = vmatprep.subr.mxu0 0.0
  %492 = vmatpush2.msra.mxu0 0.0
  %493 = vmatprep.subr.mxu0 0.0
  %494 = vmatpush2.msra.mxu0 0.0
  %495 = vmatprep.subr.mxu0 0.0
  %496 = vmatpush2.msra.mxu0 0.0
  %497 = vmatprep.subr.mxu0 0.0
  %498 = vmatpush2.msra.mxu0 0.0
  %499 = vmatprep.subr.mxu0 0.0
  %500 = vmatpush2.msra.mxu0 0.0
  %501 = vmatprep.subr.mxu0 0.0
  %502 = vmatpush2.msra.mxu0 0.0
  %503 = vmatprep.subr.mxu0 0.0
  %504 = vmatpush2.msra.mxu0 0.0
  %505 = vmatprep.subr.mxu0 0.0
  %506 = vmatpush2.msra.mxu0 0.0
  %507 = vmatprep.subr.mxu0 0.0
  %508 = vmatpush2.msra.mxu0 0.0
  %509 = vmatprep.subr.mxu0 0.0
  %510 = vmatpush2.msra.mxu0 0.0
  %511 = vmatprep.subr.mxu0 0.0
  %512 = vmatpush2.msra.mxu0 0.0
  %513 = vmatprep.subr.mxu0 0.0
  %514 = vmatpush2.msra.mxu0 0.0
  %515 = vmatprep.subr.mxu0 0.0
  %516 = vmatpush2.msra.mxu0 0.0
  %517 = vmatprep.subr.mxu0 0.0
  %518 = vmatpush2.msra.mxu0 0.0
  %519 = vmatprep.subr.mxu0 0.0
  %520 = vmatpush2.msra.mxu0 0.0
  %521 = vmatprep.mubr.f32.mxu0 0.0
  %522 = vmatmul.mubr.f32.gmra.mxu0 %v455
  %v523 = vpop.f32.mrf.mxu0
  %v524 = vadd.f32 %v56, %v523
  %v525 = vpop.f32.mrf.mxu0
  %v526 = vadd.f32 %v60, %v525
  %527 = vdwg.mxu0
  %v528 = vmax.f32 %v524, 0.0
  %v529 = vmax.f32 %v526, 0.0
  %s530 = scalar_lea.vmem %s0, 48
  %v531 = vld [vmem:[%s530] sm:$0xff]
  %v533 = vsel %vm63, %v531, 0
  %535 = vmatprep.subr.mxu0 0.0
  %536 = vmatpush1.msra.mxu0 0.0
  %537 = vmatprep.subr.mxu0 0.0
  %538 = vmatpush1.msra.mxu0 0.0
  %539 = vmatprep.subr.mxu0 0.0
  %540 = vmatpush1.msra.mxu0 0.0
  %541 = vmatprep.subr.mxu0 0.0
  %542 = vmatpush1.msra.mxu0 0.0
  %543 = vmatprep.subr.mxu0 0.0
  %544 = vmatpush1.msra.mxu0 0.0
  %545 = vmatprep.subr.mxu0 0.0
  %546 = vmatpush1.msra.mxu0 0.0
  %547 = vmatprep.subr.mxu0 0.0
  %548 = vmatpush1.msra.mxu0 0.0
  %549 = vmatprep.subr.mxu0 %v49
  %550 = vmatpush1.msra.mxu0 %v48
  %551 = vmatprep.subr.mxu0 %v47
  %552 = vmatpush1.msra.mxu0 %v46
  %553 = vmatprep.subr.mxu0 %v45
  %554 = vmatpush1.msra.mxu0 %v44
  %555 = vmatprep.subr.mxu0 %v43
  %556 = vmatpush1.msra.mxu0 %v42
  %557 = vmatprep.subr.mxu0 %v41
  %558 = vmatpush1.msra.mxu0 %v40
  %559 = vmatprep.subr.mxu0 %v39
  %560 = vmatpush1.msra.mxu0 %v38
  %561 = vmatprep.subr.mxu0 %v37
  %562 = vmatpush1.msra.mxu0 %v36
  %563 = vmatprep.subr.mxu0 %v35
  %564 = vmatpush1.msra.mxu0 %v34
  %565 = vmatprep.subr.mxu0 %v33
  %566 = vmatpush1.msra.mxu0 %v32
  %567 = vmatprep.subr.mxu0 0.0
  %568 = vmatpush2.msra.mxu0 0.0
  %569 = vmatprep.subr.mxu0 0.0
  %570 = vmatpush2.msra.mxu0 0.0
  %571 = vmatprep.subr.mxu0 0.0
  %572 = vmatpush2.msra.mxu0 0.0
  %573 = vmatprep.subr.mxu0 0.0
  %574 = vmatpush2.msra.mxu0 0.0
  %575 = vmatprep.subr.mxu0 0.0
  %576 = vmatpush2.msra.mxu0 0.0
  %577 = vmatprep.subr.mxu0 0.0
  %578 = vmatpush2.msra.mxu0 0.0
  %579 = vmatprep.subr.mxu0 0.0
  %580 = vmatpush2.msra.mxu0 0.0
  %581 = vmatprep.subr.mxu0 0.0
  %582 = vmatpush2.msra.mxu0 0.0
  %583 = vmatprep.subr.mxu0 0.0
  %584 = vmatpush2.msra.mxu0 0.0
  %585 = vmatprep.subr.mxu0 0.0
  %586 = vmatpush2.msra.mxu0 0.0
  %587 = vmatprep.subr.mxu0 0.0
  %588 = vmatpush2.msra.mxu0 0.0
  %589 = vmatprep.subr.mxu0 0.0
  %590 = vmatpush2.msra.mxu0 0.0
  %591 = vmatprep.subr.mxu0 0.0
  %592 = vmatpush2.msra.mxu0 0.0
  %593 = vmatprep.subr.mxu0 0.0
  %594 = vmatpush2.msra.mxu0 0.0
  %595 = vmatprep.subr.mxu0 0.0
  %596 = vmatpush2.msra.mxu0 0.0
  %597 = vmatprep.subr.mxu0 0.0
  %598 = vmatpush2.msra.mxu0 0.0
  %599 = vmatprep.mubr.f32.mxu0 0.0
  %600 = vmatmul.mubr.f32.gmra.mxu0 %v533
  %v601 = vpop.f32.mrf.mxu0
  %v602 = vadd.f32 %v56, %v601
  %v603 = vpop.f32.mrf.mxu0
  %v604 = vadd.f32 %v60, %v603
  %605 = vdwg.mxu0
  %v606 = vmax.f32 %v602, 0.0
  %v607 = vmax.f32 %v604, 0.0
  %v608 = vld [vmem:[%s3] sm:$0xff]
  %v609 = vld [vmem:[%s3 + $0x8] sm:$0xff]
  %v610 = vld [vmem:[%s3 + $0x10] sm:$0xff]
  %v611 = vld [vmem:[%s3 + $0x18] sm:$0xff]
  %v612 = vld [vmem:[%s3 + $0x20] sm:$0xff]
  %v613 = vld [vmem:[%s3 + $0x28] sm:$0xff]
  %v614 = vld [vmem:[%s3 + $0x30] sm:$0xff]
  %v615 = vld [vmem:[%s3 + $0x38] sm:$0xff]
  %v616 = vld [vmem:[%s3 + $0x40] sm:$0xff]
  %v617 = vld [vmem:[%s3 + $0x48] sm:$0xff]
  %v618 = vld [vmem:[%s3 + $0x50] sm:$0xff]
  %v619 = vld [vmem:[%s3 + $0x58] sm:$0xff]
  %v620 = vld [vmem:[%s3 + $0x60] sm:$0xff]
  %v621 = vld [vmem:[%s3 + $0x68] sm:$0xff]
  %v622 = vld [vmem:[%s3 + $0x70] sm:$0xff]
  %v623 = vld [vmem:[%s3 + $0x78] sm:$0xff]
  %v624 = vld [vmem:[%s3 + $0x80] sm:$0xff]
  %v625 = vld [vmem:[%s3 + $0x88] sm:$0xff]
  %v626 = vld [vmem:[%s3 + $0x90] sm:$0xff]
  %v627 = vld [vmem:[%s3 + $0x98] sm:$0xff]
  %v628 = vld [vmem:[%s3 + $0xa0] sm:$0xff]
  %v629 = vld [vmem:[%s3 + $0xa8] sm:$0xff]
  %v630 = vld [vmem:[%s3 + $0xb0] sm:$0xff]
  %v631 = vld [vmem:[%s3 + $0xb8] sm:$0xff]
  %v632 = vld [vmem:[%s3 + $0xc0] sm:$0xff]
  %v633 = vld [vmem:[%s3 + $0xc8] sm:$0xff]
  %v634 = vld [vmem:[%s3 + $0xd0] sm:$0xff]
  %v635 = vld [vmem:[%s3 + $0xd8] sm:$0xff]
  %v636 = vld [vmem:[%s3 + $0xe0] sm:$0xff]
  %v637 = vld [vmem:[%s3 + $0xe8] sm:$0xff]
  %v638 = vld [vmem:[%s3 + $0xf0] sm:$0xff]
  %v639 = vld [vmem:[%s3 + $0xf8] sm:$0xff]
  %v640 = vld [vmem:[%s3 + $0x100] sm:$0xff]
  %v641 = vld [vmem:[%s3 + $0x108] sm:$0xff]
  %v642 = vld [vmem:[%s3 + $0x110] sm:$0xff]
  %v643 = vld [vmem:[%s3 + $0x118] sm:$0xff]
  %v644 = vld [vmem:[%s3 + $0x120] sm:$0xff]
  %v645 = vld [vmem:[%s3 + $0x128] sm:$0xff]
  %v646 = vld [vmem:[%s3 + $0x130] sm:$0xff]
  %v647 = vld [vmem:[%s3 + $0x138] sm:$0xff]
  %v648 = vld [vmem:[%s3 + $0x140] sm:$0xff]
  %v649 = vld [vmem:[%s3 + $0x148] sm:$0xff]
  %v650 = vld [vmem:[%s3 + $0x150] sm:$0xff]
  %v651 = vld [vmem:[%s3 + $0x158] sm:$0xff]
  %v652 = vld [vmem:[%s3 + $0x160] sm:$0xff]
  %v653 = vld [vmem:[%s3 + $0x168] sm:$0xff]
  %v654 = vld [vmem:[%s3 + $0x170] sm:$0xff]
  %v655 = vld [vmem:[%s3 + $0x178] sm:$0xff]
  %v656 = vld [vmem:[%s3 + $0x180] sm:$0xff]
  %v657 = vld [vmem:[%s3 + $0x188] sm:$0xff]
  %v658 = vld [vmem:[%s3 + $0x190] sm:$0xff]
  %v659 = vld [vmem:[%s3 + $0x198] sm:$0xff]
  %v660 = vld [vmem:[%s3 + $0x1a0] sm:$0xff]
  %v661 = vld [vmem:[%s3 + $0x1a8] sm:$0xff]
  %v662 = vld [vmem:[%s3 + $0x1b0] sm:$0xff]
  %v663 = vld [vmem:[%s3 + $0x1b8] sm:$0xff]
  %v664 = vld [vmem:[%s3 + $0x1c0] sm:$0xff]
  %v665 = vld [vmem:[%s3 + $0x1c8] sm:$0xff]
  %v666 = vld [vmem:[%s3 + $0x1d0] sm:$0xff]
  %v667 = vld [vmem:[%s3 + $0x1d8] sm:$0xff]
  %v668 = vld [vmem:[%s3 + $0x1e0] sm:$0xff]
  %v669 = vld [vmem:[%s3 + $0x1e8] sm:$0xff]
  %v670 = vld [vmem:[%s3 + $0x1f0] sm:$0xff]
  %v671 = vld [vmem:[%s3 + $0x1f8] sm:$0xff]
  %v672 = vld [vmem:[%s3 + $0x200] sm:$0xff]
  %v673 = vld [vmem:[%s3 + $0x208] sm:$0xff]
  %v674 = vld [vmem:[%s3 + $0x210] sm:$0xff]
  %v675 = vld [vmem:[%s3 + $0x218] sm:$0xff]
  %v676 = vld [vmem:[%s3 + $0x220] sm:$0xff]
  %v677 = vld [vmem:[%s3 + $0x228] sm:$0xff]
  %v678 = vld [vmem:[%s3 + $0x230] sm:$0xff]
  %v679 = vld [vmem:[%s3 + $0x238] sm:$0xff]
  %v680 = vld [vmem:[%s3 + $0x240] sm:$0xff]
  %v681 = vld [vmem:[%s3 + $0x248] sm:$0xff]
  %v682 = vld [vmem:[%s3 + $0x250] sm:$0xff]
  %v683 = vld [vmem:[%s3 + $0x258] sm:$0xff]
  %v684 = vld [vmem:[%s3 + $0x260] sm:$0xff]
  %v685 = vld [vmem:[%s3 + $0x268] sm:$0xff]
  %v686 = vld [vmem:[%s3 + $0x270] sm:$0xff]
  %v687 = vld [vmem:[%s3 + $0x278] sm:$0xff]
  %v688 = vld [vmem:[%s3 + $0x280] sm:$0xff]
  %v689 = vld [vmem:[%s3 + $0x288] sm:$0xff]
  %v690 = vld [vmem:[%s3 + $0x290] sm:$0xff]
  %v691 = vld [vmem:[%s3 + $0x298] sm:$0xff]
  %v692 = vld [vmem:[%s3 + $0x2a0] sm:$0xff]
  %v693 = vld [vmem:[%s3 + $0x2a8] sm:$0xff]
  %v694 = vld [vmem:[%s3 + $0x2b0] sm:$0xff]
  %v695 = vld [vmem:[%s3 + $0x2b8] sm:$0xff]
  %v696 = vld [vmem:[%s3 + $0x2c0] sm:$0xff]
  %v697 = vld [vmem:[%s3 + $0x2c8] sm:$0xff]
  %v698 = vld [vmem:[%s3 + $0x2d0] sm:$0xff]
  %v699 = vld [vmem:[%s3 + $0x2d8] sm:$0xff]
  %v700 = vld [vmem:[%s3 + $0x2e0] sm:$0xff]
  %v701 = vld [vmem:[%s3 + $0x2e8] sm:$0xff]
  %v702 = vld [vmem:[%s3 + $0x2f0] sm:$0xff]
  %v703 = vld [vmem:[%s3 + $0x2f8] sm:$0xff]
  %v704 = vld [vmem:[%s3 + $0x300] sm:$0xff]
  %v705 = vld [vmem:[%s3 + $0x308] sm:$0xff]
  %v706 = vld [vmem:[%s3 + $0x310] sm:$0xff]
  %v707 = vld [vmem:[%s3 + $0x318] sm:$0xff]
  %v708 = vld [vmem:[%s3 + $0x320] sm:$0xff]
  %v709 = vld [vmem:[%s3 + $0x328] sm:$0xff]
  %v710 = vld [vmem:[%s3 + $0x330] sm:$0xff]
  %v711 = vld [vmem:[%s3 + $0x338] sm:$0xff]
  %v712 = vld [vmem:[%s3 + $0x340] sm:$0xff]
  %v713 = vld [vmem:[%s3 + $0x348] sm:$0xff]
  %v714 = vld [vmem:[%s3 + $0x350] sm:$0xff]
  %v715 = vld [vmem:[%s3 + $0x358] sm:$0xff]
  %v716 = vld [vmem:[%s3 + $0x360] sm:$0xff]
  %v717 = vld [vmem:[%s3 + $0x368] sm:$0xff]
  %v718 = vld [vmem:[%s3 + $0x370] sm:$0xff]
  %v719 = vld [vmem:[%s3 + $0x378] sm:$0xff]
  %v720 = vld [vmem:[%s3 + $0x380] sm:$0xff]
  %v721 = vld [vmem:[%s3 + $0x388] sm:$0xff]
  %v722 = vld [vmem:[%s3 + $0x390] sm:$0xff]
  %v723 = vld [vmem:[%s3 + $0x398] sm:$0xff]
  %v724 = vld [vmem:[%s3 + $0x3a0] sm:$0xff]
  %v725 = vld [vmem:[%s3 + $0x3a8] sm:$0xff]
  %v726 = vld [vmem:[%s3 + $0x3b0] sm:$0xff]
  %v727 = vld [vmem:[%s3 + $0x3b8] sm:$0xff]
  %v728 = vld [vmem:[%s3 + $0x3c0] sm:$0xff]
  %v729 = vld [vmem:[%s3 + $0x3c8] sm:$0xff]
  %v730 = vld [vmem:[%s3 + $0x3d0] sm:$0xff]
  %v731 = vld [vmem:[%s3 + $0x3d8] sm:$0xff]
  %v732 = vld [vmem:[%s3 + $0x3e0] sm:$0xff]
  %v733 = vld [vmem:[%s3 + $0x3e8] sm:$0xff]
  %v734 = vld [vmem:[%s3 + $0x3f0] sm:$0xff]
  %v735 = vld [vmem:[%s3 + $0x3f8] sm:$0xff]
  %v736 = vld [vmem:[%s3 + $0x400] sm:$0xff]
  %v737 = vld [vmem:[%s3 + $0x408] sm:$0xff]
  %v738 = vld [vmem:[%s3 + $0x410] sm:$0xff]
  %v739 = vld [vmem:[%s3 + $0x418] sm:$0xff]
  %v740 = vld [vmem:[%s3 + $0x420] sm:$0xff]
  %v741 = vld [vmem:[%s3 + $0x428] sm:$0xff]
  %v742 = vld [vmem:[%s3 + $0x430] sm:$0xff]
  %v743 = vld [vmem:[%s3 + $0x438] sm:$0xff]
  %v744 = vld [vmem:[%s3 + $0x440] sm:$0xff]
  %v745 = vld [vmem:[%s3 + $0x448] sm:$0xff]
  %v746 = vld [vmem:[%s3 + $0x450] sm:$0xff]
  %v747 = vld [vmem:[%s3 + $0x458] sm:$0xff]
  %v748 = vld [vmem:[%s3 + $0x460] sm:$0xff]
  %v749 = vld [vmem:[%s3 + $0x468] sm:$0xff]
  %v750 = vld [vmem:[%s3 + $0x470] sm:$0xff]
  %v751 = vld [vmem:[%s3 + $0x478] sm:$0xff]
  %v752 = vld [vmem:[%s3 + $0x480] sm:$0xff]
  %v753 = vld [vmem:[%s3 + $0x488] sm:$0xff]
  %v754 = vld [vmem:[%s3 + $0x490] sm:$0xff]
  %v755 = vld [vmem:[%s3 + $0x498] sm:$0xff]
  %v756 = vld [vmem:[%s3 + $0x4a0] sm:$0xff]
  %v757 = vld [vmem:[%s3 + $0x4a8] sm:$0xff]
  %v758 = vld [vmem:[%s3 + $0x4b0] sm:$0xff]
  %v759 = vld [vmem:[%s3 + $0x4b8] sm:$0xff]
  %v760 = vld [vmem:[%s3 + $0x4c0] sm:$0xff]
  %v761 = vld [vmem:[%s3 + $0x4c8] sm:$0xff]
  %v762 = vld [vmem:[%s3 + $0x4d0] sm:$0xff]
  %v763 = vld [vmem:[%s3 + $0x4d8] sm:$0xff]
  %v764 = vld [vmem:[%s3 + $0x4e0] sm:$0xff]
  %v765 = vld [vmem:[%s3 + $0x4e8] sm:$0xff]
  %v766 = vld [vmem:[%s3 + $0x4f0] sm:$0xff]
  %v767 = vld [vmem:[%s3 + $0x4f8] sm:$0xff]
  %v768 = vld [vmem:[%s3 + $0x500] sm:$0xff]
  %v769 = vld [vmem:[%s3 + $0x508] sm:$0xff]
  %v770 = vld [vmem:[%s3 + $0x510] sm:$0xff]
  %v771 = vld [vmem:[%s3 + $0x518] sm:$0xff]
  %v772 = vld [vmem:[%s3 + $0x520] sm:$0xff]
  %v773 = vld [vmem:[%s3 + $0x528] sm:$0xff]
  %v774 = vld [vmem:[%s3 + $0x530] sm:$0xff]
  %v775 = vld [vmem:[%s3 + $0x538] sm:$0xff]
  %v776 = vld [vmem:[%s3 + $0x540] sm:$0xff]
  %v777 = vld [vmem:[%s3 + $0x548] sm:$0xff]
  %v778 = vld [vmem:[%s3 + $0x550] sm:$0xff]
  %v779 = vld [vmem:[%s3 + $0x558] sm:$0xff]
  %v780 = vld [vmem:[%s3 + $0x560] sm:$0xff]
  %v781 = vld [vmem:[%s3 + $0x568] sm:$0xff]
  %v782 = vld [vmem:[%s3 + $0x570] sm:$0xff]
  %v783 = vld [vmem:[%s3 + $0x578] sm:$0xff]
  %v784 = vld [vmem:[%s3 + $0x580] sm:$0xff]
  %v785 = vld [vmem:[%s3 + $0x588] sm:$0xff]
  %v786 = vld [vmem:[%s3 + $0x590] sm:$0xff]
  %v787 = vld [vmem:[%s3 + $0x598] sm:$0xff]
  %v788 = vld [vmem:[%s3 + $0x5a0] sm:$0xff]
  %v789 = vld [vmem:[%s3 + $0x5a8] sm:$0xff]
  %v790 = vld [vmem:[%s3 + $0x5b0] sm:$0xff]
  %v791 = vld [vmem:[%s3 + $0x5b8] sm:$0xff]
  %v792 = vld [vmem:[%s3 + $0x5c0] sm:$0xff]
  %v793 = vld [vmem:[%s3 + $0x5c8] sm:$0xff]
  %v794 = vld [vmem:[%s3 + $0x5d0] sm:$0xff]
  %v795 = vld [vmem:[%s3 + $0x5d8] sm:$0xff]
  %v796 = vld [vmem:[%s3 + $0x5e0] sm:$0xff]
  %v797 = vld [vmem:[%s3 + $0x5e8] sm:$0xff]
  %v798 = vld [vmem:[%s3 + $0x5f0] sm:$0xff]
  %v799 = vld [vmem:[%s3 + $0x5f8] sm:$0xff]
  %v800 = vld [vmem:[%s3 + $0x600] sm:$0xff]
  %v801 = vld [vmem:[%s3 + $0x608] sm:$0xff]
  %v802 = vld [vmem:[%s3 + $0x610] sm:$0xff]
  %v803 = vld [vmem:[%s3 + $0x618] sm:$0xff]
  %v804 = vld [vmem:[%s3 + $0x620] sm:$0xff]
  %v805 = vld [vmem:[%s3 + $0x628] sm:$0xff]
  %v806 = vld [vmem:[%s3 + $0x630] sm:$0xff]
  %v807 = vld [vmem:[%s3 + $0x638] sm:$0xff]
  %v808 = vld [vmem:[%s3 + $0x640] sm:$0xff]
  %v809 = vld [vmem:[%s3 + $0x648] sm:$0xff]
  %v810 = vld [vmem:[%s3 + $0x650] sm:$0xff]
  %v811 = vld [vmem:[%s3 + $0x658] sm:$0xff]
  %v812 = vld [vmem:[%s3 + $0x660] sm:$0xff]
  %v813 = vld [vmem:[%s3 + $0x668] sm:$0xff]
  %v814 = vld [vmem:[%s3 + $0x670] sm:$0xff]
  %v815 = vld [vmem:[%s3 + $0x678] sm:$0xff]
  %v816 = vld [vmem:[%s3 + $0x680] sm:$0xff]
  %v817 = vld [vmem:[%s3 + $0x688] sm:$0xff]
  %v818 = vld [vmem:[%s3 + $0x690] sm:$0xff]
  %v819 = vld [vmem:[%s3 + $0x698] sm:$0xff]
  %v820 = vld [vmem:[%s3 + $0x6a0] sm:$0xff]
  %v821 = vld [vmem:[%s3 + $0x6a8] sm:$0xff]
  %v822 = vld [vmem:[%s3 + $0x6b0] sm:$0xff]
  %v823 = vld [vmem:[%s3 + $0x6b8] sm:$0xff]
  %v824 = vld [vmem:[%s3 + $0x6c0] sm:$0xff]
  %v825 = vld [vmem:[%s3 + $0x6c8] sm:$0xff]
  %v826 = vld [vmem:[%s3 + $0x6d0] sm:$0xff]
  %v827 = vld [vmem:[%s3 + $0x6d8] sm:$0xff]
  %v828 = vld [vmem:[%s3 + $0x6e0] sm:$0xff]
  %v829 = vld [vmem:[%s3 + $0x6e8] sm:$0xff]
  %v830 = vld [vmem:[%s3 + $0x6f0] sm:$0xff]
  %v831 = vld [vmem:[%s3 + $0x6f8] sm:$0xff]
  %v832 = vld [vmem:[%s3 + $0x700] sm:$0xff]
  %v833 = vld [vmem:[%s3 + $0x708] sm:$0xff]
  %v834 = vld [vmem:[%s3 + $0x710] sm:$0xff]
  %v835 = vld [vmem:[%s3 + $0x718] sm:$0xff]
  %v836 = vld [vmem:[%s3 + $0x720] sm:$0xff]
  %v837 = vld [vmem:[%s3 + $0x728] sm:$0xff]
  %v838 = vld [vmem:[%s3 + $0x730] sm:$0xff]
  %v839 = vld [vmem:[%s3 + $0x738] sm:$0xff]
  %v840 = vld [vmem:[%s3 + $0x740] sm:$0xff]
  %v841 = vld [vmem:[%s3 + $0x748] sm:$0xff]
  %v842 = vld [vmem:[%s3 + $0x750] sm:$0xff]
  %v843 = vld [vmem:[%s3 + $0x758] sm:$0xff]
  %v844 = vld [vmem:[%s3 + $0x760] sm:$0xff]
  %v845 = vld [vmem:[%s3 + $0x768] sm:$0xff]
  %v846 = vld [vmem:[%s3 + $0x770] sm:$0xff]
  %v847 = vld [vmem:[%s3 + $0x778] sm:$0xff]
  %v848 = vld [vmem:[%s3 + $0x780] sm:$0xff]
  %v849 = vld [vmem:[%s3 + $0x788] sm:$0xff]
  %v850 = vld [vmem:[%s3 + $0x790] sm:$0xff]
  %v851 = vld [vmem:[%s3 + $0x798] sm:$0xff]
  %v852 = vld [vmem:[%s3 + $0x7a0] sm:$0xff]
  %v853 = vld [vmem:[%s3 + $0x7a8] sm:$0xff]
  %v854 = vld [vmem:[%s3 + $0x7b0] sm:$0xff]
  %v855 = vld [vmem:[%s3 + $0x7b8] sm:$0xff]
  %v856 = vld [vmem:[%s3 + $0x7c0] sm:$0xff]
  %v857 = vld [vmem:[%s3 + $0x7c8] sm:$0xff]
  %v858 = vld [vmem:[%s3 + $0x7d0] sm:$0xff]
  %v859 = vld [vmem:[%s3 + $0x7d8] sm:$0xff]
  %v860 = vld [vmem:[%s4] sm:$0x7]
  %vm861 = vcmask 785408
  %v863 = vsel %vm861, %v217, 0
  %865 = vmatprep.subr.mxu0 %v738
  %866 = vmatpush1.msra.mxu0 %v737
  %867 = vmatprep.subr.mxu0 %v735
  %868 = vmatpush1.msra.mxu0 %v734
  %869 = vmatprep.subr.mxu0 %v732
  %870 = vmatpush1.msra.mxu0 %v731
  %871 = vmatprep.subr.mxu0 %v729
  %872 = vmatpush1.msra.mxu0 %v728
  %873 = vmatprep.subr.mxu0 %v726
  %874 = vmatpush1.msra.mxu0 %v725
  %875 = vmatprep.subr.mxu0 %v723
  %876 = vmatpush1.msra.mxu0 %v722
  %877 = vmatprep.subr.mxu0 %v720
  %878 = vmatpush1.msra.mxu0 %v719
  %879 = vmatprep.subr.mxu0 %v717
  %880 = vmatpush1.msra.mxu0 %v716
  %881 = vmatprep.subr.mxu0 %v714
  %882 = vmatpush1.msra.mxu0 %v713
  %883 = vmatprep.subr.mxu0 %v711
  %884 = vmatpush1.msra.mxu0 %v710
  %885 = vmatprep.subr.mxu0 %v708
  %886 = vmatpush1.msra.mxu0 %v707
  %887 = vmatprep.subr.mxu0 %v705
  %888 = vmatpush1.msra.mxu0 %v704
  %889 = vmatprep.subr.mxu0 %v702
  %890 = vmatpush1.msra.mxu0 %v701
  %891 = vmatprep.subr.mxu0 %v699
  %892 = vmatpush1.msra.mxu0 %v698
  %893 = vmatprep.subr.mxu0 %v696
  %894 = vmatpush1.msra.mxu0 %v695
  %895 = vmatprep.subr.mxu0 %v693
  %896 = vmatpush1.msra.mxu0 %v692
  %897 = vmatprep.subr.mxu0 0.0
  %898 = vmatpush2.msra.mxu0 0.0
  %899 = vmatprep.subr.mxu0 0.0
  %900 = vmatpush2.msra.mxu0 0.0
  %901 = vmatprep.subr.mxu0 0.0
  %902 = vmatpush2.msra.mxu0 0.0
  %903 = vmatprep.subr.mxu0 0.0
  %904 = vmatpush2.msra.mxu0 0.0
  %905 = vmatprep.subr.mxu0 %v774
  %906 = vmatpush2.msra.mxu0 %v773
  %907 = vmatprep.subr.mxu0 %v771
  %908 = vmatpush2.msra.mxu0 %v770
  %909 = vmatprep.subr.mxu0 %v768
  %910 = vmatpush2.msra.mxu0 %v767
  %911 = vmatprep.subr.mxu0 %v765
  %912 = vmatpush2.msra.mxu0 %v764
  %913 = vmatprep.subr.mxu0 %v762
  %914 = vmatpush2.msra.mxu0 %v761
  %915 = vmatprep.subr.mxu0 %v759
  %916 = vmatpush2.msra.mxu0 %v758
  %917 = vmatprep.subr.mxu0 %v756
  %918 = vmatpush2.msra.mxu0 %v755
  %919 = vmatprep.subr.mxu0 %v753
  %920 = vmatpush2.msra.mxu0 %v752
  %921 = vmatprep.subr.mxu0 %v750
  %922 = vmatpush2.msra.mxu0 %v749
  %923 = vmatprep.subr.mxu0 %v747
  %924 = vmatpush2.msra.mxu0 %v746
  %925 = vmatprep.subr.mxu0 %v744
  %926 = vmatpush2.msra.mxu0 %v743
  %927 = vmatprep.subr.mxu0 %v741
  %928 = vmatpush2.msra.mxu0 %v740
  %929 = vmatprep.mubr.f32.mxu0 %v863
  %930 = vmatmul.mubr.f32.gmra.mxu0 %v216
  %v931 = vpop.f32.mrf.mxu0
  %v932 = vadd.f32 0.0, %v931
  %v933 = vpop.f32.mrf.mxu0
  %v934 = vadd.f32 0.0, %v933
  %935 = vdwg.mxu0
  %936 = vmatprep.subr.mxu0 0.0
  %937 = vmatpush1.msra.mxu0 %v739
  %938 = vmatprep.subr.mxu0 0.0
  %939 = vmatpush1.msra.mxu0 %v736
  %940 = vmatprep.subr.mxu0 0.0
  %941 = vmatpush1.msra.mxu0 %v733
  %942 = vmatprep.subr.mxu0 0.0
  %943 = vmatpush1.msra.mxu0 %v730
  %944 = vmatprep.subr.mxu0 0.0
  %945 = vmatpush1.msra.mxu0 %v727
  %946 = vmatprep.subr.mxu0 0.0
  %947 = vmatpush1.msra.mxu0 %v724
  %948 = vmatprep.subr.mxu0 0.0
  %949 = vmatpush1.msra.mxu0 %v721
  %950 = vmatprep.subr.mxu0 0.0
  %951 = vmatpush1.msra.mxu0 %v718
  %952 = vmatprep.subr.mxu0 0.0
  %953 = vmatpush1.msra.mxu0 %v715
  %954 = vmatprep.subr.mxu0 0.0
  %955 = vmatpush1.msra.mxu0 %v712
  %956 = vmatprep.subr.mxu0 0.0
  %957 = vmatpush1.msra.mxu0 %v709
  %958 = vmatprep.subr.mxu0 0.0
  %959 = vmatpush1.msra.mxu0 %v706
  %960 = vmatprep.subr.mxu0 0.0
  %961 = vmatpush1.msra.mxu0 %v703
  %962 = vmatprep.subr.mxu0 0.0
  %963 = vmatpush1.msra.mxu0 %v700
  %964 = vmatprep.subr.mxu0 0.0
  %965 = vmatpush1.msra.mxu0 %v697
  %966 = vmatprep.subr.mxu0 0.0
  %967 = vmatpush1.msra.mxu0 %v694
  %968 = vmatprep.subr.mxu0 0.0
  %969 = vmatpush2.msra.mxu0 0.0
  %970 = vmatprep.subr.mxu0 0.0
  %971 = vmatpush2.msra.mxu0 0.0
  %972 = vmatprep.subr.mxu0 0.0
  %973 = vmatpush2.msra.mxu0 0.0
  %974 = vmatprep.subr.mxu0 0.0
  %975 = vmatpush2.msra.mxu0 0.0
  %976 = vmatprep.subr.mxu0 0.0
  %977 = vmatpush2.msra.mxu0 %v775
  %978 = vmatprep.subr.mxu0 0.0
  %979 = vmatpush2.msra.mxu0 %v772
  %980 = vmatprep.subr.mxu0 0.0
  %981 = vmatpush2.msra.mxu0 %v769
  %982 = vmatprep.subr.mxu0 0.0
  %983 = vmatpush2.msra.mxu0 %v766
  %984 = vmatprep.subr.mxu0 0.0
  %985 = vmatpush2.msra.mxu0 %v763
  %986 = vmatprep.subr.mxu0 0.0
  %987 = vmatpush2.msra.mxu0 %v760
  %988 = vmatprep.subr.mxu0 0.0
  %989 = vmatpush2.msra.mxu0 %v757
  %990 = vmatprep.subr.mxu0 0.0
  %991 = vmatpush2.msra.mxu0 %v754
  %992 = vmatprep.subr.mxu0 0.0
  %993 = vmatpush2.msra.mxu0 %v751
  %994 = vmatprep.subr.mxu0 0.0
  %995 = vmatpush2.msra.mxu0 %v748
  %996 = vmatprep.subr.mxu0 0.0
  %997 = vmatpush2.msra.mxu0 %v745
  %998 = vmatprep.subr.mxu0 0.0
  %999 = vmatpush2.msra.mxu0 %v742
  %1000 = vmatprep.mubr.f32.mxu0 %v863
  %1001 = vmatmul.mubr.f32.gmra.mxu0 %v216
  %v1002 = vpop.f32.mrf.mxu0
  %v1003 = vadd.f32 0.0, %v1002
  %v1004 = vpop.f32.mrf.mxu0
  %1005 = vdwg.mxu0
  %v1007 = vsel %vm861, %v139, 0
  %1009 = vmatprep.subr.mxu0 %v654
  %1010 = vmatpush1.msra.mxu0 %v653
  %1011 = vmatprep.subr.mxu0 %v651
  %1012 = vmatpush1.msra.mxu0 %v650
  %1013 = vmatprep.subr.mxu0 %v648
  %1014 = vmatpush1.msra.mxu0 %v647
  %1015 = vmatprep.subr.mxu0 %v645
  %1016 = vmatpush1.msra.mxu0 %v644
  %1017 = vmatprep.subr.mxu0 %v642
  %1018 = vmatpush1.msra.mxu0 %v641
  %1019 = vmatprep.subr.mxu0 %v639
  %1020 = vmatpush1.msra.mxu0 %v638
  %1021 = vmatprep.subr.mxu0 %v636
  %1022 = vmatpush1.msra.mxu0 %v635
  %1023 = vmatprep.subr.mxu0 %v633
  %1024 = vmatpush1.msra.mxu0 %v632
  %1025 = vmatprep.subr.mxu0 %v630
  %1026 = vmatpush1.msra.mxu0 %v629
  %1027 = vmatprep.subr.mxu0 %v627
  %1028 = vmatpush1.msra.mxu0 %v626
  %1029 = vmatprep.subr.mxu0 %v624
  %1030 = vmatpush1.msra.mxu0 %v623
  %1031 = vmatprep.subr.mxu0 %v621
  %1032 = vmatpush1.msra.mxu0 %v620
  %1033 = vmatprep.subr.mxu0 %v618
  %1034 = vmatpush1.msra.mxu0 %v617
  %1035 = vmatprep.subr.mxu0 %v615
  %1036 = vmatpush1.msra.mxu0 %v614
  %1037 = vmatprep.subr.mxu0 %v612
  %1038 = vmatpush1.msra.mxu0 %v611
  %1039 = vmatprep.subr.mxu0 %v609
  %1040 = vmatpush1.msra.mxu0 %v608
  %1041 = vmatprep.subr.mxu0 0.0
  %1042 = vmatpush2.msra.mxu0 0.0
  %1043 = vmatprep.subr.mxu0 0.0
  %1044 = vmatpush2.msra.mxu0 0.0
  %1045 = vmatprep.subr.mxu0 0.0
  %1046 = vmatpush2.msra.mxu0 0.0
  %1047 = vmatprep.subr.mxu0 0.0
  %1048 = vmatpush2.msra.mxu0 0.0
  %1049 = vmatprep.subr.mxu0 %v690
  %1050 = vmatpush2.msra.mxu0 %v689
  %1051 = vmatprep.subr.mxu0 %v687
  %1052 = vmatpush2.msra.mxu0 %v686
  %1053 = vmatprep.subr.mxu0 %v684
  %1054 = vmatpush2.msra.mxu0 %v683
  %1055 = vmatprep.subr.mxu0 %v681
  %1056 = vmatpush2.msra.mxu0 %v680
  %1057 = vmatprep.subr.mxu0 %v678
  %1058 = vmatpush2.msra.mxu0 %v677
  %1059 = vmatprep.subr.mxu0 %v675
  %1060 = vmatpush2.msra.mxu0 %v674
  %1061 = vmatprep.subr.mxu0 %v672
  %1062 = vmatpush2.msra.mxu0 %v671
  %1063 = vmatprep.subr.mxu0 %v669
  %1064 = vmatpush2.msra.mxu0 %v668
  %1065 = vmatprep.subr.mxu0 %v666
  %1066 = vmatpush2.msra.mxu0 %v665
  %1067 = vmatprep.subr.mxu0 %v663
  %1068 = vmatpush2.msra.mxu0 %v662
  %1069 = vmatprep.subr.mxu0 %v660
  %1070 = vmatpush2.msra.mxu0 %v659
  %1071 = vmatprep.subr.mxu0 %v657
  %1072 = vmatpush2.msra.mxu0 %v656
  %1073 = vmatprep.mubr.f32.mxu0 %v1007
  %1074 = vmatmul.mubr.f32.gmra.mxu0 %v138
  %v1075 = vpop.f32.mrf.mxu0
  %v1076 = vadd.f32 %v932, %v1075
  %v1077 = vpop.f32.mrf.mxu0
  %v1078 = vadd.f32 %v934, %v1077
  %1079 = vdwg.mxu0
  %1080 = vmatprep.subr.mxu0 0.0
  %1081 = vmatpush1.msra.mxu0 %v655
  %1082 = vmatprep.subr.mxu0 0.0
  %1083 = vmatpush1.msra.mxu0 %v652
  %1084 = vmatprep.subr.mxu0 0.0
  %1085 = vmatpush1.msra.mxu0 %v649
  %1086 = vmatprep.subr.mxu0 0.0
  %1087 = vmatpush1.msra.mxu0 %v646
  %1088 = vmatprep.subr.mxu0 0.0
  %1089 = vmatpush1.msra.mxu0 %v643
  %1090 = vmatprep.subr.mxu0 0.0
  %1091 = vmatpush1.msra.mxu0 %v640
  %1092 = vmatprep.subr.mxu0 0.0
  %1093 = vmatpush1.msra.mxu0 %v637
  %1094 = vmatprep.subr.mxu0 0.0
  %1095 = vmatpush1.msra.mxu0 %v634
  %1096 = vmatprep.subr.mxu0 0.0
  %1097 = vmatpush1.msra.mxu0 %v631
  %1098 = vmatprep.subr.mxu0 0.0
  %1099 = vmatpush1.msra.mxu0 %v628
  %1100 = vmatprep.subr.mxu0 0.0
  %1101 = vmatpush1.msra.mxu0 %v625
  %1102 = vmatprep.subr.mxu0 0.0
  %1103 = vmatpush1.msra.mxu0 %v622
  %1104 = vmatprep.subr.mxu0 0.0
  %1105 = vmatpush1.msra.mxu0 %v619
  %1106 = vmatprep.subr.mxu0 0.0
  %1107 = vmatpush1.msra.mxu0 %v616
  %1108 = vmatprep.subr.mxu0 0.0
  %1109 = vmatpush1.msra.mxu0 %v613
  %1110 = vmatprep.subr.mxu0 0.0
  %1111 = vmatpush1.msra.mxu0 %v610
  %1112 = vmatprep.subr.mxu0 0.0
  %1113 = vmatpush2.msra.mxu0 0.0
  %1114 = vmatprep.subr.mxu0 0.0
  %1115 = vmatpush2.msra.mxu0 0.0
  %1116 = vmatprep.subr.mxu0 0.0
  %1117 = vmatpush2.msra.mxu0 0.0
  %1118 = vmatprep.subr.mxu0 0.0
  %1119 = vmatpush2.msra.mxu0 0.0
  %1120 = vmatprep.subr.mxu0 0.0
  %1121 = vmatpush2.msra.mxu0 %v691
  %1122 = vmatprep.subr.mxu0 0.0
  %1123 = vmatpush2.msra.mxu0 %v688
  %1124 = vmatprep.subr.mxu0 0.0
  %1125 = vmatpush2.msra.mxu0 %v685
  %1126 = vmatprep.subr.mxu0 0.0
  %1127 = vmatpush2.msra.mxu0 %v682
  %1128 = vmatprep.subr.mxu0 0.0
  %1129 = vmatpush2.msra.mxu0 %v679
  %1130 = vmatprep.subr.mxu0 0.0
  %1131 = vmatpush2.msra.mxu0 %v676
  %1132 = vmatprep.subr.mxu0 0.0
  %1133 = vmatpush2.msra.mxu0 %v673
  %1134 = vmatprep.subr.mxu0 0.0
  %1135 = vmatpush2.msra.mxu0 %v670
  %1136 = vmatprep.subr.mxu0 0.0
  %1137 = vmatpush2.msra.mxu0 %v667
  %1138 = vmatprep.subr.mxu0 0.0
  %1139 = vmatpush2.msra.mxu0 %v664
  %1140 = vmatprep.subr.mxu0 0.0
  %1141 = vmatpush2.msra.mxu0 %v661
  %1142 = vmatprep.subr.mxu0 0.0
  %1143 = vmatpush2.msra.mxu0 %v658
  %1144 = vmatprep.mubr.f32.mxu0 %v1007
  %1145 = vmatmul.mubr.f32.gmra.mxu0 %v138
  %v1146 = vpop.f32.mrf.mxu0
  %v1147 = vadd.f32 %v1003, %v1146
  %v1148 = vpop.f32.mrf.mxu0
  %1149 = vdwg.mxu0
  %v1151 = vsel %vm861, %v295, 0
  %1153 = vmatprep.subr.mxu0 %v822
  %1154 = vmatpush1.msra.mxu0 %v821
  %1155 = vmatprep.subr.mxu0 %v819
  %1156 = vmatpush1.msra.mxu0 %v818
  %1157 = vmatprep.subr.mxu0 %v816
  %1158 = vmatpush1.msra.mxu0 %v815
  %1159 = vmatprep.subr.mxu0 %v813
  %1160 = vmatpush1.msra.mxu0 %v812
  %1161 = vmatprep.subr.mxu0 %v810
  %1162 = vmatpush1.msra.mxu0 %v809
  %1163 = vmatprep.subr.mxu0 %v807
  %1164 = vmatpush1.msra.mxu0 %v806
  %1165 = vmatprep.subr.mxu0 %v804
  %1166 = vmatpush1.msra.mxu0 %v803
  %1167 = vmatprep.subr.mxu0 %v801
  %1168 = vmatpush1.msra.mxu0 %v800
  %1169 = vmatprep.subr.mxu0 %v798
  %1170 = vmatpush1.msra.mxu0 %v797
  %1171 = vmatprep.subr.mxu0 %v795
  %1172 = vmatpush1.msra.mxu0 %v794
  %1173 = vmatprep.subr.mxu0 %v792
  %1174 = vmatpush1.msra.mxu0 %v791
  %1175 = vmatprep.subr.mxu0 %v789
  %1176 = vmatpush1.msra.mxu0 %v788
  %1177 = vmatprep.subr.mxu0 %v786
  %1178 = vmatpush1.msra.mxu0 %v785
  %1179 = vmatprep.subr.mxu0 %v783
  %1180 = vmatpush1.msra.mxu0 %v782
  %1181 = vmatprep.subr.mxu0 %v780
  %1182 = vmatpush1.msra.mxu0 %v779
  %1183 = vmatprep.subr.mxu0 %v777
  %1184 = vmatpush1.msra.mxu0 %v776
  %1185 = vmatprep.subr.mxu0 0.0
  %1186 = vmatpush2.msra.mxu0 0.0
  %1187 = vmatprep.subr.mxu0 0.0
  %1188 = vmatpush2.msra.mxu0 0.0
  %1189 = vmatprep.subr.mxu0 0.0
  %1190 = vmatpush2.msra.mxu0 0.0
  %1191 = vmatprep.subr.mxu0 0.0
  %1192 = vmatpush2.msra.mxu0 0.0
  %1193 = vmatprep.subr.mxu0 %v858
  %1194 = vmatpush2.msra.mxu0 %v857
  %1195 = vmatprep.subr.mxu0 %v855
  %1196 = vmatpush2.msra.mxu0 %v854
  %1197 = vmatprep.subr.mxu0 %v852
  %1198 = vmatpush2.msra.mxu0 %v851
  %1199 = vmatprep.subr.mxu0 %v849
  %1200 = vmatpush2.msra.mxu0 %v848
  %1201 = vmatprep.subr.mxu0 %v846
  %1202 = vmatpush2.msra.mxu0 %v845
  %1203 = vmatprep.subr.mxu0 %v843
  %1204 = vmatpush2.msra.mxu0 %v842
  %1205 = vmatprep.subr.mxu0 %v840
  %1206 = vmatpush2.msra.mxu0 %v839
  %1207 = vmatprep.subr.mxu0 %v837
  %1208 = vmatpush2.msra.mxu0 %v836
  %1209 = vmatprep.subr.mxu0 %v834
  %1210 = vmatpush2.msra.mxu0 %v833
  %1211 = vmatprep.subr.mxu0 %v831
  %1212 = vmatpush2.msra.mxu0 %v830
  %1213 = vmatprep.subr.mxu0 %v828
  %1214 = vmatpush2.msra.mxu0 %v827
  %1215 = vmatprep.subr.mxu0 %v825
  %1216 = vmatpush2.msra.mxu0 %v824
  %1217 = vmatprep.mubr.f32.mxu0 %v1151
  %1218 = vmatmul.mubr.f32.gmra.mxu0 %v294
  %v1219 = vpop.f32.mrf.mxu0
  %v1220 = vadd.f32 0.0, %v1219
  %v1221 = vpop.f32.mrf.mxu0
  %v1222 = vadd.f32 0.0, %v1221
  %1223 = vdwg.mxu0
  %1224 = vmatprep.subr.mxu0 0.0
  %1225 = vmatpush1.msra.mxu0 %v823
  %1226 = vmatprep.subr.mxu0 0.0
  %1227 = vmatpush1.msra.mxu0 %v820
  %1228 = vmatprep.subr.mxu0 0.0
  %1229 = vmatpush1.msra.mxu0 %v817
  %1230 = vmatprep.subr.mxu0 0.0
  %1231 = vmatpush1.msra.mxu0 %v814
  %1232 = vmatprep.subr.mxu0 0.0
  %1233 = vmatpush1.msra.mxu0 %v811
  %1234 = vmatprep.subr.mxu0 0.0
  %1235 = vmatpush1.msra.mxu0 %v808
  %1236 = vmatprep.subr.mxu0 0.0
  %1237 = vmatpush1.msra.mxu0 %v805
  %1238 = vmatprep.subr.mxu0 0.0
  %1239 = vmatpush1.msra.mxu0 %v802
  %1240 = vmatprep.subr.mxu0 0.0
  %1241 = vmatpush1.msra.mxu0 %v799
  %1242 = vmatprep.subr.mxu0 0.0
  %1243 = vmatpush1.msra.mxu0 %v796
  %1244 = vmatprep.subr.mxu0 0.0
  %1245 = vmatpush1.msra.mxu0 %v793
  %1246 = vmatprep.subr.mxu0 0.0
  %1247 = vmatpush1.msra.mxu0 %v790
  %1248 = vmatprep.subr.mxu0 0.0
  %1249 = vmatpush1.msra.mxu0 %v787
  %1250 = vmatprep.subr.mxu0 0.0
  %1251 = vmatpush1.msra.mxu0 %v784
  %1252 = vmatprep.subr.mxu0 0.0
  %1253 = vmatpush1.msra.mxu0 %v781
  %1254 = vmatprep.subr.mxu0 0.0
  %1255 = vmatpush1.msra.mxu0 %v778
  %1256 = vmatprep.subr.mxu0 0.0
  %1257 = vmatpush2.msra.mxu0 0.0
  %1258 = vmatprep.subr.mxu0 0.0
  %1259 = vmatpush2.msra.mxu0 0.0
  %1260 = vmatprep.subr.mxu0 0.0
  %1261 = vmatpush2.msra.mxu0 0.0
  %1262 = vmatprep.subr.mxu0 0.0
  %1263 = vmatpush2.msra.mxu0 0.0
  %1264 = vmatprep.subr.mxu0 0.0
  %1265 = vmatpush2.msra.mxu0 %v859
  %1266 = vmatprep.subr.mxu0 0.0
  %1267 = vmatpush2.msra.mxu0 %v856
  %1268 = vmatprep.subr.mxu0 0.0
  %1269 = vmatpush2.msra.mxu0 %v853
  %1270 = vmatprep.subr.mxu0 0.0
  %1271 = vmatpush2.msra.mxu0 %v850
  %1272 = vmatprep.subr.mxu0 0.0
  %1273 = vmatpush2.msra.mxu0 %v847
  %1274 = vmatprep.subr.mxu0 0.0
  %1275 = vmatpush2.msra.mxu0 %v844
  %1276 = vmatprep.subr.mxu0 0.0
  %1277 = vmatpush2.msra.mxu0 %v841
  %1278 = vmatprep.subr.mxu0 0.0
  %1279 = vmatpush2.msra.mxu0 %v838
  %1280 = vmatprep.subr.mxu0 0.0
  %1281 = vmatpush2.msra.mxu0 %v835
  %1282 = vmatprep.subr.mxu0 0.0
  %1283 = vmatpush2.msra.mxu0 %v832
  %1284 = vmatprep.subr.mxu0 0.0
  %1285 = vmatpush2.msra.mxu0 %v829
  %1286 = vmatprep.subr.mxu0 0.0
  %1287 = vmatpush2.msra.mxu0 %v826
  %1288 = vmatprep.mubr.f32.mxu0 %v1151
  %1289 = vmatmul.mubr.f32.gmra.mxu0 %v294
  %v1290 = vpop.f32.mrf.mxu0
  %v1291 = vadd.f32 0.0, %v1290
  %v1292 = vpop.f32.mrf.mxu0
  %1293 = vdwg.mxu0
  %v1294 = vadd.f32 %v1076, %v1220
  %v1295 = vadd.f32 %v1078, %v1222
  %v1296 = vadd.f32 %v1147, %v1291
  %v1298 = vlaneseq
  %v1299 = vshrl.u32 %v1298, 7
  %v1300 = vsub.s32 0, %v1299
  %v1301 = vrot.slane %v860, %v1300
  %v1302 = vlaneseq
  %v1303 = vshrl.u32 %v1302, 7
  %v1304 = vsub.s32 1, %v1303
  %v1305 = vrot.slane %v860, %v1304
  %v1306 = vlaneseq
  %v1307 = vshrl.u32 %v1306, 7
  %v1308 = vsub.s32 2, %v1307
  %v1309 = vrot.slane %v860, %v1308
  %v1313 = vadd.f32 %v1294, %v1301
  %v1314 = vadd.f32 %v1295, %v1305
  %v1315 = vadd.f32 %v1296, %v1309
  %v1316 = vmax.f32 %v1313, 0.0
  %v1317 = vmax.f32 %v1314, 0.0
  %v1318 = vmax.f32 %v1315, 0.0
  %1319 = vmatprep.subr.mxu0 %v738
  %1320 = vmatpush1.msra.mxu0 %v737
  %1321 = vmatprep.subr.mxu0 %v735
  %1322 = vmatpush1.msra.mxu0 %v734
  %1323 = vmatprep.subr.mxu0 %v732
  %1324 = vmatpush1.msra.mxu0 %v731
  %1325 = vmatprep.subr.mxu0 %v729
  %1326 = vmatpush1.msra.mxu0 %v728
  %1327 = vmatprep.subr.mxu0 %v726
  %1328 = vmatpush1.msra.mxu0 %v725
  %1329 = vmatprep.subr.mxu0 %v723
  %1330 = vmatpush1.msra.mxu0 %v722
  %1331 = vmatprep.subr.mxu0 %v720
  %1332 = vmatpush1.msra.mxu0 %v719
  %1333 = vmatprep.subr.mxu0 %v717
  %1334 = vmatpush1.msra.mxu0 %v716
  %1335 = vmatprep.subr.mxu0 %v714
  %1336 = vmatpush1.msra.mxu0 %v713
  %1337 = vmatprep.subr.mxu0 %v711
  %1338 = vmatpush1.msra.mxu0 %v710
  %1339 = vmatprep.subr.mxu0 %v708
  %1340 = vmatpush1.msra.mxu0 %v707
  %1341 = vmatprep.subr.mxu0 %v705
  %1342 = vmatpush1.msra.mxu0 %v704
  %1343 = vmatprep.subr.mxu0 %v702
  %1344 = vmatpush1.msra.mxu0 %v701
  %1345 = vmatprep.subr.mxu0 %v699
  %1346 = vmatpush1.msra.mxu0 %v698
  %1347 = vmatprep.subr.mxu0 %v696
  %1348 = vmatpush1.msra.mxu0 %v695
  %1349 = vmatprep.subr.mxu0 %v693
  %1350 = vmatpush1.msra.mxu0 %v692
  %1351 = vmatprep.subr.mxu0 0.0
  %1352 = vmatpush2.msra.mxu0 0.0
  %1353 = vmatprep.subr.mxu0 0.0
  %1354 = vmatpush2.msra.mxu0 0.0
  %1355 = vmatprep.subr.mxu0 0.0
  %1356 = vmatpush2.msra.mxu0 0.0
  %1357 = vmatprep.subr.mxu0 0.0
  %1358 = vmatpush2.msra.mxu0 0.0
  %1359 = vmatprep.subr.mxu0 %v774
  %1360 = vmatpush2.msra.mxu0 %v773
  %1361 = vmatprep.subr.mxu0 %v771
  %1362 = vmatpush2.msra.mxu0 %v770
  %1363 = vmatprep.subr.mxu0 %v768
  %1364 = vmatpush2.msra.mxu0 %v767
  %1365 = vmatprep.subr.mxu0 %v765
  %1366 = vmatpush2.msra.mxu0 %v764
  %1367 = vmatprep.subr.mxu0 %v762
  %1368 = vmatpush2.msra.mxu0 %v761
  %1369 = vmatprep.subr.mxu0 %v759
  %1370 = vmatpush2.msra.mxu0 %v758
  %1371 = vmatprep.subr.mxu0 %v756
  %1372 = vmatpush2.msra.mxu0 %v755
  %1373 = vmatprep.subr.mxu0 %v753
  %1374 = vmatpush2.msra.mxu0 %v752
  %1375 = vmatprep.subr.mxu0 %v750
  %1376 = vmatpush2.msra.mxu0 %v749
  %1377 = vmatprep.subr.mxu0 %v747
  %1378 = vmatpush2.msra.mxu0 %v746
  %1379 = vmatprep.subr.mxu0 %v744
  %1380 = vmatpush2.msra.mxu0 %v743
  %1381 = vmatprep.subr.mxu0 %v741
  %1382 = vmatpush2.msra.mxu0 %v740
  %1383 = vmatprep.mubr.f32.mxu0 %v1151
  %1384 = vmatmul.mubr.f32.gmra.mxu0 %v294
  %v1385 = vpop.f32.mrf.mxu0
  %v1386 = vadd.f32 0.0, %v1385
  %v1387 = vpop.f32.mrf.mxu0
  %v1388 = vadd.f32 0.0, %v1387
  %1389 = vdwg.mxu0
  %1390 = vmatprep.subr.mxu0 0.0
  %1391 = vmatpush1.msra.mxu0 %v739
  %1392 = vmatprep.subr.mxu0 0.0
  %1393 = vmatpush1.msra.mxu0 %v736
  %1394 = vmatprep.subr.mxu0 0.0
  %1395 = vmatpush1.msra.mxu0 %v733
  %1396 = vmatprep.subr.mxu0 0.0
  %1397 = vmatpush1.msra.mxu0 %v730
  %1398 = vmatprep.subr.mxu0 0.0
  %1399 = vmatpush1.msra.mxu0 %v727
  %1400 = vmatprep.subr.mxu0 0.0
  %1401 = vmatpush1.msra.mxu0 %v724
  %1402 = vmatprep.subr.mxu0 0.0
  %1403 = vmatpush1.msra.mxu0 %v721
  %1404 = vmatprep.subr.mxu0 0.0
  %1405 = vmatpush1.msra.mxu0 %v718
  %1406 = vmatprep.subr.mxu0 0.0
  %1407 = vmatpush1.msra.mxu0 %v715
  %1408 = vmatprep.subr.mxu0 0.0
  %1409 = vmatpush1.msra.mxu0 %v712
  %1410 = vmatprep.subr.mxu0 0.0
  %1411 = vmatpush1.msra.mxu0 %v709
  %1412 = vmatprep.subr.mxu0 0.0
  %1413 = vmatpush1.msra.mxu0 %v706
  %1414 = vmatprep.subr.mxu0 0.0
  %1415 = vmatpush1.msra.mxu0 %v703
  %1416 = vmatprep.subr.mxu0 0.0
  %1417 = vmatpush1.msra.mxu0 %v700
  %1418 = vmatprep.subr.mxu0 0.0
  %1419 = vmatpush1.msra.mxu0 %v697
  %1420 = vmatprep.subr.mxu0 0.0
  %1421 = vmatpush1.msra.mxu0 %v694
  %1422 = vmatprep.subr.mxu0 0.0
  %1423 = vmatpush2.msra.mxu0 0.0
  %1424 = vmatprep.subr.mxu0 0.0
  %1425 = vmatpush2.msra.mxu0 0.0
  %1426 = vmatprep.subr.mxu0 0.0
  %1427 = vmatpush2.msra.mxu0 0.0
  %1428 = vmatprep.subr.mxu0 0.0
  %1429 = vmatpush2.msra.mxu0 0.0
  %1430 = vmatprep.subr.mxu0 0.0
  %1431 = vmatpush2.msra.mxu0 %v775
  %1432 = vmatprep.subr.mxu0 0.0
  %1433 = vmatpush2.msra.mxu0 %v772
  %1434 = vmatprep.subr.mxu0 0.0
  %1435 = vmatpush2.msra.mxu0 %v769
  %1436 = vmatprep.subr.mxu0 0.0
  %1437 = vmatpush2.msra.mxu0 %v766
  %1438 = vmatprep.subr.mxu0 0.0
  %1439 = vmatpush2.msra.mxu0 %v763
  %1440 = vmatprep.subr.mxu0 0.0
  %1441 = vmatpush2.msra.mxu0 %v760
  %1442 = vmatprep.subr.mxu0 0.0
  %1443 = vmatpush2.msra.mxu0 %v757
  %1444 = vmatprep.subr.mxu0 0.0
  %1445 = vmatpush2.msra.mxu0 %v754
  %1446 = vmatprep.subr.mxu0 0.0
  %1447 = vmatpush2.msra.mxu0 %v751
  %1448 = vmatprep.subr.mxu0 0.0
  %1449 = vmatpush2.msra.mxu0 %v748
  %1450 = vmatprep.subr.mxu0 0.0
  %1451 = vmatpush2.msra.mxu0 %v745
  %1452 = vmatprep.subr.mxu0 0.0
  %1453 = vmatpush2.msra.mxu0 %v742
  %1454 = vmatprep.mubr.f32.mxu0 %v1151
  %1455 = vmatmul.mubr.f32.gmra.mxu0 %v294
  %v1456 = vpop.f32.mrf.mxu0
  %v1457 = vadd.f32 0.0, %v1456
  %v1458 = vpop.f32.mrf.mxu0
  %1459 = vdwg.mxu0
  %1460 = vmatprep.subr.mxu0 %v654
  %1461 = vmatpush1.msra.mxu0 %v653
  %1462 = vmatprep.subr.mxu0 %v651
  %1463 = vmatpush1.msra.mxu0 %v650
  %1464 = vmatprep.subr.mxu0 %v648
  %1465 = vmatpush1.msra.mxu0 %v647
  %1466 = vmatprep.subr.mxu0 %v645
  %1467 = vmatpush1.msra.mxu0 %v644
  %1468 = vmatprep.subr.mxu0 %v642
  %1469 = vmatpush1.msra.mxu0 %v641
  %1470 = vmatprep.subr.mxu0 %v639
  %1471 = vmatpush1.msra.mxu0 %v638
  %1472 = vmatprep.subr.mxu0 %v636
  %1473 = vmatpush1.msra.mxu0 %v635
  %1474 = vmatprep.subr.mxu0 %v633
  %1475 = vmatpush1.msra.mxu0 %v632
  %1476 = vmatprep.subr.mxu0 %v630
  %1477 = vmatpush1.msra.mxu0 %v629
  %1478 = vmatprep.subr.mxu0 %v627
  %1479 = vmatpush1.msra.mxu0 %v626
  %1480 = vmatprep.subr.mxu0 %v624
  %1481 = vmatpush1.msra.mxu0 %v623
  %1482 = vmatprep.subr.mxu0 %v621
  %1483 = vmatpush1.msra.mxu0 %v620
  %1484 = vmatprep.subr.mxu0 %v618
  %1485 = vmatpush1.msra.mxu0 %v617
  %1486 = vmatprep.subr.mxu0 %v615
  %1487 = vmatpush1.msra.mxu0 %v614
  %1488 = vmatprep.subr.mxu0 %v612
  %1489 = vmatpush1.msra.mxu0 %v611
  %1490 = vmatprep.subr.mxu0 %v609
  %1491 = vmatpush1.msra.mxu0 %v608
  %1492 = vmatprep.subr.mxu0 0.0
  %1493 = vmatpush2.msra.mxu0 0.0
  %1494 = vmatprep.subr.mxu0 0.0
  %1495 = vmatpush2.msra.mxu0 0.0
  %1496 = vmatprep.subr.mxu0 0.0
  %1497 = vmatpush2.msra.mxu0 0.0
  %1498 = vmatprep.subr.mxu0 0.0
  %1499 = vmatpush2.msra.mxu0 0.0
  %1500 = vmatprep.subr.mxu0 %v690
  %1501 = vmatpush2.msra.mxu0 %v689
  %1502 = vmatprep.subr.mxu0 %v687
  %1503 = vmatpush2.msra.mxu0 %v686
  %1504 = vmatprep.subr.mxu0 %v684
  %1505 = vmatpush2.msra.mxu0 %v683
  %1506 = vmatprep.subr.mxu0 %v681
  %1507 = vmatpush2.msra.mxu0 %v680
  %1508 = vmatprep.subr.mxu0 %v678
  %1509 = vmatpush2.msra.mxu0 %v677
  %1510 = vmatprep.subr.mxu0 %v675
  %1511 = vmatpush2.msra.mxu0 %v674
  %1512 = vmatprep.subr.mxu0 %v672
  %1513 = vmatpush2.msra.mxu0 %v671
  %1514 = vmatprep.subr.mxu0 %v669
  %1515 = vmatpush2.msra.mxu0 %v668
  %1516 = vmatprep.subr.mxu0 %v666
  %1517 = vmatpush2.msra.mxu0 %v665
  %1518 = vmatprep.subr.mxu0 %v663
  %1519 = vmatpush2.msra.mxu0 %v662
  %1520 = vmatprep.subr.mxu0 %v660
  %1521 = vmatpush2.msra.mxu0 %v659
  %1522 = vmatprep.subr.mxu0 %v657
  %1523 = vmatpush2.msra.mxu0 %v656
  %1524 = vmatprep.mubr.f32.mxu0 %v863
  %1525 = vmatmul.mubr.f32.gmra.mxu0 %v216
  %v1526 = vpop.f32.mrf.mxu0
  %v1527 = vadd.f32 %v1386, %v1526
  %v1528 = vpop.f32.mrf.mxu0
  %v1529 = vadd.f32 %v1388, %v1528
  %1530 = vdwg.mxu0
  %1531 = vmatprep.subr.mxu0 0.0
  %1532 = vmatpush1.msra.mxu0 %v655
  %1533 = vmatprep.subr.mxu0 0.0
  %1534 = vmatpush1.msra.mxu0 %v652
  %1535 = vmatprep.subr.mxu0 0.0
  %1536 = vmatpush1.msra.mxu0 %v649
  %1537 = vmatprep.subr.mxu0 0.0
  %1538 = vmatpush1.msra.mxu0 %v646
  %1539 = vmatprep.subr.mxu0 0.0
  %1540 = vmatpush1.msra.mxu0 %v643
  %1541 = vmatprep.subr.mxu0 0.0
  %1542 = vmatpush1.msra.mxu0 %v640
  %1543 = vmatprep.subr.mxu0 0.0
  %1544 = vmatpush1.msra.mxu0 %v637
  %1545 = vmatprep.subr.mxu0 0.0
  %1546 = vmatpush1.msra.mxu0 %v634
  %1547 = vmatprep.subr.mxu0 0.0
  %1548 = vmatpush1.msra.mxu0 %v631
  %1549 = vmatprep.subr.mxu0 0.0
  %1550 = vmatpush1.msra.mxu0 %v628
  %1551 = vmatprep.subr.mxu0 0.0
  %1552 = vmatpush1.msra.mxu0 %v625
  %1553 = vmatprep.subr.mxu0 0.0
  %1554 = vmatpush1.msra.mxu0 %v622
  %1555 = vmatprep.subr.mxu0 0.0
  %1556 = vmatpush1.msra.mxu0 %v619
  %1557 = vmatprep.subr.mxu0 0.0
  %1558 = vmatpush1.msra.mxu0 %v616
  %1559 = vmatprep.subr.mxu0 0.0
  %1560 = vmatpush1.msra.mxu0 %v613
  %1561 = vmatprep.subr.mxu0 0.0
  %1562 = vmatpush1.msra.mxu0 %v610
  %1563 = vmatprep.subr.mxu0 0.0
  %1564 = vmatpush2.msra.mxu0 0.0
  %1565 = vmatprep.subr.mxu0 0.0
  %1566 = vmatpush2.msra.mxu0 0.0
  %1567 = vmatprep.subr.mxu0 0.0
  %1568 = vmatpush2.msra.mxu0 0.0
  %1569 = vmatprep.subr.mxu0 0.0
  %1570 = vmatpush2.msra.mxu0 0.0
  %1571 = vmatprep.subr.mxu0 0.0
  %1572 = vmatpush2.msra.mxu0 %v691
  %1573 = vmatprep.subr.mxu0 0.0
  %1574 = vmatpush2.msra.mxu0 %v688
  %1575 = vmatprep.subr.mxu0 0.0
  %1576 = vmatpush2.msra.mxu0 %v685
  %1577 = vmatprep.subr.mxu0 0.0
  %1578 = vmatpush2.msra.mxu0 %v682
  %1579 = vmatprep.subr.mxu0 0.0
  %1580 = vmatpush2.msra.mxu0 %v679
  %1581 = vmatprep.subr.mxu0 0.0
  %1582 = vmatpush2.msra.mxu0 %v676
  %1583 = vmatprep.subr.mxu0 0.0
  %1584 = vmatpush2.msra.mxu0 %v673
  %1585 = vmatprep.subr.mxu0 0.0
  %1586 = vmatpush2.msra.mxu0 %v670
  %1587 = vmatprep.subr.mxu0 0.0
  %1588 = vmatpush2.msra.mxu0 %v667
  %1589 = vmatprep.subr.mxu0 0.0
  %1590 = vmatpush2.msra.mxu0 %v664
  %1591 = vmatprep.subr.mxu0 0.0
  %1592 = vmatpush2.msra.mxu0 %v661
  %1593 = vmatprep.subr.mxu0 0.0
  %1594 = vmatpush2.msra.mxu0 %v658
  %1595 = vmatprep.mubr.f32.mxu0 %v863
  %1596 = vmatmul.mubr.f32.gmra.mxu0 %v216
  %v1597 = vpop.f32.mrf.mxu0
  %v1598 = vadd.f32 %v1457, %v1597
  %v1599 = vpop.f32.mrf.mxu0
  %1600 = vdwg.mxu0
  %v1602 = vsel %vm861, %v373, 0
  %1604 = vmatprep.subr.mxu0 %v822
  %1605 = vmatpush1.msra.mxu0 %v821
  %1606 = vmatprep.subr.mxu0 %v819
  %1607 = vmatpush1.msra.mxu0 %v818
  %1608 = vmatprep.subr.mxu0 %v816
  %1609 = vmatpush1.msra.mxu0 %v815
  %1610 = vmatprep.subr.mxu0 %v813
  %1611 = vmatpush1.msra.mxu0 %v812
  %1612 = vmatprep.subr.mxu0 %v810
  %1613 = vmatpush1.msra.mxu0 %v809
  %1614 = vmatprep.subr.mxu0 %v807
  %1615 = vmatpush1.msra.mxu0 %v806
  %1616 = vmatprep.subr.mxu0 %v804
  %1617 = vmatpush1.msra.mxu0 %v803
  %1618 = vmatprep.subr.mxu0 %v801
  %1619 = vmatpush1.msra.mxu0 %v800
  %1620 = vmatprep.subr.mxu0 %v798
  %1621 = vmatpush1.msra.mxu0 %v797
  %1622 = vmatprep.subr.mxu0 %v795
  %1623 = vmatpush1.msra.mxu0 %v794
  %1624 = vmatprep.subr.mxu0 %v792
  %1625 = vmatpush1.msra.mxu0 %v791
  %1626 = vmatprep.subr.mxu0 %v789
  %1627 = vmatpush1.msra.mxu0 %v788
  %1628 = vmatprep.subr.mxu0 %v786
  %1629 = vmatpush1.msra.mxu0 %v785
  %1630 = vmatprep.subr.mxu0 %v783
  %1631 = vmatpush1.msra.mxu0 %v782
  %1632 = vmatprep.subr.mxu0 %v780
  %1633 = vmatpush1.msra.mxu0 %v779
  %1634 = vmatprep.subr.mxu0 %v777
  %1635 = vmatpush1.msra.mxu0 %v776
  %1636 = vmatprep.subr.mxu0 0.0
  %1637 = vmatpush2.msra.mxu0 0.0
  %1638 = vmatprep.subr.mxu0 0.0
  %1639 = vmatpush2.msra.mxu0 0.0
  %1640 = vmatprep.subr.mxu0 0.0
  %1641 = vmatpush2.msra.mxu0 0.0
  %1642 = vmatprep.subr.mxu0 0.0
  %1643 = vmatpush2.msra.mxu0 0.0
  %1644 = vmatprep.subr.mxu0 %v858
  %1645 = vmatpush2.msra.mxu0 %v857
  %1646 = vmatprep.subr.mxu0 %v855
  %1647 = vmatpush2.msra.mxu0 %v854
  %1648 = vmatprep.subr.mxu0 %v852
  %1649 = vmatpush2.msra.mxu0 %v851
  %1650 = vmatprep.subr.mxu0 %v849
  %1651 = vmatpush2.msra.mxu0 %v848
  %1652 = vmatprep.subr.mxu0 %v846
  %1653 = vmatpush2.msra.mxu0 %v845
  %1654 = vmatprep.subr.mxu0 %v843
  %1655 = vmatpush2.msra.mxu0 %v842
  %1656 = vmatprep.subr.mxu0 %v840
  %1657 = vmatpush2.msra.mxu0 %v839
  %1658 = vmatprep.subr.mxu0 %v837
  %1659 = vmatpush2.msra.mxu0 %v836
  %1660 = vmatprep.subr.mxu0 %v834
  %1661 = vmatpush2.msra.mxu0 %v833
  %1662 = vmatprep.subr.mxu0 %v831
  %1663 = vmatpush2.msra.mxu0 %v830
  %1664 = vmatprep.subr.mxu0 %v828
  %1665 = vmatpush2.msra.mxu0 %v827
  %1666 = vmatprep.subr.mxu0 %v825
  %1667 = vmatpush2.msra.mxu0 %v824
  %1668 = vmatprep.mubr.f32.mxu0 %v1602
  %1669 = vmatmul.mubr.f32.gmra.mxu0 %v372
  %v1670 = vpop.f32.mrf.mxu0
  %v1671 = vadd.f32 0.0, %v1670
  %v1672 = vpop.f32.mrf.mxu0
  %v1673 = vadd.f32 0.0, %v1672
  %1674 = vdwg.mxu0
  %1675 = vmatprep.subr.mxu0 0.0
  %1676 = vmatpush1.msra.mxu0 %v823
  %1677 = vmatprep.subr.mxu0 0.0
  %1678 = vmatpush1.msra.mxu0 %v820
  %1679 = vmatprep.subr.mxu0 0.0
  %1680 = vmatpush1.msra.mxu0 %v817
  %1681 = vmatprep.subr.mxu0 0.0
  %1682 = vmatpush1.msra.mxu0 %v814
  %1683 = vmatprep.subr.mxu0 0.0
  %1684 = vmatpush1.msra.mxu0 %v811
  %1685 = vmatprep.subr.mxu0 0.0
  %1686 = vmatpush1.msra.mxu0 %v808
  %1687 = vmatprep.subr.mxu0 0.0
  %1688 = vmatpush1.msra.mxu0 %v805
  %1689 = vmatprep.subr.mxu0 0.0
  %1690 = vmatpush1.msra.mxu0 %v802
  %1691 = vmatprep.subr.mxu0 0.0
  %1692 = vmatpush1.msra.mxu0 %v799
  %1693 = vmatprep.subr.mxu0 0.0
  %1694 = vmatpush1.msra.mxu0 %v796
  %1695 = vmatprep.subr.mxu0 0.0
  %1696 = vmatpush1.msra.mxu0 %v793
  %1697 = vmatprep.subr.mxu0 0.0
  %1698 = vmatpush1.msra.mxu0 %v790
  %1699 = vmatprep.subr.mxu0 0.0
  %1700 = vmatpush1.msra.mxu0 %v787
  %1701 = vmatprep.subr.mxu0 0.0
  %1702 = vmatpush1.msra.mxu0 %v784
  %1703 = vmatprep.subr.mxu0 0.0
  %1704 = vmatpush1.msra.mxu0 %v781
  %1705 = vmatprep.subr.mxu0 0.0
  %1706 = vmatpush1.msra.mxu0 %v778
  %1707 = vmatprep.subr.mxu0 0.0
  %1708 = vmatpush2.msra.mxu0 0.0
  %1709 = vmatprep.subr.mxu0 0.0
  %1710 = vmatpush2.msra.mxu0 0.0
  %1711 = vmatprep.subr.mxu0 0.0
  %1712 = vmatpush2.msra.mxu0 0.0
  %1713 = vmatprep.subr.mxu0 0.0
  %1714 = vmatpush2.msra.mxu0 0.0
  %1715 = vmatprep.subr.mxu0 0.0
  %1716 = vmatpush2.msra.mxu0 %v859
  %1717 = vmatprep.subr.mxu0 0.0
  %1718 = vmatpush2.msra.mxu0 %v856
  %1719 = vmatprep.subr.mxu0 0.0
  %1720 = vmatpush2.msra.mxu0 %v853
  %1721 = vmatprep.subr.mxu0 0.0
  %1722 = vmatpush2.msra.mxu0 %v850
  %1723 = vmatprep.subr.mxu0 0.0
  %1724 = vmatpush2.msra.mxu0 %v847
  %1725 = vmatprep.subr.mxu0 0.0
  %1726 = vmatpush2.msra.mxu0 %v844
  %1727 = vmatprep.subr.mxu0 0.0
  %1728 = vmatpush2.msra.mxu0 %v841
  %1729 = vmatprep.subr.mxu0 0.0
  %1730 = vmatpush2.msra.mxu0 %v838
  %1731 = vmatprep.subr.mxu0 0.0
  %1732 = vmatpush2.msra.mxu0 %v835
  %1733 = vmatprep.subr.mxu0 0.0
  %1734 = vmatpush2.msra.mxu0 %v832
  %1735 = vmatprep.subr.mxu0 0.0
  %1736 = vmatpush2.msra.mxu0 %v829
  %1737 = vmatprep.subr.mxu0 0.0
  %1738 = vmatpush2.msra.mxu0 %v826
  %1739 = vmatprep.mubr.f32.mxu0 %v1602
  %1740 = vmatmul.mubr.f32.gmra.mxu0 %v372
  %v1741 = vpop.f32.mrf.mxu0
  %v1742 = vadd.f32 0.0, %v1741
  %v1743 = vpop.f32.mrf.mxu0
  %1744 = vdwg.mxu0
  %v1745 = vadd.f32 %v1527, %v1671
  %v1746 = vadd.f32 %v1529, %v1673
  %v1747 = vadd.f32 %v1598, %v1742
  %v1748 = vadd.f32 %v1745, %v1301
  %v1749 = vadd.f32 %v1746, %v1305
  %v1750 = vadd.f32 %v1747, %v1309
  %v1751 = vmax.f32 %v1748, 0.0
  %v1752 = vmax.f32 %v1749, 0.0
  %v1753 = vmax.f32 %v1750, 0.0
  %1754 = vmatprep.subr.mxu0 %v738
  %1755 = vmatpush1.msra.mxu0 %v737
  %1756 = vmatprep.subr.mxu0 %v735
  %1757 = vmatpush1.msra.mxu0 %v734
  %1758 = vmatprep.subr.mxu0 %v732
  %1759 = vmatpush1.msra.mxu0 %v731
  %1760 = vmatprep.subr.mxu0 %v729
  %1761 = vmatpush1.msra.mxu0 %v728
  %1762 = vmatprep.subr.mxu0 %v726
  %1763 = vmatpush1.msra.mxu0 %v725
  %1764 = vmatprep.subr.mxu0 %v723
  %1765 = vmatpush1.msra.mxu0 %v722
  %1766 = vmatprep.subr.mxu0 %v720
  %1767 = vmatpush1.msra.mxu0 %v719
  %1768 = vmatprep.subr.mxu0 %v717
  %1769 = vmatpush1.msra.mxu0 %v716
  %1770 = vmatprep.subr.mxu0 %v714
  %1771 = vmatpush1.msra.mxu0 %v713
  %1772 = vmatprep.subr.mxu0 %v711
  %1773 = vmatpush1.msra.mxu0 %v710
  %1774 = vmatprep.subr.mxu0 %v708
  %1775 = vmatpush1.msra.mxu0 %v707
  %1776 = vmatprep.subr.mxu0 %v705
  %1777 = vmatpush1.msra.mxu0 %v704
  %1778 = vmatprep.subr.mxu0 %v702
  %1779 = vmatpush1.msra.mxu0 %v701
  %1780 = vmatprep.subr.mxu0 %v699
  %1781 = vmatpush1.msra.mxu0 %v698
  %1782 = vmatprep.subr.mxu0 %v696
  %1783 = vmatpush1.msra.mxu0 %v695
  %1784 = vmatprep.subr.mxu0 %v693
  %1785 = vmatpush1.msra.mxu0 %v692
  %1786 = vmatprep.subr.mxu0 0.0
  %1787 = vmatpush2.msra.mxu0 0.0
  %1788 = vmatprep.subr.mxu0 0.0
  %1789 = vmatpush2.msra.mxu0 0.0
  %1790 = vmatprep.subr.mxu0 0.0
  %1791 = vmatpush2.msra.mxu0 0.0
  %1792 = vmatprep.subr.mxu0 0.0
  %1793 = vmatpush2.msra.mxu0 0.0
  %1794 = vmatprep.subr.mxu0 %v774
  %1795 = vmatpush2.msra.mxu0 %v773
  %1796 = vmatprep.subr.mxu0 %v771
  %1797 = vmatpush2.msra.mxu0 %v770
  %1798 = vmatprep.subr.mxu0 %v768
  %1799 = vmatpush2.msra.mxu0 %v767
  %1800 = vmatprep.subr.mxu0 %v765
  %1801 = vmatpush2.msra.mxu0 %v764
  %1802 = vmatprep.subr.mxu0 %v762
  %1803 = vmatpush2.msra.mxu0 %v761
  %1804 = vmatprep.subr.mxu0 %v759
  %1805 = vmatpush2.msra.mxu0 %v758
  %1806 = vmatprep.subr.mxu0 %v756
  %1807 = vmatpush2.msra.mxu0 %v755
  %1808 = vmatprep.subr.mxu0 %v753
  %1809 = vmatpush2.msra.mxu0 %v752
  %1810 = vmatprep.subr.mxu0 %v750
  %1811 = vmatpush2.msra.mxu0 %v749
  %1812 = vmatprep.subr.mxu0 %v747
  %1813 = vmatpush2.msra.mxu0 %v746
  %1814 = vmatprep.subr.mxu0 %v744
  %1815 = vmatpush2.msra.mxu0 %v743
  %1816 = vmatprep.subr.mxu0 %v741
  %1817 = vmatpush2.msra.mxu0 %v740
  %1818 = vmatprep.mubr.f32.mxu0 %v1602
  %1819 = vmatmul.mubr.f32.gmra.mxu0 %v372
  %v1820 = vpop.f32.mrf.mxu0
  %v1821 = vadd.f32 0.0, %v1820
  %v1822 = vpop.f32.mrf.mxu0
  %v1823 = vadd.f32 0.0, %v1822
  %1824 = vdwg.mxu0
  %1825 = vmatprep.subr.mxu0 0.0
  %1826 = vmatpush1.msra.mxu0 %v739
  %1827 = vmatprep.subr.mxu0 0.0
  %1828 = vmatpush1.msra.mxu0 %v736
  %1829 = vmatprep.subr.mxu0 0.0
  %1830 = vmatpush1.msra.mxu0 %v733
  %1831 = vmatprep.subr.mxu0 0.0
  %1832 = vmatpush1.msra.mxu0 %v730
  %1833 = vmatprep.subr.mxu0 0.0
  %1834 = vmatpush1.msra.mxu0 %v727
  %1835 = vmatprep.subr.mxu0 0.0
  %1836 = vmatpush1.msra.mxu0 %v724
  %1837 = vmatprep.subr.mxu0 0.0
  %1838 = vmatpush1.msra.mxu0 %v721
  %1839 = vmatprep.subr.mxu0 0.0
  %1840 = vmatpush1.msra.mxu0 %v718
  %1841 = vmatprep.subr.mxu0 0.0
  %1842 = vmatpush1.msra.mxu0 %v715
  %1843 = vmatprep.subr.mxu0 0.0
  %1844 = vmatpush1.msra.mxu0 %v712
  %1845 = vmatprep.subr.mxu0 0.0
  %1846 = vmatpush1.msra.mxu0 %v709
  %1847 = vmatprep.subr.mxu0 0.0
  %1848 = vmatpush1.msra.mxu0 %v706
  %1849 = vmatprep.subr.mxu0 0.0
  %1850 = vmatpush1.msra.mxu0 %v703
  %1851 = vmatprep.subr.mxu0 0.0
  %1852 = vmatpush1.msra.mxu0 %v700
  %1853 = vmatprep.subr.mxu0 0.0
  %1854 = vmatpush1.msra.mxu0 %v697
  %1855 = vmatprep.subr.mxu0 0.0
  %1856 = vmatpush1.msra.mxu0 %v694
  %1857 = vmatprep.subr.mxu0 0.0
  %1858 = vmatpush2.msra.mxu0 0.0
  %1859 = vmatprep.subr.mxu0 0.0
  %1860 = vmatpush2.msra.mxu0 0.0
  %1861 = vmatprep.subr.mxu0 0.0
  %1862 = vmatpush2.msra.mxu0 0.0
  %1863 = vmatprep.subr.mxu0 0.0
  %1864 = vmatpush2.msra.mxu0 0.0
  %1865 = vmatprep.subr.mxu0 0.0
  %1866 = vmatpush2.msra.mxu0 %v775
  %1867 = vmatprep.subr.mxu0 0.0
  %1868 = vmatpush2.msra.mxu0 %v772
  %1869 = vmatprep.subr.mxu0 0.0
  %1870 = vmatpush2.msra.mxu0 %v769
  %1871 = vmatprep.subr.mxu0 0.0
  %1872 = vmatpush2.msra.mxu0 %v766
  %1873 = vmatprep.subr.mxu0 0.0
  %1874 = vmatpush2.msra.mxu0 %v763
  %1875 = vmatprep.subr.mxu0 0.0
  %1876 = vmatpush2.msra.mxu0 %v760
  %1877 = vmatprep.subr.mxu0 0.0
  %1878 = vmatpush2.msra.mxu0 %v757
  %1879 = vmatprep.subr.mxu0 0.0
  %1880 = vmatpush2.msra.mxu0 %v754
  %1881 = vmatprep.subr.mxu0 0.0
  %1882 = vmatpush2.msra.mxu0 %v751
  %1883 = vmatprep.subr.mxu0 0.0
  %1884 = vmatpush2.msra.mxu0 %v748
  %1885 = vmatprep.subr.mxu0 0.0
  %1886 = vmatpush2.msra.mxu0 %v745
  %1887 = vmatprep.subr.mxu0 0.0
  %1888 = vmatpush2.msra.mxu0 %v742
  %1889 = vmatprep.mubr.f32.mxu0 %v1602
  %1890 = vmatmul.mubr.f32.gmra.mxu0 %v372
  %v1891 = vpop.f32.mrf.mxu0
  %v1892 = vadd.f32 0.0, %v1891
  %v1893 = vpop.f32.mrf.mxu0
  %1894 = vdwg.mxu0
  %1895 = vmatprep.subr.mxu0 %v654
  %1896 = vmatpush1.msra.mxu0 %v653
  %1897 = vmatprep.subr.mxu0 %v651
  %1898 = vmatpush1.msra.mxu0 %v650
  %1899 = vmatprep.subr.mxu0 %v648
  %1900 = vmatpush1.msra.mxu0 %v647
  %1901 = vmatprep.subr.mxu0 %v645
  %1902 = vmatpush1.msra.mxu0 %v644
  %1903 = vmatprep.subr.mxu0 %v642
  %1904 = vmatpush1.msra.mxu0 %v641
  %1905 = vmatprep.subr.mxu0 %v639
  %1906 = vmatpush1.msra.mxu0 %v638
  %1907 = vmatprep.subr.mxu0 %v636
  %1908 = vmatpush1.msra.mxu0 %v635
  %1909 = vmatprep.subr.mxu0 %v633
  %1910 = vmatpush1.msra.mxu0 %v632
  %1911 = vmatprep.subr.mxu0 %v630
  %1912 = vmatpush1.msra.mxu0 %v629
  %1913 = vmatprep.subr.mxu0 %v627
  %1914 = vmatpush1.msra.mxu0 %v626
  %1915 = vmatprep.subr.mxu0 %v624
  %1916 = vmatpush1.msra.mxu0 %v623
  %1917 = vmatprep.subr.mxu0 %v621
  %1918 = vmatpush1.msra.mxu0 %v620
  %1919 = vmatprep.subr.mxu0 %v618
  %1920 = vmatpush1.msra.mxu0 %v617
  %1921 = vmatprep.subr.mxu0 %v615
  %1922 = vmatpush1.msra.mxu0 %v614
  %1923 = vmatprep.subr.mxu0 %v612
  %1924 = vmatpush1.msra.mxu0 %v611
  %1925 = vmatprep.subr.mxu0 %v609
  %1926 = vmatpush1.msra.mxu0 %v608
  %1927 = vmatprep.subr.mxu0 0.0
  %1928 = vmatpush2.msra.mxu0 0.0
  %1929 = vmatprep.subr.mxu0 0.0
  %1930 = vmatpush2.msra.mxu0 0.0
  %1931 = vmatprep.subr.mxu0 0.0
  %1932 = vmatpush2.msra.mxu0 0.0
  %1933 = vmatprep.subr.mxu0 0.0
  %1934 = vmatpush2.msra.mxu0 0.0
  %1935 = vmatprep.subr.mxu0 %v690
  %1936 = vmatpush2.msra.mxu0 %v689
  %1937 = vmatprep.subr.mxu0 %v687
  %1938 = vmatpush2.msra.mxu0 %v686
  %1939 = vmatprep.subr.mxu0 %v684
  %1940 = vmatpush2.msra.mxu0 %v683
  %1941 = vmatprep.subr.mxu0 %v681
  %1942 = vmatpush2.msra.mxu0 %v680
  %1943 = vmatprep.subr.mxu0 %v678
  %1944 = vmatpush2.msra.mxu0 %v677
  %1945 = vmatprep.subr.mxu0 %v675
  %1946 = vmatpush2.msra.mxu0 %v674
  %1947 = vmatprep.subr.mxu0 %v672
  %1948 = vmatpush2.msra.mxu0 %v671
  %1949 = vmatprep.subr.mxu0 %v669
  %1950 = vmatpush2.msra.mxu0 %v668
  %1951 = vmatprep.subr.mxu0 %v666
  %1952 = vmatpush2.msra.mxu0 %v665
  %1953 = vmatprep.subr.mxu0 %v663
  %1954 = vmatpush2.msra.mxu0 %v662
  %1955 = vmatprep.subr.mxu0 %v660
  %1956 = vmatpush2.msra.mxu0 %v659
  %1957 = vmatprep.subr.mxu0 %v657
  %1958 = vmatpush2.msra.mxu0 %v656
  %1959 = vmatprep.mubr.f32.mxu0 %v1151
  %1960 = vmatmul.mubr.f32.gmra.mxu0 %v294
  %v1961 = vpop.f32.mrf.mxu0
  %v1962 = vadd.f32 %v1821, %v1961
  %v1963 = vpop.f32.mrf.mxu0
  %v1964 = vadd.f32 %v1823, %v1963
  %1965 = vdwg.mxu0
  %1966 = vmatprep.subr.mxu0 0.0
  %1967 = vmatpush1.msra.mxu0 %v655
  %1968 = vmatprep.subr.mxu0 0.0
  %1969 = vmatpush1.msra.mxu0 %v652
  %1970 = vmatprep.subr.mxu0 0.0
  %1971 = vmatpush1.msra.mxu0 %v649
  %1972 = vmatprep.subr.mxu0 0.0
  %1973 = vmatpush1.msra.mxu0 %v646
  %1974 = vmatprep.subr.mxu0 0.0
  %1975 = vmatpush1.msra.mxu0 %v643
  %1976 = vmatprep.subr.mxu0 0.0
  %1977 = vmatpush1.msra.mxu0 %v640
  %1978 = vmatprep.subr.mxu0 0.0
  %1979 = vmatpush1.msra.mxu0 %v637
  %1980 = vmatprep.subr.mxu0 0.0
  %1981 = vmatpush1.msra.mxu0 %v634
  %1982 = vmatprep.subr.mxu0 0.0
  %1983 = vmatpush1.msra.mxu0 %v631
  %1984 = vmatprep.subr.mxu0 0.0
  %1985 = vmatpush1.msra.mxu0 %v628
  %1986 = vmatprep.subr.mxu0 0.0
  %1987 = vmatpush1.msra.mxu0 %v625
  %1988 = vmatprep.subr.mxu0 0.0
  %1989 = vmatpush1.msra.mxu0 %v622
  %1990 = vmatprep.subr.mxu0 0.0
  %1991 = vmatpush1.msra.mxu0 %v619
  %1992 = vmatprep.subr.mxu0 0.0
  %1993 = vmatpush1.msra.mxu0 %v616
  %1994 = vmatprep.subr.mxu0 0.0
  %1995 = vmatpush1.msra.mxu0 %v613
  %1996 = vmatprep.subr.mxu0 0.0
  %1997 = vmatpush1.msra.mxu0 %v610
  %1998 = vmatprep.subr.mxu0 0.0
  %1999 = vmatpush2.msra.mxu0 0.0
  %2000 = vmatprep.subr.mxu0 0.0
  %2001 = vmatpush2.msra.mxu0 0.0
  %2002 = vmatprep.subr.mxu0 0.0
  %2003 = vmatpush2.msra.mxu0 0.0
  %2004 = vmatprep.subr.mxu0 0.0
  %2005 = vmatpush2.msra.mxu0 0.0
  %2006 = vmatprep.subr.mxu0 0.0
  %2007 = vmatpush2.msra.mxu0 %v691
  %2008 = vmatprep.subr.mxu0 0.0
  %2009 = vmatpush2.msra.mxu0 %v688
  %2010 = vmatprep.subr.mxu0 0.0
  %2011 = vmatpush2.msra.mxu0 %v685
  %2012 = vmatprep.subr.mxu0 0.0
  %2013 = vmatpush2.msra.mxu0 %v682
  %2014 = vmatprep.subr.mxu0 0.0
  %2015 = vmatpush2.msra.mxu0 %v679
  %2016 = vmatprep.subr.mxu0 0.0
  %2017 = vmatpush2.msra.mxu0 %v676
  %2018 = vmatprep.subr.mxu0 0.0
  %2019 = vmatpush2.msra.mxu0 %v673
  %2020 = vmatprep.subr.mxu0 0.0
  %2021 = vmatpush2.msra.mxu0 %v670
  %2022 = vmatprep.subr.mxu0 0.0
  %2023 = vmatpush2.msra.mxu0 %v667
  %2024 = vmatprep.subr.mxu0 0.0
  %2025 = vmatpush2.msra.mxu0 %v664
  %2026 = vmatprep.subr.mxu0 0.0
  %2027 = vmatpush2.msra.mxu0 %v661
  %2028 = vmatprep.subr.mxu0 0.0
  %2029 = vmatpush2.msra.mxu0 %v658
  %2030 = vmatprep.mubr.f32.mxu0 %v1151
  %2031 = vmatmul.mubr.f32.gmra.mxu0 %v294
  %v2032 = vpop.f32.mrf.mxu0
  %v2033 = vadd.f32 %v1892, %v2032
  %v2034 = vpop.f32.mrf.mxu0
  %2035 = vdwg.mxu0
  %v2037 = vsel %vm861, %v451, 0
  %2039 = vmatprep.subr.mxu0 %v822
  %2040 = vmatpush1.msra.mxu0 %v821
  %2041 = vmatprep.subr.mxu0 %v819
  %2042 = vmatpush1.msra.mxu0 %v818
  %2043 = vmatprep.subr.mxu0 %v816
  %2044 = vmatpush1.msra.mxu0 %v815
  %2045 = vmatprep.subr.mxu0 %v813
  %2046 = vmatpush1.msra.mxu0 %v812
  %2047 = vmatprep.subr.mxu0 %v810
  %2048 = vmatpush1.msra.mxu0 %v809
  %2049 = vmatprep.subr.mxu0 %v807
  %2050 = vmatpush1.msra.mxu0 %v806
  %2051 = vmatprep.subr.mxu0 %v804
  %2052 = vmatpush1.msra.mxu0 %v803
  %2053 = vmatprep.subr.mxu0 %v801
  %2054 = vmatpush1.msra.mxu0 %v800
  %2055 = vmatprep.subr.mxu0 %v798
  %2056 = vmatpush1.msra.mxu0 %v797
  %2057 = vmatprep.subr.mxu0 %v795
  %2058 = vmatpush1.msra.mxu0 %v794
  %2059 = vmatprep.subr.mxu0 %v792
  %2060 = vmatpush1.msra.mxu0 %v791
  %2061 = vmatprep.subr.mxu0 %v789
  %2062 = vmatpush1.msra.mxu0 %v788
  %2063 = vmatprep.subr.mxu0 %v786
  %2064 = vmatpush1.msra.mxu0 %v785
  %2065 = vmatprep.subr.mxu0 %v783
  %2066 = vmatpush1.msra.mxu0 %v782
  %2067 = vmatprep.subr.mxu0 %v780
  %2068 = vmatpush1.msra.mxu0 %v779
  %2069 = vmatprep.subr.mxu0 %v777
  %2070 = vmatpush1.msra.mxu0 %v776
  %2071 = vmatprep.subr.mxu0 0.0
  %2072 = vmatpush2.msra.mxu0 0.0
  %2073 = vmatprep.subr.mxu0 0.0
  %2074 = vmatpush2.msra.mxu0 0.0
  %2075 = vmatprep.subr.mxu0 0.0
  %2076 = vmatpush2.msra.mxu0 0.0
  %2077 = vmatprep.subr.mxu0 0.0
  %2078 = vmatpush2.msra.mxu0 0.0
  %2079 = vmatprep.subr.mxu0 %v858
  %2080 = vmatpush2.msra.mxu0 %v857
  %2081 = vmatprep.subr.mxu0 %v855
  %2082 = vmatpush2.msra.mxu0 %v854
  %2083 = vmatprep.subr.mxu0 %v852
  %2084 = vmatpush2.msra.mxu0 %v851
  %2085 = vmatprep.subr.mxu0 %v849
  %2086 = vmatpush2.msra.mxu0 %v848
  %2087 = vmatprep.subr.mxu0 %v846
  %2088 = vmatpush2.msra.mxu0 %v845
  %2089 = vmatprep.subr.mxu0 %v843
  %2090 = vmatpush2.msra.mxu0 %v842
  %2091 = vmatprep.subr.mxu0 %v840
  %2092 = vmatpush2.msra.mxu0 %v839
  %2093 = vmatprep.subr.mxu0 %v837
  %2094 = vmatpush2.msra.mxu0 %v836
  %2095 = vmatprep.subr.mxu0 %v834
  %2096 = vmatpush2.msra.mxu0 %v833
  %2097 = vmatprep.subr.mxu0 %v831
  %2098 = vmatpush2.msra.mxu0 %v830
  %2099 = vmatprep.subr.mxu0 %v828
  %2100 = vmatpush2.msra.mxu0 %v827
  %2101 = vmatprep.subr.mxu0 %v825
  %2102 = vmatpush2.msra.mxu0 %v824
  %2103 = vmatprep.mubr.f32.mxu0 %v2037
  %2104 = vmatmul.mubr.f32.gmra.mxu0 %v450
  %v2105 = vpop.f32.mrf.mxu0
  %v2106 = vadd.f32 0.0, %v2105
  %v2107 = vpop.f32.mrf.mxu0
  %v2108 = vadd.f32 0.0, %v2107
  %2109 = vdwg.mxu0
  %2110 = vmatprep.subr.mxu0 0.0
  %2111 = vmatpush1.msra.mxu0 %v823
  %2112 = vmatprep.subr.mxu0 0.0
  %2113 = vmatpush1.msra.mxu0 %v820
  %2114 = vmatprep.subr.mxu0 0.0
  %2115 = vmatpush1.msra.mxu0 %v817
  %2116 = vmatprep.subr.mxu0 0.0
  %2117 = vmatpush1.msra.mxu0 %v814
  %2118 = vmatprep.subr.mxu0 0.0
  %2119 = vmatpush1.msra.mxu0 %v811
  %2120 = vmatprep.subr.mxu0 0.0
  %2121 = vmatpush1.msra.mxu0 %v808
  %2122 = vmatprep.subr.mxu0 0.0
  %2123 = vmatpush1.msra.mxu0 %v805
  %2124 = vmatprep.subr.mxu0 0.0
  %2125 = vmatpush1.msra.mxu0 %v802
  %2126 = vmatprep.subr.mxu0 0.0
  %2127 = vmatpush1.msra.mxu0 %v799
  %2128 = vmatprep.subr.mxu0 0.0
  %2129 = vmatpush1.msra.mxu0 %v796
  %2130 = vmatprep.subr.mxu0 0.0
  %2131 = vmatpush1.msra.mxu0 %v793
  %2132 = vmatprep.subr.mxu0 0.0
  %2133 = vmatpush1.msra.mxu0 %v790
  %2134 = vmatprep.subr.mxu0 0.0
  %2135 = vmatpush1.msra.mxu0 %v787
  %2136 = vmatprep.subr.mxu0 0.0
  %2137 = vmatpush1.msra.mxu0 %v784
  %2138 = vmatprep.subr.mxu0 0.0
  %2139 = vmatpush1.msra.mxu0 %v781
  %2140 = vmatprep.subr.mxu0 0.0
  %2141 = vmatpush1.msra.mxu0 %v778
  %2142 = vmatprep.subr.mxu0 0.0
  %2143 = vmatpush2.msra.mxu0 0.0
  %2144 = vmatprep.subr.mxu0 0.0
  %2145 = vmatpush2.msra.mxu0 0.0
  %2146 = vmatprep.subr.mxu0 0.0
  %2147 = vmatpush2.msra.mxu0 0.0
  %2148 = vmatprep.subr.mxu0 0.0
  %2149 = vmatpush2.msra.mxu0 0.0
  %2150 = vmatprep.subr.mxu0 0.0
  %2151 = vmatpush2.msra.mxu0 %v859
  %2152 = vmatprep.subr.mxu0 0.0
  %2153 = vmatpush2.msra.mxu0 %v856
  %2154 = vmatprep.subr.mxu0 0.0
  %2155 = vmatpush2.msra.mxu0 %v853
  %2156 = vmatprep.subr.mxu0 0.0
  %2157 = vmatpush2.msra.mxu0 %v850
  %2158 = vmatprep.subr.mxu0 0.0
  %2159 = vmatpush2.msra.mxu0 %v847
  %2160 = vmatprep.subr.mxu0 0.0
  %2161 = vmatpush2.msra.mxu0 %v844
  %2162 = vmatprep.subr.mxu0 0.0
  %2163 = vmatpush2.msra.mxu0 %v841
  %2164 = vmatprep.subr.mxu0 0.0
  %2165 = vmatpush2.msra.mxu0 %v838
  %2166 = vmatprep.subr.mxu0 0.0
  %2167 = vmatpush2.msra.mxu0 %v835
  %2168 = vmatprep.subr.mxu0 0.0
  %2169 = vmatpush2.msra.mxu0 %v832
  %2170 = vmatprep.subr.mxu0 0.0
  %2171 = vmatpush2.msra.mxu0 %v829
  %2172 = vmatprep.subr.mxu0 0.0
  %2173 = vmatpush2.msra.mxu0 %v826
  %2174 = vmatprep.mubr.f32.mxu0 %v2037
  %2175 = vmatmul.mubr.f32.gmra.mxu0 %v450
  %v2176 = vpop.f32.mrf.mxu0
  %v2177 = vadd.f32 0.0, %v2176
  %v2178 = vpop.f32.mrf.mxu0
  %2179 = vdwg.mxu0
  %v2180 = vadd.f32 %v1962, %v2106
  %v2181 = vadd.f32 %v1964, %v2108
  %v2182 = vadd.f32 %v2033, %v2177
  %v2183 = vadd.f32 %v2180, %v1301
  %v2184 = vadd.f32 %v2181, %v1305
  %v2185 = vadd.f32 %v2182, %v1309
  %v2186 = vmax.f32 %v2183, 0.0
  %v2187 = vmax.f32 %v2184, 0.0
  %v2188 = vmax.f32 %v2185, 0.0
  %2189 = vmatprep.subr.mxu0 %v738
  %2190 = vmatpush1.msra.mxu0 %v737
  %2191 = vmatprep.subr.mxu0 %v735
  %2192 = vmatpush1.msra.mxu0 %v734
  %2193 = vmatprep.subr.mxu0 %v732
  %2194 = vmatpush1.msra.mxu0 %v731
  %2195 = vmatprep.subr.mxu0 %v729
  %2196 = vmatpush1.msra.mxu0 %v728
  %2197 = vmatprep.subr.mxu0 %v726
  %2198 = vmatpush1.msra.mxu0 %v725
  %2199 = vmatprep.subr.mxu0 %v723
  %2200 = vmatpush1.msra.mxu0 %v722
  %2201 = vmatprep.subr.mxu0 %v720
  %2202 = vmatpush1.msra.mxu0 %v719
  %2203 = vmatprep.subr.mxu0 %v717
  %2204 = vmatpush1.msra.mxu0 %v716
  %2205 = vmatprep.subr.mxu0 %v714
  %2206 = vmatpush1.msra.mxu0 %v713
  %2207 = vmatprep.subr.mxu0 %v711
  %2208 = vmatpush1.msra.mxu0 %v710
  %2209 = vmatprep.subr.mxu0 %v708
  %2210 = vmatpush1.msra.mxu0 %v707
  %2211 = vmatprep.subr.mxu0 %v705
  %2212 = vmatpush1.msra.mxu0 %v704
  %2213 = vmatprep.subr.mxu0 %v702
  %2214 = vmatpush1.msra.mxu0 %v701
  %2215 = vmatprep.subr.mxu0 %v699
  %2216 = vmatpush1.msra.mxu0 %v698
  %2217 = vmatprep.subr.mxu0 %v696
  %2218 = vmatpush1.msra.mxu0 %v695
  %2219 = vmatprep.subr.mxu0 %v693
  %2220 = vmatpush1.msra.mxu0 %v692
  %2221 = vmatprep.subr.mxu0 0.0
  %2222 = vmatpush2.msra.mxu0 0.0
  %2223 = vmatprep.subr.mxu0 0.0
  %2224 = vmatpush2.msra.mxu0 0.0
  %2225 = vmatprep.subr.mxu0 0.0
  %2226 = vmatpush2.msra.mxu0 0.0
  %2227 = vmatprep.subr.mxu0 0.0
  %2228 = vmatpush2.msra.mxu0 0.0
  %2229 = vmatprep.subr.mxu0 %v774
  %2230 = vmatpush2.msra.mxu0 %v773
  %2231 = vmatprep.subr.mxu0 %v771
  %2232 = vmatpush2.msra.mxu0 %v770
  %2233 = vmatprep.subr.mxu0 %v768
  %2234 = vmatpush2.msra.mxu0 %v767
  %2235 = vmatprep.subr.mxu0 %v765
  %2236 = vmatpush2.msra.mxu0 %v764
  %2237 = vmatprep.subr.mxu0 %v762
  %2238 = vmatpush2.msra.mxu0 %v761
  %2239 = vmatprep.subr.mxu0 %v759
  %2240 = vmatpush2.msra.mxu0 %v758
  %2241 = vmatprep.subr.mxu0 %v756
  %2242 = vmatpush2.msra.mxu0 %v755
  %2243 = vmatprep.subr.mxu0 %v753
  %2244 = vmatpush2.msra.mxu0 %v752
  %2245 = vmatprep.subr.mxu0 %v750
  %2246 = vmatpush2.msra.mxu0 %v749
  %2247 = vmatprep.subr.mxu0 %v747
  %2248 = vmatpush2.msra.mxu0 %v746
  %2249 = vmatprep.subr.mxu0 %v744
  %2250 = vmatpush2.msra.mxu0 %v743
  %2251 = vmatprep.subr.mxu0 %v741
  %2252 = vmatpush2.msra.mxu0 %v740
  %2253 = vmatprep.mubr.f32.mxu0 %v2037
  %2254 = vmatmul.mubr.f32.gmra.mxu0 %v450
  %v2255 = vpop.f32.mrf.mxu0
  %v2256 = vadd.f32 0.0, %v2255
  %v2257 = vpop.f32.mrf.mxu0
  %v2258 = vadd.f32 0.0, %v2257
  %2259 = vdwg.mxu0
  %2260 = vmatprep.subr.mxu0 0.0
  %2261 = vmatpush1.msra.mxu0 %v739
  %2262 = vmatprep.subr.mxu0 0.0
  %2263 = vmatpush1.msra.mxu0 %v736
  %2264 = vmatprep.subr.mxu0 0.0
  %2265 = vmatpush1.msra.mxu0 %v733
  %2266 = vmatprep.subr.mxu0 0.0
  %2267 = vmatpush1.msra.mxu0 %v730
  %2268 = vmatprep.subr.mxu0 0.0
  %2269 = vmatpush1.msra.mxu0 %v727
  %2270 = vmatprep.subr.mxu0 0.0
  %2271 = vmatpush1.msra.mxu0 %v724
  %2272 = vmatprep.subr.mxu0 0.0
  %2273 = vmatpush1.msra.mxu0 %v721
  %2274 = vmatprep.subr.mxu0 0.0
  %2275 = vmatpush1.msra.mxu0 %v718
  %2276 = vmatprep.subr.mxu0 0.0
  %2277 = vmatpush1.msra.mxu0 %v715
  %2278 = vmatprep.subr.mxu0 0.0
  %2279 = vmatpush1.msra.mxu0 %v712
  %2280 = vmatprep.subr.mxu0 0.0
  %2281 = vmatpush1.msra.mxu0 %v709
  %2282 = vmatprep.subr.mxu0 0.0
  %2283 = vmatpush1.msra.mxu0 %v706
  %2284 = vmatprep.subr.mxu0 0.0
  %2285 = vmatpush1.msra.mxu0 %v703
  %2286 = vmatprep.subr.mxu0 0.0
  %2287 = vmatpush1.msra.mxu0 %v700
  %2288 = vmatprep.subr.mxu0 0.0
  %2289 = vmatpush1.msra.mxu0 %v697
  %2290 = vmatprep.subr.mxu0 0.0
  %2291 = vmatpush1.msra.mxu0 %v694
  %2292 = vmatprep.subr.mxu0 0.0
  %2293 = vmatpush2.msra.mxu0 0.0
  %2294 = vmatprep.subr.mxu0 0.0
  %2295 = vmatpush2.msra.mxu0 0.0
  %2296 = vmatprep.subr.mxu0 0.0
  %2297 = vmatpush2.msra.mxu0 0.0
  %2298 = vmatprep.subr.mxu0 0.0
  %2299 = vmatpush2.msra.mxu0 0.0
  %2300 = vmatprep.subr.mxu0 0.0
  %2301 = vmatpush2.msra.mxu0 %v775
  %2302 = vmatprep.subr.mxu0 0.0
  %2303 = vmatpush2.msra.mxu0 %v772
  %2304 = vmatprep.subr.mxu0 0.0
  %2305 = vmatpush2.msra.mxu0 %v769
  %2306 = vmatprep.subr.mxu0 0.0
  %2307 = vmatpush2.msra.mxu0 %v766
  %2308 = vmatprep.subr.mxu0 0.0
  %2309 = vmatpush2.msra.mxu0 %v763
  %2310 = vmatprep.subr.mxu0 0.0
  %2311 = vmatpush2.msra.mxu0 %v760
  %2312 = vmatprep.subr.mxu0 0.0
  %2313 = vmatpush2.msra.mxu0 %v757
  %2314 = vmatprep.subr.mxu0 0.0
  %2315 = vmatpush2.msra.mxu0 %v754
  %2316 = vmatprep.subr.mxu0 0.0
  %2317 = vmatpush2.msra.mxu0 %v751
  %2318 = vmatprep.subr.mxu0 0.0
  %2319 = vmatpush2.msra.mxu0 %v748
  %2320 = vmatprep.subr.mxu0 0.0
  %2321 = vmatpush2.msra.mxu0 %v745
  %2322 = vmatprep.subr.mxu0 0.0
  %2323 = vmatpush2.msra.mxu0 %v742
  %2324 = vmatprep.mubr.f32.mxu0 %v2037
  %2325 = vmatmul.mubr.f32.gmra.mxu0 %v450
  %v2326 = vpop.f32.mrf.mxu0
  %v2327 = vadd.f32 0.0, %v2326
  %v2328 = vpop.f32.mrf.mxu0
  %2329 = vdwg.mxu0
  %2330 = vmatprep.subr.mxu0 %v654
  %2331 = vmatpush1.msra.mxu0 %v653
  %2332 = vmatprep.subr.mxu0 %v651
  %2333 = vmatpush1.msra.mxu0 %v650
  %2334 = vmatprep.subr.mxu0 %v648
  %2335 = vmatpush1.msra.mxu0 %v647
  %2336 = vmatprep.subr.mxu0 %v645
  %2337 = vmatpush1.msra.mxu0 %v644
  %2338 = vmatprep.subr.mxu0 %v642
  %2339 = vmatpush1.msra.mxu0 %v641
  %2340 = vmatprep.subr.mxu0 %v639
  %2341 = vmatpush1.msra.mxu0 %v638
  %2342 = vmatprep.subr.mxu0 %v636
  %2343 = vmatpush1.msra.mxu0 %v635
  %2344 = vmatprep.subr.mxu0 %v633
  %2345 = vmatpush1.msra.mxu0 %v632
  %2346 = vmatprep.subr.mxu0 %v630
  %2347 = vmatpush1.msra.mxu0 %v629
  %2348 = vmatprep.subr.mxu0 %v627
  %2349 = vmatpush1.msra.mxu0 %v626
  %2350 = vmatprep.subr.mxu0 %v624
  %2351 = vmatpush1.msra.mxu0 %v623
  %2352 = vmatprep.subr.mxu0 %v621
  %2353 = vmatpush1.msra.mxu0 %v620
  %2354 = vmatprep.subr.mxu0 %v618
  %2355 = vmatpush1.msra.mxu0 %v617
  %2356 = vmatprep.subr.mxu0 %v615
  %2357 = vmatpush1.msra.mxu0 %v614
  %2358 = vmatprep.subr.mxu0 %v612
  %2359 = vmatpush1.msra.mxu0 %v611
  %2360 = vmatprep.subr.mxu0 %v609
  %2361 = vmatpush1.msra.mxu0 %v608
  %2362 = vmatprep.subr.mxu0 0.0
  %2363 = vmatpush2.msra.mxu0 0.0
  %2364 = vmatprep.subr.mxu0 0.0
  %2365 = vmatpush2.msra.mxu0 0.0
  %2366 = vmatprep.subr.mxu0 0.0
  %2367 = vmatpush2.msra.mxu0 0.0
  %2368 = vmatprep.subr.mxu0 0.0
  %2369 = vmatpush2.msra.mxu0 0.0
  %2370 = vmatprep.subr.mxu0 %v690
  %2371 = vmatpush2.msra.mxu0 %v689
  %2372 = vmatprep.subr.mxu0 %v687
  %2373 = vmatpush2.msra.mxu0 %v686
  %2374 = vmatprep.subr.mxu0 %v684
  %2375 = vmatpush2.msra.mxu0 %v683
  %2376 = vmatprep.subr.mxu0 %v681
  %2377 = vmatpush2.msra.mxu0 %v680
  %2378 = vmatprep.subr.mxu0 %v678
  %2379 = vmatpush2.msra.mxu0 %v677
  %2380 = vmatprep.subr.mxu0 %v675
  %2381 = vmatpush2.msra.mxu0 %v674
  %2382 = vmatprep.subr.mxu0 %v672
  %2383 = vmatpush2.msra.mxu0 %v671
  %2384 = vmatprep.subr.mxu0 %v669
  %2385 = vmatpush2.msra.mxu0 %v668
  %2386 = vmatprep.subr.mxu0 %v666
  %2387 = vmatpush2.msra.mxu0 %v665
  %2388 = vmatprep.subr.mxu0 %v663
  %2389 = vmatpush2.msra.mxu0 %v662
  %2390 = vmatprep.subr.mxu0 %v660
  %2391 = vmatpush2.msra.mxu0 %v659
  %2392 = vmatprep.subr.mxu0 %v657
  %2393 = vmatpush2.msra.mxu0 %v656
  %2394 = vmatprep.mubr.f32.mxu0 %v1602
  %2395 = vmatmul.mubr.f32.gmra.mxu0 %v372
  %v2396 = vpop.f32.mrf.mxu0
  %v2397 = vadd.f32 %v2256, %v2396
  %v2398 = vpop.f32.mrf.mxu0
  %v2399 = vadd.f32 %v2258, %v2398
  %2400 = vdwg.mxu0
  %2401 = vmatprep.subr.mxu0 0.0
  %2402 = vmatpush1.msra.mxu0 %v655
  %2403 = vmatprep.subr.mxu0 0.0
  %2404 = vmatpush1.msra.mxu0 %v652
  %2405 = vmatprep.subr.mxu0 0.0
  %2406 = vmatpush1.msra.mxu0 %v649
  %2407 = vmatprep.subr.mxu0 0.0
  %2408 = vmatpush1.msra.mxu0 %v646
  %2409 = vmatprep.subr.mxu0 0.0
  %2410 = vmatpush1.msra.mxu0 %v643
  %2411 = vmatprep.subr.mxu0 0.0
  %2412 = vmatpush1.msra.mxu0 %v640
  %2413 = vmatprep.subr.mxu0 0.0
  %2414 = vmatpush1.msra.mxu0 %v637
  %2415 = vmatprep.subr.mxu0 0.0
  %2416 = vmatpush1.msra.mxu0 %v634
  %2417 = vmatprep.subr.mxu0 0.0
  %2418 = vmatpush1.msra.mxu0 %v631
  %2419 = vmatprep.subr.mxu0 0.0
  %2420 = vmatpush1.msra.mxu0 %v628
  %2421 = vmatprep.subr.mxu0 0.0
  %2422 = vmatpush1.msra.mxu0 %v625
  %2423 = vmatprep.subr.mxu0 0.0
  %2424 = vmatpush1.msra.mxu0 %v622
  %2425 = vmatprep.subr.mxu0 0.0
  %2426 = vmatpush1.msra.mxu0 %v619
  %2427 = vmatprep.subr.mxu0 0.0
  %2428 = vmatpush1.msra.mxu0 %v616
  %2429 = vmatprep.subr.mxu0 0.0
  %2430 = vmatpush1.msra.mxu0 %v613
  %2431 = vmatprep.subr.mxu0 0.0
  %2432 = vmatpush1.msra.mxu0 %v610
  %2433 = vmatprep.subr.mxu0 0.0
  %2434 = vmatpush2.msra.mxu0 0.0
  %2435 = vmatprep.subr.mxu0 0.0
  %2436 = vmatpush2.msra.mxu0 0.0
  %2437 = vmatprep.subr.mxu0 0.0
  %2438 = vmatpush2.msra.mxu0 0.0
  %2439 = vmatprep.subr.mxu0 0.0
  %2440 = vmatpush2.msra.mxu0 0.0
  %2441 = vmatprep.subr.mxu0 0.0
  %2442 = vmatpush2.msra.mxu0 %v691
  %2443 = vmatprep.subr.mxu0 0.0
  %2444 = vmatpush2.msra.mxu0 %v688
  %2445 = vmatprep.subr.mxu0 0.0
  %2446 = vmatpush2.msra.mxu0 %v685
  %2447 = vmatprep.subr.mxu0 0.0
  %2448 = vmatpush2.msra.mxu0 %v682
  %2449 = vmatprep.subr.mxu0 0.0
  %2450 = vmatpush2.msra.mxu0 %v679
  %2451 = vmatprep.subr.mxu0 0.0
  %2452 = vmatpush2.msra.mxu0 %v676
  %2453 = vmatprep.subr.mxu0 0.0
  %2454 = vmatpush2.msra.mxu0 %v673
  %2455 = vmatprep.subr.mxu0 0.0
  %2456 = vmatpush2.msra.mxu0 %v670
  %2457 = vmatprep.subr.mxu0 0.0
  %2458 = vmatpush2.msra.mxu0 %v667
  %2459 = vmatprep.subr.mxu0 0.0
  %2460 = vmatpush2.msra.mxu0 %v664
  %2461 = vmatprep.subr.mxu0 0.0
  %2462 = vmatpush2.msra.mxu0 %v661
  %2463 = vmatprep.subr.mxu0 0.0
  %2464 = vmatpush2.msra.mxu0 %v658
  %2465 = vmatprep.mubr.f32.mxu0 %v1602
  %2466 = vmatmul.mubr.f32.gmra.mxu0 %v372
  %v2467 = vpop.f32.mrf.mxu0
  %v2468 = vadd.f32 %v2327, %v2467
  %v2469 = vpop.f32.mrf.mxu0
  %2470 = vdwg.mxu0
  %v2472 = vsel %vm861, %v529, 0
  %2474 = vmatprep.subr.mxu0 %v822
  %2475 = vmatpush1.msra.mxu0 %v821
  %2476 = vmatprep.subr.mxu0 %v819
  %2477 = vmatpush1.msra.mxu0 %v818
  %2478 = vmatprep.subr.mxu0 %v816
  %2479 = vmatpush1.msra.mxu0 %v815
  %2480 = vmatprep.subr.mxu0 %v813
  %2481 = vmatpush1.msra.mxu0 %v812
  %2482 = vmatprep.subr.mxu0 %v810
  %2483 = vmatpush1.msra.mxu0 %v809
  %2484 = vmatprep.subr.mxu0 %v807
  %2485 = vmatpush1.msra.mxu0 %v806
  %2486 = vmatprep.subr.mxu0 %v804
  %2487 = vmatpush1.msra.mxu0 %v803
  %2488 = vmatprep.subr.mxu0 %v801
  %2489 = vmatpush1.msra.mxu0 %v800
  %2490 = vmatprep.subr.mxu0 %v798
  %2491 = vmatpush1.msra.mxu0 %v797
  %2492 = vmatprep.subr.mxu0 %v795
  %2493 = vmatpush1.msra.mxu0 %v794
  %2494 = vmatprep.subr.mxu0 %v792
  %2495 = vmatpush1.msra.mxu0 %v791
  %2496 = vmatprep.subr.mxu0 %v789
  %2497 = vmatpush1.msra.mxu0 %v788
  %2498 = vmatprep.subr.mxu0 %v786
  %2499 = vmatpush1.msra.mxu0 %v785
  %2500 = vmatprep.subr.mxu0 %v783
  %2501 = vmatpush1.msra.mxu0 %v782
  %2502 = vmatprep.subr.mxu0 %v780
  %2503 = vmatpush1.msra.mxu0 %v779
  %2504 = vmatprep.subr.mxu0 %v777
  %2505 = vmatpush1.msra.mxu0 %v776
  %2506 = vmatprep.subr.mxu0 0.0
  %2507 = vmatpush2.msra.mxu0 0.0
  %2508 = vmatprep.subr.mxu0 0.0
  %2509 = vmatpush2.msra.mxu0 0.0
  %2510 = vmatprep.subr.mxu0 0.0
  %2511 = vmatpush2.msra.mxu0 0.0
  %2512 = vmatprep.subr.mxu0 0.0
  %2513 = vmatpush2.msra.mxu0 0.0
  %2514 = vmatprep.subr.mxu0 %v858
  %2515 = vmatpush2.msra.mxu0 %v857
  %2516 = vmatprep.subr.mxu0 %v855
  %2517 = vmatpush2.msra.mxu0 %v854
  %2518 = vmatprep.subr.mxu0 %v852
  %2519 = vmatpush2.msra.mxu0 %v851
  %2520 = vmatprep.subr.mxu0 %v849
  %2521 = vmatpush2.msra.mxu0 %v848
  %2522 = vmatprep.subr.mxu0 %v846
  %2523 = vmatpush2.msra.mxu0 %v845
  %2524 = vmatprep.subr.mxu0 %v843
  %2525 = vmatpush2.msra.mxu0 %v842
  %2526 = vmatprep.subr.mxu0 %v840
  %2527 = vmatpush2.msra.mxu0 %v839
  %2528 = vmatprep.subr.mxu0 %v837
  %2529 = vmatpush2.msra.mxu0 %v836
  %2530 = vmatprep.subr.mxu0 %v834
  %2531 = vmatpush2.msra.mxu0 %v833
  %2532 = vmatprep.subr.mxu0 %v831
  %2533 = vmatpush2.msra.mxu0 %v830
  %2534 = vmatprep.subr.mxu0 %v828
  %2535 = vmatpush2.msra.mxu0 %v827
  %2536 = vmatprep.subr.mxu0 %v825
  %2537 = vmatpush2.msra.mxu0 %v824
  %2538 = vmatprep.mubr.f32.mxu0 %v2472
  %2539 = vmatmul.mubr.f32.gmra.mxu0 %v528
  %v2540 = vpop.f32.mrf.mxu0
  %v2541 = vadd.f32 0.0, %v2540
  %v2542 = vpop.f32.mrf.mxu0
  %v2543 = vadd.f32 0.0, %v2542
  %2544 = vdwg.mxu0
  %2545 = vmatprep.subr.mxu0 0.0
  %2546 = vmatpush1.msra.mxu0 %v823
  %2547 = vmatprep.subr.mxu0 0.0
  %2548 = vmatpush1.msra.mxu0 %v820
  %2549 = vmatprep.subr.mxu0 0.0
  %2550 = vmatpush1.msra.mxu0 %v817
  %2551 = vmatprep.subr.mxu0 0.0
  %2552 = vmatpush1.msra.mxu0 %v814
  %2553 = vmatprep.subr.mxu0 0.0
  %2554 = vmatpush1.msra.mxu0 %v811
  %2555 = vmatprep.subr.mxu0 0.0
  %2556 = vmatpush1.msra.mxu0 %v808
  %2557 = vmatprep.subr.mxu0 0.0
  %2558 = vmatpush1.msra.mxu0 %v805
  %2559 = vmatprep.subr.mxu0 0.0
  %2560 = vmatpush1.msra.mxu0 %v802
  %2561 = vmatprep.subr.mxu0 0.0
  %2562 = vmatpush1.msra.mxu0 %v799
  %2563 = vmatprep.subr.mxu0 0.0
  %2564 = vmatpush1.msra.mxu0 %v796
  %2565 = vmatprep.subr.mxu0 0.0
  %2566 = vmatpush1.msra.mxu0 %v793
  %2567 = vmatprep.subr.mxu0 0.0
  %2568 = vmatpush1.msra.mxu0 %v790
  %2569 = vmatprep.subr.mxu0 0.0
  %2570 = vmatpush1.msra.mxu0 %v787
  %2571 = vmatprep.subr.mxu0 0.0
  %2572 = vmatpush1.msra.mxu0 %v784
  %2573 = vmatprep.subr.mxu0 0.0
  %2574 = vmatpush1.msra.mxu0 %v781
  %2575 = vmatprep.subr.mxu0 0.0
  %2576 = vmatpush1.msra.mxu0 %v778
  %2577 = vmatprep.subr.mxu0 0.0
  %2578 = vmatpush2.msra.mxu0 0.0
  %2579 = vmatprep.subr.mxu0 0.0
  %2580 = vmatpush2.msra.mxu0 0.0
  %2581 = vmatprep.subr.mxu0 0.0
  %2582 = vmatpush2.msra.mxu0 0.0
  %2583 = vmatprep.subr.mxu0 0.0
  %2584 = vmatpush2.msra.mxu0 0.0
  %2585 = vmatprep.subr.mxu0 0.0
  %2586 = vmatpush2.msra.mxu0 %v859
  %2587 = vmatprep.subr.mxu0 0.0
  %2588 = vmatpush2.msra.mxu0 %v856
  %2589 = vmatprep.subr.mxu0 0.0
  %2590 = vmatpush2.msra.mxu0 %v853
  %2591 = vmatprep.subr.mxu0 0.0
  %2592 = vmatpush2.msra.mxu0 %v850
  %2593 = vmatprep.subr.mxu0 0.0
  %2594 = vmatpush2.msra.mxu0 %v847
  %2595 = vmatprep.subr.mxu0 0.0
  %2596 = vmatpush2.msra.mxu0 %v844
  %2597 = vmatprep.subr.mxu0 0.0
  %2598 = vmatpush2.msra.mxu0 %v841
  %2599 = vmatprep.subr.mxu0 0.0
  %2600 = vmatpush2.msra.mxu0 %v838
  %2601 = vmatprep.subr.mxu0 0.0
  %2602 = vmatpush2.msra.mxu0 %v835
  %2603 = vmatprep.subr.mxu0 0.0
  %2604 = vmatpush2.msra.mxu0 %v832
  %2605 = vmatprep.subr.mxu0 0.0
  %2606 = vmatpush2.msra.mxu0 %v829
  %2607 = vmatprep.subr.mxu0 0.0
  %2608 = vmatpush2.msra.mxu0 %v826
  %2609 = vmatprep.mubr.f32.mxu0 %v2472
  %2610 = vmatmul.mubr.f32.gmra.mxu0 %v528
  %v2611 = vpop.f32.mrf.mxu0
  %v2612 = vadd.f32 0.0, %v2611
  %v2613 = vpop.f32.mrf.mxu0
  %2614 = vdwg.mxu0
  %v2615 = vadd.f32 %v2397, %v2541
  %v2616 = vadd.f32 %v2399, %v2543
  %v2617 = vadd.f32 %v2468, %v2612
  %v2618 = vadd.f32 %v2615, %v1301
  %v2619 = vadd.f32 %v2616, %v1305
  %v2620 = vadd.f32 %v2617, %v1309
  %v2621 = vmax.f32 %v2618, 0.0
  %v2622 = vmax.f32 %v2619, 0.0
  %v2623 = vmax.f32 %v2620, 0.0
  %2624 = vmatprep.subr.mxu0 %v738
  %2625 = vmatpush1.msra.mxu0 %v737
  %2626 = vmatprep.subr.mxu0 %v735
  %2627 = vmatpush1.msra.mxu0 %v734
  %2628 = vmatprep.subr.mxu0 %v732
  %2629 = vmatpush1.msra.mxu0 %v731
  %2630 = vmatprep.subr.mxu0 %v729
  %2631 = vmatpush1.msra.mxu0 %v728
  %2632 = vmatprep.subr.mxu0 %v726
  %2633 = vmatpush1.msra.mxu0 %v725
  %2634 = vmatprep.subr.mxu0 %v723
  %2635 = vmatpush1.msra.mxu0 %v722
  %2636 = vmatprep.subr.mxu0 %v720
  %2637 = vmatpush1.msra.mxu0 %v719
  %2638 = vmatprep.subr.mxu0 %v717
  %2639 = vmatpush1.msra.mxu0 %v716
  %2640 = vmatprep.subr.mxu0 %v714
  %2641 = vmatpush1.msra.mxu0 %v713
  %2642 = vmatprep.subr.mxu0 %v711
  %2643 = vmatpush1.msra.mxu0 %v710
  %2644 = vmatprep.subr.mxu0 %v708
  %2645 = vmatpush1.msra.mxu0 %v707
  %2646 = vmatprep.subr.mxu0 %v705
  %2647 = vmatpush1.msra.mxu0 %v704
  %2648 = vmatprep.subr.mxu0 %v702
  %2649 = vmatpush1.msra.mxu0 %v701
  %2650 = vmatprep.subr.mxu0 %v699
  %2651 = vmatpush1.msra.mxu0 %v698
  %2652 = vmatprep.subr.mxu0 %v696
  %2653 = vmatpush1.msra.mxu0 %v695
  %2654 = vmatprep.subr.mxu0 %v693
  %2655 = vmatpush1.msra.mxu0 %v692
  %2656 = vmatprep.subr.mxu0 0.0
  %2657 = vmatpush2.msra.mxu0 0.0
  %2658 = vmatprep.subr.mxu0 0.0
  %2659 = vmatpush2.msra.mxu0 0.0
  %2660 = vmatprep.subr.mxu0 0.0
  %2661 = vmatpush2.msra.mxu0 0.0
  %2662 = vmatprep.subr.mxu0 0.0
  %2663 = vmatpush2.msra.mxu0 0.0
  %2664 = vmatprep.subr.mxu0 %v774
  %2665 = vmatpush2.msra.mxu0 %v773
  %2666 = vmatprep.subr.mxu0 %v771
  %2667 = vmatpush2.msra.mxu0 %v770
  %2668 = vmatprep.subr.mxu0 %v768
  %2669 = vmatpush2.msra.mxu0 %v767
  %2670 = vmatprep.subr.mxu0 %v765
  %2671 = vmatpush2.msra.mxu0 %v764
  %2672 = vmatprep.subr.mxu0 %v762
  %2673 = vmatpush2.msra.mxu0 %v761
  %2674 = vmatprep.subr.mxu0 %v759
  %2675 = vmatpush2.msra.mxu0 %v758
  %2676 = vmatprep.subr.mxu0 %v756
  %2677 = vmatpush2.msra.mxu0 %v755
  %2678 = vmatprep.subr.mxu0 %v753
  %2679 = vmatpush2.msra.mxu0 %v752
  %2680 = vmatprep.subr.mxu0 %v750
  %2681 = vmatpush2.msra.mxu0 %v749
  %2682 = vmatprep.subr.mxu0 %v747
  %2683 = vmatpush2.msra.mxu0 %v746
  %2684 = vmatprep.subr.mxu0 %v744
  %2685 = vmatpush2.msra.mxu0 %v743
  %2686 = vmatprep.subr.mxu0 %v741
  %2687 = vmatpush2.msra.mxu0 %v740
  %2688 = vmatprep.mubr.f32.mxu0 %v2472
  %2689 = vmatmul.mubr.f32.gmra.mxu0 %v528
  %v2690 = vpop.f32.mrf.mxu0
  %v2691 = vadd.f32 0.0, %v2690
  %v2692 = vpop.f32.mrf.mxu0
  %v2693 = vadd.f32 0.0, %v2692
  %2694 = vdwg.mxu0
  %2695 = vmatprep.subr.mxu0 0.0
  %2696 = vmatpush1.msra.mxu0 %v739
  %2697 = vmatprep.subr.mxu0 0.0
  %2698 = vmatpush1.msra.mxu0 %v736
  %2699 = vmatprep.subr.mxu0 0.0
  %2700 = vmatpush1.msra.mxu0 %v733
  %2701 = vmatprep.subr.mxu0 0.0
  %2702 = vmatpush1.msra.mxu0 %v730
  %2703 = vmatprep.subr.mxu0 0.0
  %2704 = vmatpush1.msra.mxu0 %v727
  %2705 = vmatprep.subr.mxu0 0.0
  %2706 = vmatpush1.msra.mxu0 %v724
  %2707 = vmatprep.subr.mxu0 0.0
  %2708 = vmatpush1.msra.mxu0 %v721
  %2709 = vmatprep.subr.mxu0 0.0
  %2710 = vmatpush1.msra.mxu0 %v718
  %2711 = vmatprep.subr.mxu0 0.0
  %2712 = vmatpush1.msra.mxu0 %v715
  %2713 = vmatprep.subr.mxu0 0.0
  %2714 = vmatpush1.msra.mxu0 %v712
  %2715 = vmatprep.subr.mxu0 0.0
  %2716 = vmatpush1.msra.mxu0 %v709
  %2717 = vmatprep.subr.mxu0 0.0
  %2718 = vmatpush1.msra.mxu0 %v706
  %2719 = vmatprep.subr.mxu0 0.0
  %2720 = vmatpush1.msra.mxu0 %v703
  %2721 = vmatprep.subr.mxu0 0.0
  %2722 = vmatpush1.msra.mxu0 %v700
  %2723 = vmatprep.subr.mxu0 0.0
  %2724 = vmatpush1.msra.mxu0 %v697
  %2725 = vmatprep.subr.mxu0 0.0
  %2726 = vmatpush1.msra.mxu0 %v694
  %2727 = vmatprep.subr.mxu0 0.0
  %2728 = vmatpush2.msra.mxu0 0.0
  %2729 = vmatprep.subr.mxu0 0.0
  %2730 = vmatpush2.msra.mxu0 0.0
  %2731 = vmatprep.subr.mxu0 0.0
  %2732 = vmatpush2.msra.mxu0 0.0
  %2733 = vmatprep.subr.mxu0 0.0
  %2734 = vmatpush2.msra.mxu0 0.0
  %2735 = vmatprep.subr.mxu0 0.0
  %2736 = vmatpush2.msra.mxu0 %v775
  %2737 = vmatprep.subr.mxu0 0.0
  %2738 = vmatpush2.msra.mxu0 %v772
  %2739 = vmatprep.subr.mxu0 0.0
  %2740 = vmatpush2.msra.mxu0 %v769
  %2741 = vmatprep.subr.mxu0 0.0
  %2742 = vmatpush2.msra.mxu0 %v766
  %2743 = vmatprep.subr.mxu0 0.0
  %2744 = vmatpush2.msra.mxu0 %v763
  %2745 = vmatprep.subr.mxu0 0.0
  %2746 = vmatpush2.msra.mxu0 %v760
  %2747 = vmatprep.subr.mxu0 0.0
  %2748 = vmatpush2.msra.mxu0 %v757
  %2749 = vmatprep.subr.mxu0 0.0
  %2750 = vmatpush2.msra.mxu0 %v754
  %2751 = vmatprep.subr.mxu0 0.0
  %2752 = vmatpush2.msra.mxu0 %v751
  %2753 = vmatprep.subr.mxu0 0.0
  %2754 = vmatpush2.msra.mxu0 %v748
  %2755 = vmatprep.subr.mxu0 0.0
  %2756 = vmatpush2.msra.mxu0 %v745
  %2757 = vmatprep.subr.mxu0 0.0
  %2758 = vmatpush2.msra.mxu0 %v742
  %2759 = vmatprep.mubr.f32.mxu0 %v2472
  %2760 = vmatmul.mubr.f32.gmra.mxu0 %v528
  %v2761 = vpop.f32.mrf.mxu0
  %v2762 = vadd.f32 0.0, %v2761
  %v2763 = vpop.f32.mrf.mxu0
  %2764 = vdwg.mxu0
  %2765 = vmatprep.subr.mxu0 %v654
  %2766 = vmatpush1.msra.mxu0 %v653
  %2767 = vmatprep.subr.mxu0 %v651
  %2768 = vmatpush1.msra.mxu0 %v650
  %2769 = vmatprep.subr.mxu0 %v648
  %2770 = vmatpush1.msra.mxu0 %v647
  %2771 = vmatprep.subr.mxu0 %v645
  %2772 = vmatpush1.msra.mxu0 %v644
  %2773 = vmatprep.subr.mxu0 %v642
  %2774 = vmatpush1.msra.mxu0 %v641
  %2775 = vmatprep.subr.mxu0 %v639
  %2776 = vmatpush1.msra.mxu0 %v638
  %2777 = vmatprep.subr.mxu0 %v636
  %2778 = vmatpush1.msra.mxu0 %v635
  %2779 = vmatprep.subr.mxu0 %v633
  %2780 = vmatpush1.msra.mxu0 %v632
  %2781 = vmatprep.subr.mxu0 %v630
  %2782 = vmatpush1.msra.mxu0 %v629
  %2783 = vmatprep.subr.mxu0 %v627
  %2784 = vmatpush1.msra.mxu0 %v626
  %2785 = vmatprep.subr.mxu0 %v624
  %2786 = vmatpush1.msra.mxu0 %v623
  %2787 = vmatprep.subr.mxu0 %v621
  %2788 = vmatpush1.msra.mxu0 %v620
  %2789 = vmatprep.subr.mxu0 %v618
  %2790 = vmatpush1.msra.mxu0 %v617
  %2791 = vmatprep.subr.mxu0 %v615
  %2792 = vmatpush1.msra.mxu0 %v614
  %2793 = vmatprep.subr.mxu0 %v612
  %2794 = vmatpush1.msra.mxu0 %v611
  %2795 = vmatprep.subr.mxu0 %v609
  %2796 = vmatpush1.msra.mxu0 %v608
  %2797 = vmatprep.subr.mxu0 0.0
  %2798 = vmatpush2.msra.mxu0 0.0
  %2799 = vmatprep.subr.mxu0 0.0
  %2800 = vmatpush2.msra.mxu0 0.0
  %2801 = vmatprep.subr.mxu0 0.0
  %2802 = vmatpush2.msra.mxu0 0.0
  %2803 = vmatprep.subr.mxu0 0.0
  %2804 = vmatpush2.msra.mxu0 0.0
  %2805 = vmatprep.subr.mxu0 %v690
  %2806 = vmatpush2.msra.mxu0 %v689
  %2807 = vmatprep.subr.mxu0 %v687
  %2808 = vmatpush2.msra.mxu0 %v686
  %2809 = vmatprep.subr.mxu0 %v684
  %2810 = vmatpush2.msra.mxu0 %v683
  %2811 = vmatprep.subr.mxu0 %v681
  %2812 = vmatpush2.msra.mxu0 %v680
  %2813 = vmatprep.subr.mxu0 %v678
  %2814 = vmatpush2.msra.mxu0 %v677
  %2815 = vmatprep.subr.mxu0 %v675
  %2816 = vmatpush2.msra.mxu0 %v674
  %2817 = vmatprep.subr.mxu0 %v672
  %2818 = vmatpush2.msra.mxu0 %v671
  %2819 = vmatprep.subr.mxu0 %v669
  %2820 = vmatpush2.msra.mxu0 %v668
  %2821 = vmatprep.subr.mxu0 %v666
  %2822 = vmatpush2.msra.mxu0 %v665
  %2823 = vmatprep.subr.mxu0 %v663
  %2824 = vmatpush2.msra.mxu0 %v662
  %2825 = vmatprep.subr.mxu0 %v660
  %2826 = vmatpush2.msra.mxu0 %v659
  %2827 = vmatprep.subr.mxu0 %v657
  %2828 = vmatpush2.msra.mxu0 %v656
  %2829 = vmatprep.mubr.f32.mxu0 %v2037
  %2830 = vmatmul.mubr.f32.gmra.mxu0 %v450
  %v2831 = vpop.f32.mrf.mxu0
  %v2832 = vadd.f32 %v2691, %v2831
  %v2833 = vpop.f32.mrf.mxu0
  %v2834 = vadd.f32 %v2693, %v2833
  %2835 = vdwg.mxu0
  %2836 = vmatprep.subr.mxu0 0.0
  %2837 = vmatpush1.msra.mxu0 %v655
  %2838 = vmatprep.subr.mxu0 0.0
  %2839 = vmatpush1.msra.mxu0 %v652
  %2840 = vmatprep.subr.mxu0 0.0
  %2841 = vmatpush1.msra.mxu0 %v649
  %2842 = vmatprep.subr.mxu0 0.0
  %2843 = vmatpush1.msra.mxu0 %v646
  %2844 = vmatprep.subr.mxu0 0.0
  %2845 = vmatpush1.msra.mxu0 %v643
  %2846 = vmatprep.subr.mxu0 0.0
  %2847 = vmatpush1.msra.mxu0 %v640
  %2848 = vmatprep.subr.mxu0 0.0
  %2849 = vmatpush1.msra.mxu0 %v637
  %2850 = vmatprep.subr.mxu0 0.0
  %2851 = vmatpush1.msra.mxu0 %v634
  %2852 = vmatprep.subr.mxu0 0.0
  %2853 = vmatpush1.msra.mxu0 %v631
  %2854 = vmatprep.subr.mxu0 0.0
  %2855 = vmatpush1.msra.mxu0 %v628
  %2856 = vmatprep.subr.mxu0 0.0
  %2857 = vmatpush1.msra.mxu0 %v625
  %2858 = vmatprep.subr.mxu0 0.0
  %2859 = vmatpush1.msra.mxu0 %v622
  %2860 = vmatprep.subr.mxu0 0.0
  %2861 = vmatpush1.msra.mxu0 %v619
  %2862 = vmatprep.subr.mxu0 0.0
  %2863 = vmatpush1.msra.mxu0 %v616
  %2864 = vmatprep.subr.mxu0 0.0
  %2865 = vmatpush1.msra.mxu0 %v613
  %2866 = vmatprep.subr.mxu0 0.0
  %2867 = vmatpush1.msra.mxu0 %v610
  %2868 = vmatprep.subr.mxu0 0.0
  %2869 = vmatpush2.msra.mxu0 0.0
  %2870 = vmatprep.subr.mxu0 0.0
  %2871 = vmatpush2.msra.mxu0 0.0
  %2872 = vmatprep.subr.mxu0 0.0
  %2873 = vmatpush2.msra.mxu0 0.0
  %2874 = vmatprep.subr.mxu0 0.0
  %2875 = vmatpush2.msra.mxu0 0.0
  %2876 = vmatprep.subr.mxu0 0.0
  %2877 = vmatpush2.msra.mxu0 %v691
  %2878 = vmatprep.subr.mxu0 0.0
  %2879 = vmatpush2.msra.mxu0 %v688
  %2880 = vmatprep.subr.mxu0 0.0
  %2881 = vmatpush2.msra.mxu0 %v685
  %2882 = vmatprep.subr.mxu0 0.0
  %2883 = vmatpush2.msra.mxu0 %v682
  %2884 = vmatprep.subr.mxu0 0.0
  %2885 = vmatpush2.msra.mxu0 %v679
  %2886 = vmatprep.subr.mxu0 0.0
  %2887 = vmatpush2.msra.mxu0 %v676
  %2888 = vmatprep.subr.mxu0 0.0
  %2889 = vmatpush2.msra.mxu0 %v673
  %2890 = vmatprep.subr.mxu0 0.0
  %2891 = vmatpush2.msra.mxu0 %v670
  %2892 = vmatprep.subr.mxu0 0.0
  %2893 = vmatpush2.msra.mxu0 %v667
  %2894 = vmatprep.subr.mxu0 0.0
  %2895 = vmatpush2.msra.mxu0 %v664
  %2896 = vmatprep.subr.mxu0 0.0
  %2897 = vmatpush2.msra.mxu0 %v661
  %2898 = vmatprep.subr.mxu0 0.0
  %2899 = vmatpush2.msra.mxu0 %v658
  %2900 = vmatprep.mubr.f32.mxu0 %v2037
  %2901 = vmatmul.mubr.f32.gmra.mxu0 %v450
  %v2902 = vpop.f32.mrf.mxu0
  %v2903 = vadd.f32 %v2762, %v2902
  %v2904 = vpop.f32.mrf.mxu0
  %2905 = vdwg.mxu0
  %v2907 = vsel %vm861, %v607, 0
  %2909 = vmatprep.subr.mxu0 %v822
  %2910 = vmatpush1.msra.mxu0 %v821
  %2911 = vmatprep.subr.mxu0 %v819
  %2912 = vmatpush1.msra.mxu0 %v818
  %2913 = vmatprep.subr.mxu0 %v816
  %2914 = vmatpush1.msra.mxu0 %v815
  %2915 = vmatprep.subr.mxu0 %v813
  %2916 = vmatpush1.msra.mxu0 %v812
  %2917 = vmatprep.subr.mxu0 %v810
  %2918 = vmatpush1.msra.mxu0 %v809
  %2919 = vmatprep.subr.mxu0 %v807
  %2920 = vmatpush1.msra.mxu0 %v806
  %2921 = vmatprep.subr.mxu0 %v804
  %2922 = vmatpush1.msra.mxu0 %v803
  %2923 = vmatprep.subr.mxu0 %v801
  %2924 = vmatpush1.msra.mxu0 %v800
  %2925 = vmatprep.subr.mxu0 %v798
  %2926 = vmatpush1.msra.mxu0 %v797
  %2927 = vmatprep.subr.mxu0 %v795
  %2928 = vmatpush1.msra.mxu0 %v794
  %2929 = vmatprep.subr.mxu0 %v792
  %2930 = vmatpush1.msra.mxu0 %v791
  %2931 = vmatprep.subr.mxu0 %v789
  %2932 = vmatpush1.msra.mxu0 %v788
  %2933 = vmatprep.subr.mxu0 %v786
  %2934 = vmatpush1.msra.mxu0 %v785
  %2935 = vmatprep.subr.mxu0 %v783
  %2936 = vmatpush1.msra.mxu0 %v782
  %2937 = vmatprep.subr.mxu0 %v780
  %2938 = vmatpush1.msra.mxu0 %v779
  %2939 = vmatprep.subr.mxu0 %v777
  %2940 = vmatpush1.msra.mxu0 %v776
  %2941 = vmatprep.subr.mxu0 0.0
  %2942 = vmatpush2.msra.mxu0 0.0
  %2943 = vmatprep.subr.mxu0 0.0
  %2944 = vmatpush2.msra.mxu0 0.0
  %2945 = vmatprep.subr.mxu0 0.0
  %2946 = vmatpush2.msra.mxu0 0.0
  %2947 = vmatprep.subr.mxu0 0.0
  %2948 = vmatpush2.msra.mxu0 0.0
  %2949 = vmatprep.subr.mxu0 %v858
  %2950 = vmatpush2.msra.mxu0 %v857
  %2951 = vmatprep.subr.mxu0 %v855
  %2952 = vmatpush2.msra.mxu0 %v854
  %2953 = vmatprep.subr.mxu0 %v852
  %2954 = vmatpush2.msra.mxu0 %v851
  %2955 = vmatprep.subr.mxu0 %v849
  %2956 = vmatpush2.msra.mxu0 %v848
  %2957 = vmatprep.subr.mxu0 %v846
  %2958 = vmatpush2.msra.mxu0 %v845
  %2959 = vmatprep.subr.mxu0 %v843
  %2960 = vmatpush2.msra.mxu0 %v842
  %2961 = vmatprep.subr.mxu0 %v840
  %2962 = vmatpush2.msra.mxu0 %v839
  %2963 = vmatprep.subr.mxu0 %v837
  %2964 = vmatpush2.msra.mxu0 %v836
  %2965 = vmatprep.subr.mxu0 %v834
  %2966 = vmatpush2.msra.mxu0 %v833
  %2967 = vmatprep.subr.mxu0 %v831
  %2968 = vmatpush2.msra.mxu0 %v830
  %2969 = vmatprep.subr.mxu0 %v828
  %2970 = vmatpush2.msra.mxu0 %v827
  %2971 = vmatprep.subr.mxu0 %v825
  %2972 = vmatpush2.msra.mxu0 %v824
  %2973 = vmatprep.mubr.f32.mxu0 %v2907
  %2974 = vmatmul.mubr.f32.gmra.mxu0 %v606
  %v2975 = vpop.f32.mrf.mxu0
  %v2976 = vadd.f32 0.0, %v2975
  %v2977 = vpop.f32.mrf.mxu0
  %v2978 = vadd.f32 0.0, %v2977
  %2979 = vdwg.mxu0
  %2980 = vmatprep.subr.mxu0 0.0
  %2981 = vmatpush1.msra.mxu0 %v823
  %2982 = vmatprep.subr.mxu0 0.0
  %2983 = vmatpush1.msra.mxu0 %v820
  %2984 = vmatprep.subr.mxu0 0.0
  %2985 = vmatpush1.msra.mxu0 %v817
  %2986 = vmatprep.subr.mxu0 0.0
  %2987 = vmatpush1.msra.mxu0 %v814
  %2988 = vmatprep.subr.mxu0 0.0
  %2989 = vmatpush1.msra.mxu0 %v811
  %2990 = vmatprep.subr.mxu0 0.0
  %2991 = vmatpush1.msra.mxu0 %v808
  %2992 = vmatprep.subr.mxu0 0.0
  %2993 = vmatpush1.msra.mxu0 %v805
  %2994 = vmatprep.subr.mxu0 0.0
  %2995 = vmatpush1.msra.mxu0 %v802
  %2996 = vmatprep.subr.mxu0 0.0
  %2997 = vmatpush1.msra.mxu0 %v799
  %2998 = vmatprep.subr.mxu0 0.0
  %2999 = vmatpush1.msra.mxu0 %v796
  %3000 = vmatprep.subr.mxu0 0.0
  %3001 = vmatpush1.msra.mxu0 %v793
  %3002 = vmatprep.subr.mxu0 0.0
  %3003 = vmatpush1.msra.mxu0 %v790
  %3004 = vmatprep.subr.mxu0 0.0
  %3005 = vmatpush1.msra.mxu0 %v787
  %3006 = vmatprep.subr.mxu0 0.0
  %3007 = vmatpush1.msra.mxu0 %v784
  %3008 = vmatprep.subr.mxu0 0.0
  %3009 = vmatpush1.msra.mxu0 %v781
  %3010 = vmatprep.subr.mxu0 0.0
  %3011 = vmatpush1.msra.mxu0 %v778
  %3012 = vmatprep.subr.mxu0 0.0
  %3013 = vmatpush2.msra.mxu0 0.0
  %3014 = vmatprep.subr.mxu0 0.0
  %3015 = vmatpush2.msra.mxu0 0.0
  %3016 = vmatprep.subr.mxu0 0.0
  %3017 = vmatpush2.msra.mxu0 0.0
  %3018 = vmatprep.subr.mxu0 0.0
  %3019 = vmatpush2.msra.mxu0 0.0
  %3020 = vmatprep.subr.mxu0 0.0
  %3021 = vmatpush2.msra.mxu0 %v859
  %3022 = vmatprep.subr.mxu0 0.0
  %3023 = vmatpush2.msra.mxu0 %v856
  %3024 = vmatprep.subr.mxu0 0.0
  %3025 = vmatpush2.msra.mxu0 %v853
  %3026 = vmatprep.subr.mxu0 0.0
  %3027 = vmatpush2.msra.mxu0 %v850
  %3028 = vmatprep.subr.mxu0 0.0
  %3029 = vmatpush2.msra.mxu0 %v847
  %3030 = vmatprep.subr.mxu0 0.0
  %3031 = vmatpush2.msra.mxu0 %v844
  %3032 = vmatprep.subr.mxu0 0.0
  %3033 = vmatpush2.msra.mxu0 %v841
  %3034 = vmatprep.subr.mxu0 0.0
  %3035 = vmatpush2.msra.mxu0 %v838
  %3036 = vmatprep.subr.mxu0 0.0
  %3037 = vmatpush2.msra.mxu0 %v835
  %3038 = vmatprep.subr.mxu0 0.0
  %3039 = vmatpush2.msra.mxu0 %v832
  %3040 = vmatprep.subr.mxu0 0.0
  %3041 = vmatpush2.msra.mxu0 %v829
  %3042 = vmatprep.subr.mxu0 0.0
  %3043 = vmatpush2.msra.mxu0 %v826
  %3044 = vmatprep.mubr.f32.mxu0 %v2907
  %3045 = vmatmul.mubr.f32.gmra.mxu0 %v606
  %v3046 = vpop.f32.mrf.mxu0
  %v3047 = vadd.f32 0.0, %v3046
  %v3048 = vpop.f32.mrf.mxu0
  %3049 = vdwg.mxu0
  %v3050 = vadd.f32 %v2832, %v2976
  %v3051 = vadd.f32 %v2834, %v2978
  %v3052 = vadd.f32 %v2903, %v3047
  %v3053 = vadd.f32 %v3050, %v1301
  %v3054 = vadd.f32 %v3051, %v1305
  %v3055 = vadd.f32 %v3052, %v1309
  %v3056 = vmax.f32 %v3053, 0.0
  %v3057 = vmax.f32 %v3054, 0.0
  %v3058 = vmax.f32 %v3055, 0.0
  %v3059 = vld [vmem:[%s5] sm:$0xff]
  %v3060 = vld [vmem:[%s5 + $0x8] sm:$0xff]
  %v3061 = vld [vmem:[%s5 + $0x10] sm:$0xff]
  %v3062 = vld [vmem:[%s5 + $0x18] sm:$0xff]
  %v3063 = vld [vmem:[%s5 + $0x20] sm:$0xff]
  %v3064 = vld [vmem:[%s5 + $0x28] sm:$0xff]
  %v3065 = vld [vmem:[%s5 + $0x30] sm:$0xff]
  %v3066 = vld [vmem:[%s5 + $0x38] sm:$0xff]
  %v3067 = vld [vmem:[%s5 + $0x40] sm:$0xff]
  %v3068 = vld [vmem:[%s5 + $0x48] sm:$0xff]
  %v3069 = vld [vmem:[%s5 + $0x50] sm:$0xff]
  %v3070 = vld [vmem:[%s5 + $0x58] sm:$0xff]
  %v3071 = vld [vmem:[%s5 + $0x60] sm:$0xff]
  %v3072 = vld [vmem:[%s5 + $0x68] sm:$0xff]
  %v3073 = vld [vmem:[%s5 + $0x70] sm:$0xff]
  %v3074 = vld [vmem:[%s5 + $0x78] sm:$0xff]
  %v3075 = vld [vmem:[%s5 + $0x80] sm:$0xff]
  %v3076 = vld [vmem:[%s5 + $0x88] sm:$0xff]
  %v3077 = vld [vmem:[%s5 + $0x90] sm:$0xff]
  %v3078 = vld [vmem:[%s5 + $0x98] sm:$0xff]
  %v3079 = vld [vmem:[%s5 + $0xa0] sm:$0xff]
  %v3080 = vld [vmem:[%s5 + $0xa8] sm:$0xff]
  %v3081 = vld [vmem:[%s5 + $0xb0] sm:$0xff]
  %v3082 = vld [vmem:[%s5 + $0xb8] sm:$0xff]
  %v3083 = vld [vmem:[%s5 + $0xc0] sm:$0xff]
  %v3084 = vld [vmem:[%s5 + $0xc8] sm:$0xff]
  %v3085 = vld [vmem:[%s5 + $0xd0] sm:$0xff]
  %v3086 = vld [vmem:[%s5 + $0xd8] sm:$0xff]
  %v3087 = vld [vmem:[%s5 + $0xe0] sm:$0xff]
  %v3088 = vld [vmem:[%s5 + $0xe8] sm:$0xff]
  %v3089 = vld [vmem:[%s5 + $0xf0] sm:$0xff]
  %v3090 = vld [vmem:[%s5 + $0xf8] sm:$0xff]
  %v3091 = vld [vmem:[%s5 + $0x100] sm:$0xff]
  %v3092 = vld [vmem:[%s5 + $0x108] sm:$0xff]
  %v3093 = vld [vmem:[%s5 + $0x110] sm:$0xff]
  %v3094 = vld [vmem:[%s5 + $0x118] sm:$0xff]
  %v3095 = vld [vmem:[%s5 + $0x120] sm:$0xff]
  %v3096 = vld [vmem:[%s5 + $0x128] sm:$0xff]
  %v3097 = vld [vmem:[%s5 + $0x130] sm:$0xff]
  %v3098 = vld [vmem:[%s5 + $0x138] sm:$0xff]
  %v3099 = vld [vmem:[%s5 + $0x140] sm:$0xff]
  %v3100 = vld [vmem:[%s5 + $0x148] sm:$0xff]
  %v3101 = vld [vmem:[%s5 + $0x150] sm:$0xff]
  %v3102 = vld [vmem:[%s5 + $0x158] sm:$0xff]
  %v3103 = vld [vmem:[%s5 + $0x160] sm:$0xff]
  %v3104 = vld [vmem:[%s5 + $0x168] sm:$0xff]
  %v3105 = vld [vmem:[%s5 + $0x170] sm:$0xff]
  %v3106 = vld [vmem:[%s5 + $0x178] sm:$0xff]
  %v3107 = vld [vmem:[%s5 + $0x180] sm:$0xff]
  %v3108 = vld [vmem:[%s5 + $0x188] sm:$0xff]
  %v3109 = vld [vmem:[%s5 + $0x190] sm:$0xff]
  %v3110 = vld [vmem:[%s5 + $0x198] sm:$0xff]
  %v3111 = vld [vmem:[%s5 + $0x1a0] sm:$0xff]
  %v3112 = vld [vmem:[%s5 + $0x1a8] sm:$0xff]
  %v3113 = vld [vmem:[%s5 + $0x1b0] sm:$0xff]
  %v3114 = vld [vmem:[%s5 + $0x1b8] sm:$0xff]
  %v3115 = vld [vmem:[%s5 + $0x1c0] sm:$0xff]
  %v3116 = vld [vmem:[%s5 + $0x1c8] sm:$0xff]
  %v3117 = vld [vmem:[%s5 + $0x1d0] sm:$0xff]
  %v3118 = vld [vmem:[%s5 + $0x1d8] sm:$0xff]
  %v3119 = vld [vmem:[%s5 + $0x1e0] sm:$0xff]
  %v3120 = vld [vmem:[%s5 + $0x1e8] sm:$0xff]
  %v3121 = vld [vmem:[%s5 + $0x1f0] sm:$0xff]
  %v3122 = vld [vmem:[%s5 + $0x1f8] sm:$0xff]
  %v3123 = vld [vmem:[%s5 + $0x200] sm:$0xff]
  %v3124 = vld [vmem:[%s5 + $0x208] sm:$0xff]
  %v3125 = vld [vmem:[%s5 + $0x210] sm:$0xff]
  %v3126 = vld [vmem:[%s5 + $0x218] sm:$0xff]
  %v3127 = vld [vmem:[%s5 + $0x220] sm:$0xff]
  %v3128 = vld [vmem:[%s5 + $0x228] sm:$0xff]
  %v3129 = vld [vmem:[%s5 + $0x230] sm:$0xff]
  %v3130 = vld [vmem:[%s5 + $0x238] sm:$0xff]
  %v3131 = vld [vmem:[%s5 + $0x240] sm:$0xff]
  %v3132 = vld [vmem:[%s5 + $0x248] sm:$0xff]
  %v3133 = vld [vmem:[%s5 + $0x250] sm:$0xff]
  %v3134 = vld [vmem:[%s5 + $0x258] sm:$0xff]
  %v3135 = vld [vmem:[%s5 + $0x260] sm:$0xff]
  %v3136 = vld [vmem:[%s5 + $0x268] sm:$0xff]
  %v3137 = vld [vmem:[%s5 + $0x270] sm:$0xff]
  %v3138 = vld [vmem:[%s5 + $0x278] sm:$0xff]
  %v3139 = vld [vmem:[%s5 + $0x280] sm:$0xff]
  %v3140 = vld [vmem:[%s5 + $0x288] sm:$0xff]
  %v3141 = vld [vmem:[%s5 + $0x290] sm:$0xff]
  %v3142 = vld [vmem:[%s5 + $0x298] sm:$0xff]
  %v3143 = vld [vmem:[%s5 + $0x2a0] sm:$0xff]
  %v3144 = vld [vmem:[%s5 + $0x2a8] sm:$0xff]
  %v3145 = vld [vmem:[%s5 + $0x2b0] sm:$0xff]
  %v3146 = vld [vmem:[%s5 + $0x2b8] sm:$0xff]
  %v3147 = vld [vmem:[%s5 + $0x2c0] sm:$0xff]
  %v3148 = vld [vmem:[%s5 + $0x2c8] sm:$0xff]
  %v3149 = vld [vmem:[%s5 + $0x2d0] sm:$0xff]
  %v3150 = vld [vmem:[%s5 + $0x2d8] sm:$0xff]
  %v3151 = vld [vmem:[%s5 + $0x2e0] sm:$0xff]
  %v3152 = vld [vmem:[%s5 + $0x2e8] sm:$0xff]
  %v3153 = vld [vmem:[%s5 + $0x2f0] sm:$0xff]
  %v3154 = vld [vmem:[%s5 + $0x2f8] sm:$0xff]
  %v3155 = vld [vmem:[%s5 + $0x300] sm:$0xff]
  %v3156 = vld [vmem:[%s5 + $0x308] sm:$0xff]
  %v3157 = vld [vmem:[%s5 + $0x310] sm:$0xff]
  %v3158 = vld [vmem:[%s5 + $0x318] sm:$0xff]
  %v3159 = vld [vmem:[%s5 + $0x320] sm:$0xff]
  %v3160 = vld [vmem:[%s5 + $0x328] sm:$0xff]
  %v3161 = vld [vmem:[%s5 + $0x330] sm:$0xff]
  %v3162 = vld [vmem:[%s5 + $0x338] sm:$0xff]
  %v3163 = vld [vmem:[%s5 + $0x340] sm:$0xff]
  %v3164 = vld [vmem:[%s5 + $0x348] sm:$0xff]
  %v3165 = vld [vmem:[%s5 + $0x350] sm:$0xff]
  %v3166 = vld [vmem:[%s5 + $0x358] sm:$0xff]
  %v3167 = vld [vmem:[%s5 + $0x360] sm:$0xff]
  %v3168 = vld [vmem:[%s5 + $0x368] sm:$0xff]
  %v3169 = vld [vmem:[%s5 + $0x370] sm:$0xff]
  %v3170 = vld [vmem:[%s5 + $0x378] sm:$0xff]
  %v3171 = vld [vmem:[%s5 + $0x380] sm:$0xff]
  %v3172 = vld [vmem:[%s5 + $0x388] sm:$0xff]
  %v3173 = vld [vmem:[%s5 + $0x390] sm:$0xff]
  %v3174 = vld [vmem:[%s5 + $0x398] sm:$0xff]
  %v3175 = vld [vmem:[%s5 + $0x3a0] sm:$0xff]
  %v3176 = vld [vmem:[%s5 + $0x3a8] sm:$0xff]
  %v3177 = vld [vmem:[%s5 + $0x3b0] sm:$0xff]
  %v3178 = vld [vmem:[%s5 + $0x3b8] sm:$0xff]
  %v3179 = vld [vmem:[%s5 + $0x3c0] sm:$0xff]
  %v3180 = vld [vmem:[%s5 + $0x3c8] sm:$0xff]
  %v3181 = vld [vmem:[%s5 + $0x3d0] sm:$0xff]
  %v3182 = vld [vmem:[%s5 + $0x3d8] sm:$0xff]
  %v3183 = vld [vmem:[%s5 + $0x3e0] sm:$0xff]
  %v3184 = vld [vmem:[%s5 + $0x3e8] sm:$0xff]
  %v3185 = vld [vmem:[%s5 + $0x3f0] sm:$0xff]
  %v3186 = vld [vmem:[%s5 + $0x3f8] sm:$0xff]
  %v3187 = vld [vmem:[%s5 + $0x400] sm:$0xff]
  %v3188 = vld [vmem:[%s5 + $0x408] sm:$0xff]
  %v3189 = vld [vmem:[%s5 + $0x410] sm:$0xff]
  %v3190 = vld [vmem:[%s5 + $0x418] sm:$0xff]
  %v3191 = vld [vmem:[%s5 + $0x420] sm:$0xff]
  %v3192 = vld [vmem:[%s5 + $0x428] sm:$0xff]
  %v3193 = vld [vmem:[%s5 + $0x430] sm:$0xff]
  %v3194 = vld [vmem:[%s5 + $0x438] sm:$0xff]
  %v3195 = vld [vmem:[%s5 + $0x440] sm:$0xff]
  %v3196 = vld [vmem:[%s5 + $0x448] sm:$0xff]
  %v3197 = vld [vmem:[%s5 + $0x450] sm:$0xff]
  %v3198 = vld [vmem:[%s5 + $0x458] sm:$0xff]
  %v3199 = vld [vmem:[%s5 + $0x460] sm:$0xff]
  %v3200 = vld [vmem:[%s5 + $0x468] sm:$0xff]
  %v3201 = vld [vmem:[%s5 + $0x470] sm:$0xff]
  %v3202 = vld [vmem:[%s5 + $0x478] sm:$0xff]
  %v3203 = vld [vmem:[%s5 + $0x480] sm:$0xff]
  %v3204 = vld [vmem:[%s5 + $0x488] sm:$0xff]
  %v3205 = vld [vmem:[%s5 + $0x490] sm:$0xff]
  %v3206 = vld [vmem:[%s5 + $0x498] sm:$0xff]
  %v3207 = vld [vmem:[%s5 + $0x4a0] sm:$0xff]
  %v3208 = vld [vmem:[%s5 + $0x4a8] sm:$0xff]
  %v3209 = vld [vmem:[%s5 + $0x4b0] sm:$0xff]
  %v3210 = vld [vmem:[%s5 + $0x4b8] sm:$0xff]
  %v3211 = vld [vmem:[%s5 + $0x4c0] sm:$0xff]
  %v3212 = vld [vmem:[%s5 + $0x4c8] sm:$0xff]
  %v3213 = vld [vmem:[%s5 + $0x4d0] sm:$0xff]
  %v3214 = vld [vmem:[%s5 + $0x4d8] sm:$0xff]
  %v3215 = vld [vmem:[%s5 + $0x4e0] sm:$0xff]
  %v3216 = vld [vmem:[%s5 + $0x4e8] sm:$0xff]
  %v3217 = vld [vmem:[%s5 + $0x4f0] sm:$0xff]
  %v3218 = vld [vmem:[%s5 + $0x4f8] sm:$0xff]
  %v3219 = vld [vmem:[%s5 + $0x500] sm:$0xff]
  %v3220 = vld [vmem:[%s5 + $0x508] sm:$0xff]
  %v3221 = vld [vmem:[%s5 + $0x510] sm:$0xff]
  %v3222 = vld [vmem:[%s5 + $0x518] sm:$0xff]
  %v3223 = vld [vmem:[%s5 + $0x520] sm:$0xff]
  %v3224 = vld [vmem:[%s5 + $0x528] sm:$0xff]
  %v3225 = vld [vmem:[%s5 + $0x530] sm:$0xff]
  %v3226 = vld [vmem:[%s5 + $0x538] sm:$0xff]
  %v3227 = vld [vmem:[%s5 + $0x540] sm:$0xff]
  %v3228 = vld [vmem:[%s5 + $0x548] sm:$0xff]
  %v3229 = vld [vmem:[%s5 + $0x550] sm:$0xff]
  %v3230 = vld [vmem:[%s5 + $0x558] sm:$0xff]
  %v3231 = vld [vmem:[%s5 + $0x560] sm:$0xff]
  %v3232 = vld [vmem:[%s5 + $0x568] sm:$0xff]
  %v3233 = vld [vmem:[%s5 + $0x570] sm:$0xff]
  %v3234 = vld [vmem:[%s5 + $0x578] sm:$0xff]
  %v3235 = vld [vmem:[%s5 + $0x580] sm:$0xff]
  %v3236 = vld [vmem:[%s5 + $0x588] sm:$0xff]
  %v3237 = vld [vmem:[%s5 + $0x590] sm:$0xff]
  %v3238 = vld [vmem:[%s5 + $0x598] sm:$0xff]
  %v3239 = vld [vmem:[%s5 + $0x5a0] sm:$0xff]
  %v3240 = vld [vmem:[%s5 + $0x5a8] sm:$0xff]
  %v3241 = vld [vmem:[%s5 + $0x5b0] sm:$0xff]
  %v3242 = vld [vmem:[%s5 + $0x5b8] sm:$0xff]
  %v3243 = vld [vmem:[%s5 + $0x5c0] sm:$0xff]
  %v3244 = vld [vmem:[%s5 + $0x5c8] sm:$0xff]
  %v3245 = vld [vmem:[%s5 + $0x5d0] sm:$0xff]
  %v3246 = vld [vmem:[%s5 + $0x5d8] sm:$0xff]
  %v3247 = vld [vmem:[%s5 + $0x5e0] sm:$0xff]
  %v3248 = vld [vmem:[%s5 + $0x5e8] sm:$0xff]
  %v3249 = vld [vmem:[%s5 + $0x5f0] sm:$0xff]
  %v3250 = vld [vmem:[%s5 + $0x5f8] sm:$0xff]
  %v3251 = vld [vmem:[%s5 + $0x600] sm:$0xff]
  %v3252 = vld [vmem:[%s5 + $0x608] sm:$0xff]
  %v3253 = vld [vmem:[%s5 + $0x610] sm:$0xff]
  %v3254 = vld [vmem:[%s5 + $0x618] sm:$0xff]
  %v3255 = vld [vmem:[%s5 + $0x620] sm:$0xff]
  %v3256 = vld [vmem:[%s5 + $0x628] sm:$0xff]
  %v3257 = vld [vmem:[%s5 + $0x630] sm:$0xff]
  %v3258 = vld [vmem:[%s5 + $0x638] sm:$0xff]
  %v3259 = vld [vmem:[%s5 + $0x640] sm:$0xff]
  %v3260 = vld [vmem:[%s5 + $0x648] sm:$0xff]
  %v3261 = vld [vmem:[%s5 + $0x650] sm:$0xff]
  %v3262 = vld [vmem:[%s5 + $0x658] sm:$0xff]
  %v3263 = vld [vmem:[%s5 + $0x660] sm:$0xff]
  %v3264 = vld [vmem:[%s5 + $0x668] sm:$0xff]
  %v3265 = vld [vmem:[%s5 + $0x670] sm:$0xff]
  %v3266 = vld [vmem:[%s5 + $0x678] sm:$0xff]
  %v3267 = vld [vmem:[%s5 + $0x680] sm:$0xff]
  %v3268 = vld [vmem:[%s5 + $0x688] sm:$0xff]
  %v3269 = vld [vmem:[%s5 + $0x690] sm:$0xff]
  %v3270 = vld [vmem:[%s5 + $0x698] sm:$0xff]
  %v3271 = vld [vmem:[%s5 + $0x6a0] sm:$0xff]
  %v3272 = vld [vmem:[%s5 + $0x6a8] sm:$0xff]
  %v3273 = vld [vmem:[%s5 + $0x6b0] sm:$0xff]
  %v3274 = vld [vmem:[%s5 + $0x6b8] sm:$0xff]
  %v3275 = vld [vmem:[%s5 + $0x6c0] sm:$0xff]
  %v3276 = vld [vmem:[%s5 + $0x6c8] sm:$0xff]
  %v3277 = vld [vmem:[%s5 + $0x6d0] sm:$0xff]
  %v3278 = vld [vmem:[%s5 + $0x6d8] sm:$0xff]
  %v3279 = vld [vmem:[%s5 + $0x6e0] sm:$0xff]
  %v3280 = vld [vmem:[%s5 + $0x6e8] sm:$0xff]
  %v3281 = vld [vmem:[%s5 + $0x6f0] sm:$0xff]
  %v3282 = vld [vmem:[%s5 + $0x6f8] sm:$0xff]
  %v3283 = vld [vmem:[%s5 + $0x700] sm:$0xff]
  %v3284 = vld [vmem:[%s5 + $0x708] sm:$0xff]
  %v3285 = vld [vmem:[%s5 + $0x710] sm:$0xff]
  %v3286 = vld [vmem:[%s5 + $0x718] sm:$0xff]
  %v3287 = vld [vmem:[%s5 + $0x720] sm:$0xff]
  %v3288 = vld [vmem:[%s5 + $0x728] sm:$0xff]
  %v3289 = vld [vmem:[%s5 + $0x730] sm:$0xff]
  %v3290 = vld [vmem:[%s5 + $0x738] sm:$0xff]
  %v3291 = vld [vmem:[%s5 + $0x740] sm:$0xff]
  %v3292 = vld [vmem:[%s5 + $0x748] sm:$0xff]
  %v3293 = vld [vmem:[%s5 + $0x750] sm:$0xff]
  %v3294 = vld [vmem:[%s5 + $0x758] sm:$0xff]
  %v3295 = vld [vmem:[%s5 + $0x760] sm:$0xff]
  %v3296 = vld [vmem:[%s5 + $0x768] sm:$0xff]
  %v3297 = vld [vmem:[%s5 + $0x770] sm:$0xff]
  %v3298 = vld [vmem:[%s5 + $0x778] sm:$0xff]
  %v3299 = vld [vmem:[%s5 + $0x780] sm:$0xff]
  %v3300 = vld [vmem:[%s5 + $0x788] sm:$0xff]
  %v3301 = vld [vmem:[%s5 + $0x790] sm:$0xff]
  %v3302 = vld [vmem:[%s5 + $0x798] sm:$0xff]
  %v3303 = vld [vmem:[%s5 + $0x7a0] sm:$0xff]
  %v3304 = vld [vmem:[%s5 + $0x7a8] sm:$0xff]
  %v3305 = vld [vmem:[%s5 + $0x7b0] sm:$0xff]
  %v3306 = vld [vmem:[%s5 + $0x7b8] sm:$0xff]
  %v3307 = vld [vmem:[%s5 + $0x7c0] sm:$0xff]
  %v3308 = vld [vmem:[%s5 + $0x7c8] sm:$0xff]
  %v3309 = vld [vmem:[%s5 + $0x7d0] sm:$0xff]
  %v3310 = vld [vmem:[%s5 + $0x7d8] sm:$0xff]
  %v3311 = vld [vmem:[%s5 + $0x7e0] sm:$0xff]
  %v3312 = vld [vmem:[%s5 + $0x7e8] sm:$0xff]
  %v3313 = vld [vmem:[%s5 + $0x7f0] sm:$0xff]
  %v3314 = vld [vmem:[%s5 + $0x7f8] sm:$0xff]
  %v3315 = vld [vmem:[%s5 + $0x800] sm:$0xff]
  %v3316 = vld [vmem:[%s5 + $0x808] sm:$0xff]
  %v3317 = vld [vmem:[%s5 + $0x810] sm:$0xff]
  %v3318 = vld [vmem:[%s5 + $0x818] sm:$0xff]
  %v3319 = vld [vmem:[%s5 + $0x820] sm:$0xff]
  %v3320 = vld [vmem:[%s5 + $0x828] sm:$0xff]
  %v3321 = vld [vmem:[%s5 + $0x830] sm:$0xff]
  %v3322 = vld [vmem:[%s5 + $0x838] sm:$0xff]
  %v3323 = vld [vmem:[%s5 + $0x840] sm:$0xff]
  %v3324 = vld [vmem:[%s5 + $0x848] sm:$0xff]
  %v3325 = vld [vmem:[%s5 + $0x850] sm:$0xff]
  %v3326 = vld [vmem:[%s5 + $0x858] sm:$0xff]
  %v3327 = vld [vmem:[%s5 + $0x860] sm:$0xff]
  %v3328 = vld [vmem:[%s5 + $0x868] sm:$0xff]
  %v3329 = vld [vmem:[%s5 + $0x870] sm:$0xff]
  %v3330 = vld [vmem:[%s5 + $0x878] sm:$0xff]
  %v3331 = vld [vmem:[%s5 + $0x880] sm:$0xff]
  %v3332 = vld [vmem:[%s5 + $0x888] sm:$0xff]
  %v3333 = vld [vmem:[%s5 + $0x890] sm:$0xff]
  %v3334 = vld [vmem:[%s5 + $0x898] sm:$0xff]
  %v3335 = vld [vmem:[%s5 + $0x8a0] sm:$0xff]
  %v3336 = vld [vmem:[%s5 + $0x8a8] sm:$0xff]
  %v3337 = vld [vmem:[%s5 + $0x8b0] sm:$0xff]
  %v3338 = vld [vmem:[%s5 + $0x8b8] sm:$0xff]
  %v3339 = vld [vmem:[%s5 + $0x8c0] sm:$0xff]
  %v3340 = vld [vmem:[%s5 + $0x8c8] sm:$0xff]
  %v3341 = vld [vmem:[%s5 + $0x8d0] sm:$0xff]
  %v3342 = vld [vmem:[%s5 + $0x8d8] sm:$0xff]
  %v3343 = vld [vmem:[%s5 + $0x8e0] sm:$0xff]
  %v3344 = vld [vmem:[%s5 + $0x8e8] sm:$0xff]
  %v3345 = vld [vmem:[%s5 + $0x8f0] sm:$0xff]
  %v3346 = vld [vmem:[%s5 + $0x8f8] sm:$0xff]
  %v3347 = vld [vmem:[%s5 + $0x900] sm:$0xff]
  %v3348 = vld [vmem:[%s5 + $0x908] sm:$0xff]
  %v3349 = vld [vmem:[%s5 + $0x910] sm:$0xff]
  %v3350 = vld [vmem:[%s5 + $0x918] sm:$0xff]
  %v3351 = vld [vmem:[%s5 + $0x920] sm:$0xff]
  %v3352 = vld [vmem:[%s5 + $0x928] sm:$0xff]
  %v3353 = vld [vmem:[%s5 + $0x930] sm:$0xff]
  %v3354 = vld [vmem:[%s5 + $0x938] sm:$0xff]
  %v3355 = vld [vmem:[%s5 + $0x940] sm:$0xff]
  %v3356 = vld [vmem:[%s5 + $0x948] sm:$0xff]
  %v3357 = vld [vmem:[%s5 + $0x950] sm:$0xff]
  %v3358 = vld [vmem:[%s5 + $0x958] sm:$0xff]
  %v3359 = vld [vmem:[%s5 + $0x960] sm:$0xff]
  %v3360 = vld [vmem:[%s5 + $0x968] sm:$0xff]
  %v3361 = vld [vmem:[%s5 + $0x970] sm:$0xff]
  %v3362 = vld [vmem:[%s5 + $0x978] sm:$0xff]
  %v3363 = vld [vmem:[%s5 + $0x980] sm:$0xff]
  %v3364 = vld [vmem:[%s5 + $0x988] sm:$0xff]
  %v3365 = vld [vmem:[%s5 + $0x990] sm:$0xff]
  %v3366 = vld [vmem:[%s5 + $0x998] sm:$0xff]
  %v3367 = vld [vmem:[%s5 + $0x9a0] sm:$0xff]
  %v3368 = vld [vmem:[%s5 + $0x9a8] sm:$0xff]
  %v3369 = vld [vmem:[%s5 + $0x9b0] sm:$0xff]
  %v3370 = vld [vmem:[%s5 + $0x9b8] sm:$0xff]
  %v3371 = vld [vmem:[%s5 + $0x9c0] sm:$0xff]
  %v3372 = vld [vmem:[%s5 + $0x9c8] sm:$0xff]
  %v3373 = vld [vmem:[%s5 + $0x9d0] sm:$0xff]
  %v3374 = vld [vmem:[%s5 + $0x9d8] sm:$0xff]
  %v3375 = vld [vmem:[%s5 + $0x9e0] sm:$0xff]
  %v3376 = vld [vmem:[%s5 + $0x9e8] sm:$0xff]
  %v3377 = vld [vmem:[%s5 + $0x9f0] sm:$0xff]
  %v3378 = vld [vmem:[%s5 + $0x9f8] sm:$0xff]
  %v3379 = vld [vmem:[%s5 + $0xa00] sm:$0xff]
  %v3380 = vld [vmem:[%s5 + $0xa08] sm:$0xff]
  %v3381 = vld [vmem:[%s5 + $0xa10] sm:$0xff]
  %v3382 = vld [vmem:[%s5 + $0xa18] sm:$0xff]
  %v3383 = vld [vmem:[%s5 + $0xa20] sm:$0xff]
  %v3384 = vld [vmem:[%s5 + $0xa28] sm:$0xff]
  %v3385 = vld [vmem:[%s5 + $0xa30] sm:$0xff]
  %v3386 = vld [vmem:[%s5 + $0xa38] sm:$0xff]
  %v3387 = vld [vmem:[%s5 + $0xa40] sm:$0xff]
  %v3388 = vld [vmem:[%s5 + $0xa48] sm:$0xff]
  %v3389 = vld [vmem:[%s5 + $0xa50] sm:$0xff]
  %v3390 = vld [vmem:[%s5 + $0xa58] sm:$0xff]
  %v3391 = vld [vmem:[%s5 + $0xa60] sm:$0xff]
  %v3392 = vld [vmem:[%s5 + $0xa68] sm:$0xff]
  %v3393 = vld [vmem:[%s5 + $0xa70] sm:$0xff]
  %v3394 = vld [vmem:[%s5 + $0xa78] sm:$0xff]
  %v3395 = vld [vmem:[%s5 + $0xa80] sm:$0xff]
  %v3396 = vld [vmem:[%s5 + $0xa88] sm:$0xff]
  %v3397 = vld [vmem:[%s5 + $0xa90] sm:$0xff]
  %v3398 = vld [vmem:[%s5 + $0xa98] sm:$0xff]
  %v3399 = vld [vmem:[%s5 + $0xaa0] sm:$0xff]
  %v3400 = vld [vmem:[%s5 + $0xaa8] sm:$0xff]
  %v3401 = vld [vmem:[%s5 + $0xab0] sm:$0xff]
  %v3402 = vld [vmem:[%s5 + $0xab8] sm:$0xff]
  %v3403 = vld [vmem:[%s5 + $0xac0] sm:$0xff]
  %v3404 = vld [vmem:[%s5 + $0xac8] sm:$0xff]
  %v3405 = vld [vmem:[%s5 + $0xad0] sm:$0xff]
  %v3406 = vld [vmem:[%s5 + $0xad8] sm:$0xff]
  %v3407 = vld [vmem:[%s5 + $0xae0] sm:$0xff]
  %v3408 = vld [vmem:[%s5 + $0xae8] sm:$0xff]
  %v3409 = vld [vmem:[%s5 + $0xaf0] sm:$0xff]
  %v3410 = vld [vmem:[%s5 + $0xaf8] sm:$0xff]
  %v3411 = vld [vmem:[%s5 + $0xb00] sm:$0xff]
  %v3412 = vld [vmem:[%s5 + $0xb08] sm:$0xff]
  %v3413 = vld [vmem:[%s5 + $0xb10] sm:$0xff]
  %v3414 = vld [vmem:[%s5 + $0xb18] sm:$0xff]
  %v3415 = vld [vmem:[%s5 + $0xb20] sm:$0xff]
  %v3416 = vld [vmem:[%s5 + $0xb28] sm:$0xff]
  %v3417 = vld [vmem:[%s5 + $0xb30] sm:$0xff]
  %v3418 = vld [vmem:[%s5 + $0xb38] sm:$0xff]
  %v3419 = vld [vmem:[%s5 + $0xb40] sm:$0xff]
  %v3420 = vld [vmem:[%s5 + $0xb48] sm:$0xff]
  %v3421 = vld [vmem:[%s5 + $0xb50] sm:$0xff]
  %v3422 = vld [vmem:[%s5 + $0xb58] sm:$0xff]
  %v3423 = vld [vmem:[%s5 + $0xb60] sm:$0xff]
  %v3424 = vld [vmem:[%s5 + $0xb68] sm:$0xff]
  %v3425 = vld [vmem:[%s5 + $0xb70] sm:$0xff]
  %v3426 = vld [vmem:[%s5 + $0xb78] sm:$0xff]
  %v3427 = vld [vmem:[%s5 + $0xb80] sm:$0xff]
  %v3428 = vld [vmem:[%s5 + $0xb88] sm:$0xff]
  %v3429 = vld [vmem:[%s5 + $0xb90] sm:$0xff]
  %v3430 = vld [vmem:[%s5 + $0xb98] sm:$0xff]
  %v3431 = vld [vmem:[%s5 + $0xba0] sm:$0xff]
  %v3432 = vld [vmem:[%s5 + $0xba8] sm:$0xff]
  %v3433 = vld [vmem:[%s5 + $0xbb0] sm:$0xff]
  %v3434 = vld [vmem:[%s5 + $0xbb8] sm:$0xff]
  %v3435 = vld [vmem:[%s5 + $0xbc0] sm:$0xff]
  %v3436 = vld [vmem:[%s5 + $0xbc8] sm:$0xff]
  %v3437 = vld [vmem:[%s5 + $0xbd0] sm:$0xff]
  %v3438 = vld [vmem:[%s5 + $0xbd8] sm:$0xff]
  %v3439 = vld [vmem:[%s5 + $0xbe0] sm:$0xff]
  %v3440 = vld [vmem:[%s5 + $0xbe8] sm:$0xff]
  %v3441 = vld [vmem:[%s5 + $0xbf0] sm:$0xff]
  %v3442 = vld [vmem:[%s5 + $0xbf8] sm:$0xff]
  %v3443 = vld [vmem:[%s5 + $0xc00] sm:$0xff]
  %v3444 = vld [vmem:[%s5 + $0xc08] sm:$0xff]
  %v3445 = vld [vmem:[%s5 + $0xc10] sm:$0xff]
  %v3446 = vld [vmem:[%s5 + $0xc18] sm:$0xff]
  %v3447 = vld [vmem:[%s5 + $0xc20] sm:$0xff]
  %v3448 = vld [vmem:[%s5 + $0xc28] sm:$0xff]
  %v3449 = vld [vmem:[%s5 + $0xc30] sm:$0xff]
  %v3450 = vld [vmem:[%s5 + $0xc38] sm:$0xff]
  %v3451 = vld [vmem:[%s5 + $0xc40] sm:$0xff]
  %v3452 = vld [vmem:[%s5 + $0xc48] sm:$0xff]
  %v3453 = vld [vmem:[%s5 + $0xc50] sm:$0xff]
  %v3454 = vld [vmem:[%s5 + $0xc58] sm:$0xff]
  %v3455 = vld [vmem:[%s5 + $0xc60] sm:$0xff]
  %v3456 = vld [vmem:[%s5 + $0xc68] sm:$0xff]
  %v3457 = vld [vmem:[%s5 + $0xc70] sm:$0xff]
  %v3458 = vld [vmem:[%s5 + $0xc78] sm:$0xff]
  %vm3459 = vcmask 523264
  %v3461 = vsel %vm3459, %v1753, 0
  %3463 = vmatprep.subr.mxu0 %v3170
  %3464 = vmatpush1.msra.mxu0 %v3169
  %3465 = vmatprep.subr.mxu0 %v3168
  %3466 = vmatpush1.msra.mxu0 %v3167
  %3467 = vmatprep.subr.mxu0 %v3166
  %3468 = vmatpush1.msra.mxu0 %v3165
  %3469 = vmatprep.subr.mxu0 %v3164
  %3470 = vmatpush1.msra.mxu0 %v3163
  %3471 = vmatprep.subr.mxu0 %v3162
  %3472 = vmatpush1.msra.mxu0 %v3161
  %3473 = vmatprep.subr.mxu0 %v3160
  %3474 = vmatpush1.msra.mxu0 %v3159
  %3475 = vmatprep.subr.mxu0 %v3158
  %3476 = vmatpush1.msra.mxu0 %v3157
  %3477 = vmatprep.subr.mxu0 %v3156
  %3478 = vmatpush1.msra.mxu0 %v3155
  %3479 = vmatprep.subr.mxu0 %v3154
  %3480 = vmatpush1.msra.mxu0 %v3153
  %3481 = vmatprep.subr.mxu0 %v3152
  %3482 = vmatpush1.msra.mxu0 %v3151
  %3483 = vmatprep.subr.mxu0 %v3150
  %3484 = vmatpush1.msra.mxu0 %v3149
  %3485 = vmatprep.subr.mxu0 %v3148
  %3486 = vmatpush1.msra.mxu0 %v3147
  %3487 = vmatprep.subr.mxu0 %v3146
  %3488 = vmatpush1.msra.mxu0 %v3145
  %3489 = vmatprep.subr.mxu0 %v3144
  %3490 = vmatpush1.msra.mxu0 %v3143
  %3491 = vmatprep.subr.mxu0 %v3142
  %3492 = vmatpush1.msra.mxu0 %v3141
  %3493 = vmatprep.subr.mxu0 %v3140
  %3494 = vmatpush1.msra.mxu0 %v3139
  %3495 = vmatprep.subr.mxu0 %v3202
  %3496 = vmatpush2.msra.mxu0 %v3201
  %3497 = vmatprep.subr.mxu0 %v3200
  %3498 = vmatpush2.msra.mxu0 %v3199
  %3499 = vmatprep.subr.mxu0 %v3198
  %3500 = vmatpush2.msra.mxu0 %v3197
  %3501 = vmatprep.subr.mxu0 %v3196
  %3502 = vmatpush2.msra.mxu0 %v3195
  %3503 = vmatprep.subr.mxu0 %v3194
  %3504 = vmatpush2.msra.mxu0 %v3193
  %3505 = vmatprep.subr.mxu0 %v3192
  %3506 = vmatpush2.msra.mxu0 %v3191
  %3507 = vmatprep.subr.mxu0 %v3190
  %3508 = vmatpush2.msra.mxu0 %v3189
  %3509 = vmatprep.subr.mxu0 %v3188
  %3510 = vmatpush2.msra.mxu0 %v3187
  %3511 = vmatprep.subr.mxu0 %v3186
  %3512 = vmatpush2.msra.mxu0 %v3185
  %3513 = vmatprep.subr.mxu0 %v3184
  %3514 = vmatpush2.msra.mxu0 %v3183
  %3515 = vmatprep.subr.mxu0 %v3182
  %3516 = vmatpush2.msra.mxu0 %v3181
  %3517 = vmatprep.subr.mxu0 %v3180
  %3518 = vmatpush2.msra.mxu0 %v3179
  %3519 = vmatprep.subr.mxu0 %v3178
  %3520 = vmatpush2.msra.mxu0 %v3177
  %3521 = vmatprep.subr.mxu0 %v3176
  %3522 = vmatpush2.msra.mxu0 %v3175
  %3523 = vmatprep.subr.mxu0 %v3174
  %3524 = vmatpush2.msra.mxu0 %v3173
  %3525 = vmatprep.subr.mxu0 %v3172
  %3526 = vmatpush2.msra.mxu0 %v3171
  %3527 = vmatprep.mubr.f32.mxu0 %v1752
  %3528 = vmatmul.mubr.f32.gmra.mxu0 %v1751
  %v3529 = vpop.f32.mrf.mxu0
  %v3530 = vadd.f32 0.0, %v3529
  %v3531 = vpop.f32.mrf.mxu0
  %v3532 = vadd.f32 0.0, %v3531
  %3533 = vdwg.mxu0
  %3534 = vmatprep.subr.mxu0 0.0
  %3535 = vmatpush1.msra.mxu0 0.0
  %3536 = vmatprep.subr.mxu0 0.0
  %3537 = vmatpush1.msra.mxu0 0.0
  %3538 = vmatprep.subr.mxu0 0.0
  %3539 = vmatpush1.msra.mxu0 0.0
  %3540 = vmatprep.subr.mxu0 0.0
  %3541 = vmatpush1.msra.mxu0 0.0
  %3542 = vmatprep.subr.mxu0 0.0
  %3543 = vmatpush1.msra.mxu0 0.0
  %3544 = vmatprep.subr.mxu0 0.0
  %3545 = vmatpush1.msra.mxu0 0.0
  %3546 = vmatprep.subr.mxu0 0.0
  %3547 = vmatpush1.msra.mxu0 0.0
  %3548 = vmatprep.subr.mxu0 0.0
  %3549 = vmatpush1.msra.mxu0 0.0
  %3550 = vmatprep.subr.mxu0 %v3218
  %3551 = vmatpush1.msra.mxu0 %v3217
  %3552 = vmatprep.subr.mxu0 %v3216
  %3553 = vmatpush1.msra.mxu0 %v3215
  %3554 = vmatprep.subr.mxu0 %v3214
  %3555 = vmatpush1.msra.mxu0 %v3213
  %3556 = vmatprep.subr.mxu0 %v3212
  %3557 = vmatpush1.msra.mxu0 %v3211
  %3558 = vmatprep.subr.mxu0 %v3210
  %3559 = vmatpush1.msra.mxu0 %v3209
  %3560 = vmatprep.subr.mxu0 %v3208
  %3561 = vmatpush1.msra.mxu0 %v3207
  %3562 = vmatprep.subr.mxu0 %v3206
  %3563 = vmatpush1.msra.mxu0 %v3205
  %3564 = vmatprep.subr.mxu0 %v3204
  %3565 = vmatpush1.msra.mxu0 %v3203
  %3566 = vmatprep.subr.mxu0 0.0
  %3567 = vmatpush2.msra.mxu0 0.0
  %3568 = vmatprep.subr.mxu0 0.0
  %3569 = vmatpush2.msra.mxu0 0.0
  %3570 = vmatprep.subr.mxu0 0.0
  %3571 = vmatpush2.msra.mxu0 0.0
  %3572 = vmatprep.subr.mxu0 0.0
  %3573 = vmatpush2.msra.mxu0 0.0
  %3574 = vmatprep.subr.mxu0 0.0
  %3575 = vmatpush2.msra.mxu0 0.0
  %3576 = vmatprep.subr.mxu0 0.0
  %3577 = vmatpush2.msra.mxu0 0.0
  %3578 = vmatprep.subr.mxu0 0.0
  %3579 = vmatpush2.msra.mxu0 0.0
  %3580 = vmatprep.subr.mxu0 0.0
  %3581 = vmatpush2.msra.mxu0 0.0
  %3582 = vmatprep.subr.mxu0 0.0
  %3583 = vmatpush2.msra.mxu0 0.0
  %3584 = vmatprep.subr.mxu0 0.0
  %3585 = vmatpush2.msra.mxu0 0.0
  %3586 = vmatprep.subr.mxu0 0.0
  %3587 = vmatpush2.msra.mxu0 0.0
  %3588 = vmatprep.subr.mxu0 0.0
  %3589 = vmatpush2.msra.mxu0 0.0
  %3590 = vmatprep.subr.mxu0 0.0
  %3591 = vmatpush2.msra.mxu0 0.0
  %3592 = vmatprep.subr.mxu0 0.0
  %3593 = vmatpush2.msra.mxu0 0.0
  %3594 = vmatprep.subr.mxu0 0.0
  %3595 = vmatpush2.msra.mxu0 0.0
  %3596 = vmatprep.subr.mxu0 0.0
  %3597 = vmatpush2.msra.mxu0 0.0
  %3598 = vmatprep.mubr.f32.mxu0 0.0
  %3599 = vmatmul.mubr.f32.gmra.mxu0 %v3461
  %v3600 = vpop.f32.mrf.mxu0
  %v3601 = vadd.f32 %v3530, %v3600
  %v3602 = vpop.f32.mrf.mxu0
  %v3603 = vadd.f32 %v3532, %v3602
  %3604 = vdwg.mxu0
  %v3606 = vsel %vm3459, %v1318, 0
  %3608 = vmatprep.subr.mxu0 %v3090
  %3609 = vmatpush1.msra.mxu0 %v3089
  %3610 = vmatprep.subr.mxu0 %v3088
  %3611 = vmatpush1.msra.mxu0 %v3087
  %3612 = vmatprep.subr.mxu0 %v3086
  %3613 = vmatpush1.msra.mxu0 %v3085
  %3614 = vmatprep.subr.mxu0 %v3084
  %3615 = vmatpush1.msra.mxu0 %v3083
  %3616 = vmatprep.subr.mxu0 %v3082
  %3617 = vmatpush1.msra.mxu0 %v3081
  %3618 = vmatprep.subr.mxu0 %v3080
  %3619 = vmatpush1.msra.mxu0 %v3079
  %3620 = vmatprep.subr.mxu0 %v3078
  %3621 = vmatpush1.msra.mxu0 %v3077
  %3622 = vmatprep.subr.mxu0 %v3076
  %3623 = vmatpush1.msra.mxu0 %v3075
  %3624 = vmatprep.subr.mxu0 %v3074
  %3625 = vmatpush1.msra.mxu0 %v3073
  %3626 = vmatprep.subr.mxu0 %v3072
  %3627 = vmatpush1.msra.mxu0 %v3071
  %3628 = vmatprep.subr.mxu0 %v3070
  %3629 = vmatpush1.msra.mxu0 %v3069
  %3630 = vmatprep.subr.mxu0 %v3068
  %3631 = vmatpush1.msra.mxu0 %v3067
  %3632 = vmatprep.subr.mxu0 %v3066
  %3633 = vmatpush1.msra.mxu0 %v3065
  %3634 = vmatprep.subr.mxu0 %v3064
  %3635 = vmatpush1.msra.mxu0 %v3063
  %3636 = vmatprep.subr.mxu0 %v3062
  %3637 = vmatpush1.msra.mxu0 %v3061
  %3638 = vmatprep.subr.mxu0 %v3060
  %3639 = vmatpush1.msra.mxu0 %v3059
  %3640 = vmatprep.subr.mxu0 %v3122
  %3641 = vmatpush2.msra.mxu0 %v3121
  %3642 = vmatprep.subr.mxu0 %v3120
  %3643 = vmatpush2.msra.mxu0 %v3119
  %3644 = vmatprep.subr.mxu0 %v3118
  %3645 = vmatpush2.msra.mxu0 %v3117
  %3646 = vmatprep.subr.mxu0 %v3116
  %3647 = vmatpush2.msra.mxu0 %v3115
  %3648 = vmatprep.subr.mxu0 %v3114
  %3649 = vmatpush2.msra.mxu0 %v3113
  %3650 = vmatprep.subr.mxu0 %v3112
  %3651 = vmatpush2.msra.mxu0 %v3111
  %3652 = vmatprep.subr.mxu0 %v3110
  %3653 = vmatpush2.msra.mxu0 %v3109
  %3654 = vmatprep.subr.mxu0 %v3108
  %3655 = vmatpush2.msra.mxu0 %v3107
  %3656 = vmatprep.subr.mxu0 %v3106
  %3657 = vmatpush2.msra.mxu0 %v3105
  %3658 = vmatprep.subr.mxu0 %v3104
  %3659 = vmatpush2.msra.mxu0 %v3103
  %3660 = vmatprep.subr.mxu0 %v3102
  %3661 = vmatpush2.msra.mxu0 %v3101
  %3662 = vmatprep.subr.mxu0 %v3100
  %3663 = vmatpush2.msra.mxu0 %v3099
  %3664 = vmatprep.subr.mxu0 %v3098
  %3665 = vmatpush2.msra.mxu0 %v3097
  %3666 = vmatprep.subr.mxu0 %v3096
  %3667 = vmatpush2.msra.mxu0 %v3095
  %3668 = vmatprep.subr.mxu0 %v3094
  %3669 = vmatpush2.msra.mxu0 %v3093
  %3670 = vmatprep.subr.mxu0 %v3092
  %3671 = vmatpush2.msra.mxu0 %v3091
  %3672 = vmatprep.mubr.f32.mxu0 %v1317
  %3673 = vmatmul.mubr.f32.gmra.mxu0 %v1316
  %v3674 = vpop.f32.mrf.mxu0
  %v3675 = vadd.f32 %v3601, %v3674
  %v3676 = vpop.f32.mrf.mxu0
  %v3677 = vadd.f32 %v3603, %v3676
  %3678 = vdwg.mxu0
  %3679 = vmatprep.subr.mxu0 0.0
  %3680 = vmatpush1.msra.mxu0 0.0
  %3681 = vmatprep.subr.mxu0 0.0
  %3682 = vmatpush1.msra.mxu0 0.0
  %3683 = vmatprep.subr.mxu0 0.0
  %3684 = vmatpush1.msra.mxu0 0.0
  %3685 = vmatprep.subr.mxu0 0.0
  %3686 = vmatpush1.msra.mxu0 0.0
  %3687 = vmatprep.subr.mxu0 0.0
  %3688 = vmatpush1.msra.mxu0 0.0
  %3689 = vmatprep.subr.mxu0 0.0
  %3690 = vmatpush1.msra.mxu0 0.0
  %3691 = vmatprep.subr.mxu0 0.0
  %3692 = vmatpush1.msra.mxu0 0.0
  %3693 = vmatprep.subr.mxu0 0.0
  %3694 = vmatpush1.msra.mxu0 0.0
  %3695 = vmatprep.subr.mxu0 %v3138
  %3696 = vmatpush1.msra.mxu0 %v3137
  %3697 = vmatprep.subr.mxu0 %v3136
  %3698 = vmatpush1.msra.mxu0 %v3135
  %3699 = vmatprep.subr.mxu0 %v3134
  %3700 = vmatpush1.msra.mxu0 %v3133
  %3701 = vmatprep.subr.mxu0 %v3132
  %3702 = vmatpush1.msra.mxu0 %v3131
  %3703 = vmatprep.subr.mxu0 %v3130
  %3704 = vmatpush1.msra.mxu0 %v3129
  %3705 = vmatprep.subr.mxu0 %v3128
  %3706 = vmatpush1.msra.mxu0 %v3127
  %3707 = vmatprep.subr.mxu0 %v3126
  %3708 = vmatpush1.msra.mxu0 %v3125
  %3709 = vmatprep.subr.mxu0 %v3124
  %3710 = vmatpush1.msra.mxu0 %v3123
  %3711 = vmatprep.subr.mxu0 0.0
  %3712 = vmatpush2.msra.mxu0 0.0
  %3713 = vmatprep.subr.mxu0 0.0
  %3714 = vmatpush2.msra.mxu0 0.0
  %3715 = vmatprep.subr.mxu0 0.0
  %3716 = vmatpush2.msra.mxu0 0.0
  %3717 = vmatprep.subr.mxu0 0.0
  %3718 = vmatpush2.msra.mxu0 0.0
  %3719 = vmatprep.subr.mxu0 0.0
  %3720 = vmatpush2.msra.mxu0 0.0
  %3721 = vmatprep.subr.mxu0 0.0
  %3722 = vmatpush2.msra.mxu0 0.0
  %3723 = vmatprep.subr.mxu0 0.0
  %3724 = vmatpush2.msra.mxu0 0.0
  %3725 = vmatprep.subr.mxu0 0.0
  %3726 = vmatpush2.msra.mxu0 0.0
  %3727 = vmatprep.subr.mxu0 0.0
  %3728 = vmatpush2.msra.mxu0 0.0
  %3729 = vmatprep.subr.mxu0 0.0
  %3730 = vmatpush2.msra.mxu0 0.0
  %3731 = vmatprep.subr.mxu0 0.0
  %3732 = vmatpush2.msra.mxu0 0.0
  %3733 = vmatprep.subr.mxu0 0.0
  %3734 = vmatpush2.msra.mxu0 0.0
  %3735 = vmatprep.subr.mxu0 0.0
  %3736 = vmatpush2.msra.mxu0 0.0
  %3737 = vmatprep.subr.mxu0 0.0
  %3738 = vmatpush2.msra.mxu0 0.0
  %3739 = vmatprep.subr.mxu0 0.0
  %3740 = vmatpush2.msra.mxu0 0.0
  %3741 = vmatprep.subr.mxu0 0.0
  %3742 = vmatpush2.msra.mxu0 0.0
  %3743 = vmatprep.mubr.f32.mxu0 0.0
  %3744 = vmatmul.mubr.f32.gmra.mxu0 %v3606
  %v3745 = vpop.f32.mrf.mxu0
  %v3746 = vadd.f32 %v3675, %v3745
  %v3747 = vpop.f32.mrf.mxu0
  %v3748 = vadd.f32 %v3677, %v3747
  %3749 = vdwg.mxu0
  %v3751 = vsel %vm3459, %v2188, 0
  %3753 = vmatprep.subr.mxu0 %v3250
  %3754 = vmatpush1.msra.mxu0 %v3249
  %3755 = vmatprep.subr.mxu0 %v3248
  %3756 = vmatpush1.msra.mxu0 %v3247
  %3757 = vmatprep.subr.mxu0 %v3246
  %3758 = vmatpush1.msra.mxu0 %v3245
  %3759 = vmatprep.subr.mxu0 %v3244
  %3760 = vmatpush1.msra.mxu0 %v3243
  %3761 = vmatprep.subr.mxu0 %v3242
  %3762 = vmatpush1.msra.mxu0 %v3241
  %3763 = vmatprep.subr.mxu0 %v3240
  %3764 = vmatpush1.msra.mxu0 %v3239
  %3765 = vmatprep.subr.mxu0 %v3238
  %3766 = vmatpush1.msra.mxu0 %v3237
  %3767 = vmatprep.subr.mxu0 %v3236
  %3768 = vmatpush1.msra.mxu0 %v3235
  %3769 = vmatprep.subr.mxu0 %v3234
  %3770 = vmatpush1.msra.mxu0 %v3233
  %3771 = vmatprep.subr.mxu0 %v3232
  %3772 = vmatpush1.msra.mxu0 %v3231
  %3773 = vmatprep.subr.mxu0 %v3230
  %3774 = vmatpush1.msra.mxu0 %v3229
  %3775 = vmatprep.subr.mxu0 %v3228
  %3776 = vmatpush1.msra.mxu0 %v3227
  %3777 = vmatprep.subr.mxu0 %v3226
  %3778 = vmatpush1.msra.mxu0 %v3225
  %3779 = vmatprep.subr.mxu0 %v3224
  %3780 = vmatpush1.msra.mxu0 %v3223
  %3781 = vmatprep.subr.mxu0 %v3222
  %3782 = vmatpush1.msra.mxu0 %v3221
  %3783 = vmatprep.subr.mxu0 %v3220
  %3784 = vmatpush1.msra.mxu0 %v3219
  %3785 = vmatprep.subr.mxu0 %v3282
  %3786 = vmatpush2.msra.mxu0 %v3281
  %3787 = vmatprep.subr.mxu0 %v3280
  %3788 = vmatpush2.msra.mxu0 %v3279
  %3789 = vmatprep.subr.mxu0 %v3278
  %3790 = vmatpush2.msra.mxu0 %v3277
  %3791 = vmatprep.subr.mxu0 %v3276
  %3792 = vmatpush2.msra.mxu0 %v3275
  %3793 = vmatprep.subr.mxu0 %v3274
  %3794 = vmatpush2.msra.mxu0 %v3273
  %3795 = vmatprep.subr.mxu0 %v3272
  %3796 = vmatpush2.msra.mxu0 %v3271
  %3797 = vmatprep.subr.mxu0 %v3270
  %3798 = vmatpush2.msra.mxu0 %v3269
  %3799 = vmatprep.subr.mxu0 %v3268
  %3800 = vmatpush2.msra.mxu0 %v3267
  %3801 = vmatprep.subr.mxu0 %v3266
  %3802 = vmatpush2.msra.mxu0 %v3265
  %3803 = vmatprep.subr.mxu0 %v3264
  %3804 = vmatpush2.msra.mxu0 %v3263
  %3805 = vmatprep.subr.mxu0 %v3262
  %3806 = vmatpush2.msra.mxu0 %v3261
  %3807 = vmatprep.subr.mxu0 %v3260
  %3808 = vmatpush2.msra.mxu0 %v3259
  %3809 = vmatprep.subr.mxu0 %v3258
  %3810 = vmatpush2.msra.mxu0 %v3257
  %3811 = vmatprep.subr.mxu0 %v3256
  %3812 = vmatpush2.msra.mxu0 %v3255
  %3813 = vmatprep.subr.mxu0 %v3254
  %3814 = vmatpush2.msra.mxu0 %v3253
  %3815 = vmatprep.subr.mxu0 %v3252
  %3816 = vmatpush2.msra.mxu0 %v3251
  %3817 = vmatprep.mubr.f32.mxu0 %v2187
  %3818 = vmatmul.mubr.f32.gmra.mxu0 %v2186
  %v3819 = vpop.f32.mrf.mxu0
  %v3820 = vadd.f32 0.0, %v3819
  %v3821 = vpop.f32.mrf.mxu0
  %v3822 = vadd.f32 0.0, %v3821
  %3823 = vdwg.mxu0
  %3824 = vmatprep.subr.mxu0 0.0
  %3825 = vmatpush1.msra.mxu0 0.0
  %3826 = vmatprep.subr.mxu0 0.0
  %3827 = vmatpush1.msra.mxu0 0.0
  %3828 = vmatprep.subr.mxu0 0.0
  %3829 = vmatpush1.msra.mxu0 0.0
  %3830 = vmatprep.subr.mxu0 0.0
  %3831 = vmatpush1.msra.mxu0 0.0
  %3832 = vmatprep.subr.mxu0 0.0
  %3833 = vmatpush1.msra.mxu0 0.0
  %3834 = vmatprep.subr.mxu0 0.0
  %3835 = vmatpush1.msra.mxu0 0.0
  %3836 = vmatprep.subr.mxu0 0.0
  %3837 = vmatpush1.msra.mxu0 0.0
  %3838 = vmatprep.subr.mxu0 0.0
  %3839 = vmatpush1.msra.mxu0 0.0
  %3840 = vmatprep.subr.mxu0 %v3298
  %3841 = vmatpush1.msra.mxu0 %v3297
  %3842 = vmatprep.subr.mxu0 %v3296
  %3843 = vmatpush1.msra.mxu0 %v3295
  %3844 = vmatprep.subr.mxu0 %v3294
  %3845 = vmatpush1.msra.mxu0 %v3293
  %3846 = vmatprep.subr.mxu0 %v3292
  %3847 = vmatpush1.msra.mxu0 %v3291
  %3848 = vmatprep.subr.mxu0 %v3290
  %3849 = vmatpush1.msra.mxu0 %v3289
  %3850 = vmatprep.subr.mxu0 %v3288
  %3851 = vmatpush1.msra.mxu0 %v3287
  %3852 = vmatprep.subr.mxu0 %v3286
  %3853 = vmatpush1.msra.mxu0 %v3285
  %3854 = vmatprep.subr.mxu0 %v3284
  %3855 = vmatpush1.msra.mxu0 %v3283
  %3856 = vmatprep.subr.mxu0 0.0
  %3857 = vmatpush2.msra.mxu0 0.0
  %3858 = vmatprep.subr.mxu0 0.0
  %3859 = vmatpush2.msra.mxu0 0.0
  %3860 = vmatprep.subr.mxu0 0.0
  %3861 = vmatpush2.msra.mxu0 0.0
  %3862 = vmatprep.subr.mxu0 0.0
  %3863 = vmatpush2.msra.mxu0 0.0
  %3864 = vmatprep.subr.mxu0 0.0
  %3865 = vmatpush2.msra.mxu0 0.0
  %3866 = vmatprep.subr.mxu0 0.0
  %3867 = vmatpush2.msra.mxu0 0.0
  %3868 = vmatprep.subr.mxu0 0.0
  %3869 = vmatpush2.msra.mxu0 0.0
  %3870 = vmatprep.subr.mxu0 0.0
  %3871 = vmatpush2.msra.mxu0 0.0
  %3872 = vmatprep.subr.mxu0 0.0
  %3873 = vmatpush2.msra.mxu0 0.0
  %3874 = vmatprep.subr.mxu0 0.0
  %3875 = vmatpush2.msra.mxu0 0.0
  %3876 = vmatprep.subr.mxu0 0.0
  %3877 = vmatpush2.msra.mxu0 0.0
  %3878 = vmatprep.subr.mxu0 0.0
  %3879 = vmatpush2.msra.mxu0 0.0
  %3880 = vmatprep.subr.mxu0 0.0
  %3881 = vmatpush2.msra.mxu0 0.0
  %3882 = vmatprep.subr.mxu0 0.0
  %3883 = vmatpush2.msra.mxu0 0.0
  %3884 = vmatprep.subr.mxu0 0.0
  %3885 = vmatpush2.msra.mxu0 0.0
  %3886 = vmatprep.subr.mxu0 0.0
  %3887 = vmatpush2.msra.mxu0 0.0
  %3888 = vmatprep.mubr.f32.mxu0 0.0
  %3889 = vmatmul.mubr.f32.gmra.mxu0 %v3751
  %v3890 = vpop.f32.mrf.mxu0
  %v3891 = vadd.f32 %v3820, %v3890
  %v3892 = vpop.f32.mrf.mxu0
  %v3893 = vadd.f32 %v3822, %v3892
  %3894 = vdwg.mxu0
  %v3895 = vadd.f32 %v3746, %v3891
  %v3896 = vadd.f32 %v3748, %v3893
  %v3898 = vsel %vm3459, %v2623, 0
  %3900 = vmatprep.subr.mxu0 %v3330
  %3901 = vmatpush1.msra.mxu0 %v3329
  %3902 = vmatprep.subr.mxu0 %v3328
  %3903 = vmatpush1.msra.mxu0 %v3327
  %3904 = vmatprep.subr.mxu0 %v3326
  %3905 = vmatpush1.msra.mxu0 %v3325
  %3906 = vmatprep.subr.mxu0 %v3324
  %3907 = vmatpush1.msra.mxu0 %v3323
  %3908 = vmatprep.subr.mxu0 %v3322
  %3909 = vmatpush1.msra.mxu0 %v3321
  %3910 = vmatprep.subr.mxu0 %v3320
  %3911 = vmatpush1.msra.mxu0 %v3319
  %3912 = vmatprep.subr.mxu0 %v3318
  %3913 = vmatpush1.msra.mxu0 %v3317
  %3914 = vmatprep.subr.mxu0 %v3316
  %3915 = vmatpush1.msra.mxu0 %v3315
  %3916 = vmatprep.subr.mxu0 %v3314
  %3917 = vmatpush1.msra.mxu0 %v3313
  %3918 = vmatprep.subr.mxu0 %v3312
  %3919 = vmatpush1.msra.mxu0 %v3311
  %3920 = vmatprep.subr.mxu0 %v3310
  %3921 = vmatpush1.msra.mxu0 %v3309
  %3922 = vmatprep.subr.mxu0 %v3308
  %3923 = vmatpush1.msra.mxu0 %v3307
  %3924 = vmatprep.subr.mxu0 %v3306
  %3925 = vmatpush1.msra.mxu0 %v3305
  %3926 = vmatprep.subr.mxu0 %v3304
  %3927 = vmatpush1.msra.mxu0 %v3303
  %3928 = vmatprep.subr.mxu0 %v3302
  %3929 = vmatpush1.msra.mxu0 %v3301
  %3930 = vmatprep.subr.mxu0 %v3300
  %3931 = vmatpush1.msra.mxu0 %v3299
  %3932 = vmatprep.subr.mxu0 %v3362
  %3933 = vmatpush2.msra.mxu0 %v3361
  %3934 = vmatprep.subr.mxu0 %v3360
  %3935 = vmatpush2.msra.mxu0 %v3359
  %3936 = vmatprep.subr.mxu0 %v3358
  %3937 = vmatpush2.msra.mxu0 %v3357
  %3938 = vmatprep.subr.mxu0 %v3356
  %3939 = vmatpush2.msra.mxu0 %v3355
  %3940 = vmatprep.subr.mxu0 %v3354
  %3941 = vmatpush2.msra.mxu0 %v3353
  %3942 = vmatprep.subr.mxu0 %v3352
  %3943 = vmatpush2.msra.mxu0 %v3351
  %3944 = vmatprep.subr.mxu0 %v3350
  %3945 = vmatpush2.msra.mxu0 %v3349
  %3946 = vmatprep.subr.mxu0 %v3348
  %3947 = vmatpush2.msra.mxu0 %v3347
  %3948 = vmatprep.subr.mxu0 %v3346
  %3949 = vmatpush2.msra.mxu0 %v3345
  %3950 = vmatprep.subr.mxu0 %v3344
  %3951 = vmatpush2.msra.mxu0 %v3343
  %3952 = vmatprep.subr.mxu0 %v3342
  %3953 = vmatpush2.msra.mxu0 %v3341
  %3954 = vmatprep.subr.mxu0 %v3340
  %3955 = vmatpush2.msra.mxu0 %v3339
  %3956 = vmatprep.subr.mxu0 %v3338
  %3957 = vmatpush2.msra.mxu0 %v3337
  %3958 = vmatprep.subr.mxu0 %v3336
  %3959 = vmatpush2.msra.mxu0 %v3335
  %3960 = vmatprep.subr.mxu0 %v3334
  %3961 = vmatpush2.msra.mxu0 %v3333
  %3962 = vmatprep.subr.mxu0 %v3332
  %3963 = vmatpush2.msra.mxu0 %v3331
  %3964 = vmatprep.mubr.f32.mxu0 %v2622
  %3965 = vmatmul.mubr.f32.gmra.mxu0 %v2621
  %v3966 = vpop.f32.mrf.mxu0
  %v3967 = vadd.f32 0.0, %v3966
  %v3968 = vpop.f32.mrf.mxu0
  %v3969 = vadd.f32 0.0, %v3968
  %3970 = vdwg.mxu0
  %3971 = vmatprep.subr.mxu0 0.0
  %3972 = vmatpush1.msra.mxu0 0.0
  %3973 = vmatprep.subr.mxu0 0.0
  %3974 = vmatpush1.msra.mxu0 0.0
  %3975 = vmatprep.subr.mxu0 0.0
  %3976 = vmatpush1.msra.mxu0 0.0
  %3977 = vmatprep.subr.mxu0 0.0
  %3978 = vmatpush1.msra.mxu0 0.0
  %3979 = vmatprep.subr.mxu0 0.0
  %3980 = vmatpush1.msra.mxu0 0.0
  %3981 = vmatprep.subr.mxu0 0.0
  %3982 = vmatpush1.msra.mxu0 0.0
  %3983 = vmatprep.subr.mxu0 0.0
  %3984 = vmatpush1.msra.mxu0 0.0
  %3985 = vmatprep.subr.mxu0 0.0
  %3986 = vmatpush1.msra.mxu0 0.0
  %3987 = vmatprep.subr.mxu0 %v3378
  %3988 = vmatpush1.msra.mxu0 %v3377
  %3989 = vmatprep.subr.mxu0 %v3376
  %3990 = vmatpush1.msra.mxu0 %v3375
  %3991 = vmatprep.subr.mxu0 %v3374
  %3992 = vmatpush1.msra.mxu0 %v3373
  %3993 = vmatprep.subr.mxu0 %v3372
  %3994 = vmatpush1.msra.mxu0 %v3371
  %3995 = vmatprep.subr.mxu0 %v3370
  %3996 = vmatpush1.msra.mxu0 %v3369
  %3997 = vmatprep.subr.mxu0 %v3368
  %3998 = vmatpush1.msra.mxu0 %v3367
  %3999 = vmatprep.subr.mxu0 %v3366
  %4000 = vmatpush1.msra.mxu0 %v3365
  %4001 = vmatprep.subr.mxu0 %v3364
  %4002 = vmatpush1.msra.mxu0 %v3363
  %4003 = vmatprep.subr.mxu0 0.0
  %4004 = vmatpush2.msra.mxu0 0.0
  %4005 = vmatprep.subr.mxu0 0.0
  %4006 = vmatpush2.msra.mxu0 0.0
  %4007 = vmatprep.subr.mxu0 0.0
  %4008 = vmatpush2.msra.mxu0 0.0
  %4009 = vmatprep.subr.mxu0 0.0
  %4010 = vmatpush2.msra.mxu0 0.0
  %4011 = vmatprep.subr.mxu0 0.0
  %4012 = vmatpush2.msra.mxu0 0.0
  %4013 = vmatprep.subr.mxu0 0.0
  %4014 = vmatpush2.msra.mxu0 0.0
  %4015 = vmatprep.subr.mxu0 0.0
  %4016 = vmatpush2.msra.mxu0 0.0
  %4017 = vmatprep.subr.mxu0 0.0
  %4018 = vmatpush2.msra.mxu0 0.0
  %4019 = vmatprep.subr.mxu0 0.0
  %4020 = vmatpush2.msra.mxu0 0.0
  %4021 = vmatprep.subr.mxu0 0.0
  %4022 = vmatpush2.msra.mxu0 0.0
  %4023 = vmatprep.subr.mxu0 0.0
  %4024 = vmatpush2.msra.mxu0 0.0
  %4025 = vmatprep.subr.mxu0 0.0
  %4026 = vmatpush2.msra.mxu0 0.0
  %4027 = vmatprep.subr.mxu0 0.0
  %4028 = vmatpush2.msra.mxu0 0.0
  %4029 = vmatprep.subr.mxu0 0.0
  %4030 = vmatpush2.msra.mxu0 0.0
  %4031 = vmatprep.subr.mxu0 0.0
  %4032 = vmatpush2.msra.mxu0 0.0
  %4033 = vmatprep.subr.mxu0 0.0
  %4034 = vmatpush2.msra.mxu0 0.0
  %4035 = vmatprep.mubr.f32.mxu0 0.0
  %4036 = vmatmul.mubr.f32.gmra.mxu0 %v3898
  %v4037 = vpop.f32.mrf.mxu0
  %v4038 = vadd.f32 %v3967, %v4037
  %v4039 = vpop.f32.mrf.mxu0
  %v4040 = vadd.f32 %v3969, %v4039
  %4041 = vdwg.mxu0
  %v4042 = vadd.f32 %v3895, %v4038
  %v4043 = vadd.f32 %v3896, %v4040
  %v4045 = vsel %vm3459, %v3058, 0
  %4047 = vmatprep.subr.mxu0 %v3410
  %4048 = vmatpush1.msra.mxu0 %v3409
  %4049 = vmatprep.subr.mxu0 %v3408
  %4050 = vmatpush1.msra.mxu0 %v3407
  %4051 = vmatprep.subr.mxu0 %v3406
  %4052 = vmatpush1.msra.mxu0 %v3405
  %4053 = vmatprep.subr.mxu0 %v3404
  %4054 = vmatpush1.msra.mxu0 %v3403
  %4055 = vmatprep.subr.mxu0 %v3402
  %4056 = vmatpush1.msra.mxu0 %v3401
  %4057 = vmatprep.subr.mxu0 %v3400
  %4058 = vmatpush1.msra.mxu0 %v3399
  %4059 = vmatprep.subr.mxu0 %v3398
  %4060 = vmatpush1.msra.mxu0 %v3397
  %4061 = vmatprep.subr.mxu0 %v3396
  %4062 = vmatpush1.msra.mxu0 %v3395
  %4063 = vmatprep.subr.mxu0 %v3394
  %4064 = vmatpush1.msra.mxu0 %v3393
  %4065 = vmatprep.subr.mxu0 %v3392
  %4066 = vmatpush1.msra.mxu0 %v3391
  %4067 = vmatprep.subr.mxu0 %v3390
  %4068 = vmatpush1.msra.mxu0 %v3389
  %4069 = vmatprep.subr.mxu0 %v3388
  %4070 = vmatpush1.msra.mxu0 %v3387
  %4071 = vmatprep.subr.mxu0 %v3386
  %4072 = vmatpush1.msra.mxu0 %v3385
  %4073 = vmatprep.subr.mxu0 %v3384
  %4074 = vmatpush1.msra.mxu0 %v3383
  %4075 = vmatprep.subr.mxu0 %v3382
  %4076 = vmatpush1.msra.mxu0 %v3381
  %4077 = vmatprep.subr.mxu0 %v3380
  %4078 = vmatpush1.msra.mxu0 %v3379
  %4079 = vmatprep.subr.mxu0 %v3442
  %4080 = vmatpush2.msra.mxu0 %v3441
  %4081 = vmatprep.subr.mxu0 %v3440
  %4082 = vmatpush2.msra.mxu0 %v3439
  %4083 = vmatprep.subr.mxu0 %v3438
  %4084 = vmatpush2.msra.mxu0 %v3437
  %4085 = vmatprep.subr.mxu0 %v3436
  %4086 = vmatpush2.msra.mxu0 %v3435
  %4087 = vmatprep.subr.mxu0 %v3434
  %4088 = vmatpush2.msra.mxu0 %v3433
  %4089 = vmatprep.subr.mxu0 %v3432
  %4090 = vmatpush2.msra.mxu0 %v3431
  %4091 = vmatprep.subr.mxu0 %v3430
  %4092 = vmatpush2.msra.mxu0 %v3429
  %4093 = vmatprep.subr.mxu0 %v3428
  %4094 = vmatpush2.msra.mxu0 %v3427
  %4095 = vmatprep.subr.mxu0 %v3426
  %4096 = vmatpush2.msra.mxu0 %v3425
  %4097 = vmatprep.subr.mxu0 %v3424
  %4098 = vmatpush2.msra.mxu0 %v3423
  %4099 = vmatprep.subr.mxu0 %v3422
  %4100 = vmatpush2.msra.mxu0 %v3421
  %4101 = vmatprep.subr.mxu0 %v3420
  %4102 = vmatpush2.msra.mxu0 %v3419
  %4103 = vmatprep.subr.mxu0 %v3418
  %4104 = vmatpush2.msra.mxu0 %v3417
  %4105 = vmatprep.subr.mxu0 %v3416
  %4106 = vmatpush2.msra.mxu0 %v3415
  %4107 = vmatprep.subr.mxu0 %v3414
  %4108 = vmatpush2.msra.mxu0 %v3413
  %4109 = vmatprep.subr.mxu0 %v3412
  %4110 = vmatpush2.msra.mxu0 %v3411
  %4111 = vmatprep.mubr.f32.mxu0 %v3057
  %4112 = vmatmul.mubr.f32.gmra.mxu0 %v3056
  %v4113 = vpop.f32.mrf.mxu0
  %v4114 = vadd.f32 0.0, %v4113
  %v4115 = vpop.f32.mrf.mxu0
  %v4116 = vadd.f32 0.0, %v4115
  %4117 = vdwg.mxu0
  %4118 = vmatprep.subr.mxu0 0.0
  %4119 = vmatpush1.msra.mxu0 0.0
  %4120 = vmatprep.subr.mxu0 0.0
  %4121 = vmatpush1.msra.mxu0 0.0
  %4122 = vmatprep.subr.mxu0 0.0
  %4123 = vmatpush1.msra.mxu0 0.0
  %4124 = vmatprep.subr.mxu0 0.0
  %4125 = vmatpush1.msra.mxu0 0.0
  %4126 = vmatprep.subr.mxu0 0.0
  %4127 = vmatpush1.msra.mxu0 0.0
  %4128 = vmatprep.subr.mxu0 0.0
  %4129 = vmatpush1.msra.mxu0 0.0
  %4130 = vmatprep.subr.mxu0 0.0
  %4131 = vmatpush1.msra.mxu0 0.0
  %4132 = vmatprep.subr.mxu0 0.0
  %4133 = vmatpush1.msra.mxu0 0.0
  %4134 = vmatprep.subr.mxu0 %v3458
  %4135 = vmatpush1.msra.mxu0 %v3457
  %4136 = vmatprep.subr.mxu0 %v3456
  %4137 = vmatpush1.msra.mxu0 %v3455
  %4138 = vmatprep.subr.mxu0 %v3454
  %4139 = vmatpush1.msra.mxu0 %v3453
  %4140 = vmatprep.subr.mxu0 %v3452
  %4141 = vmatpush1.msra.mxu0 %v3451
  %4142 = vmatprep.subr.mxu0 %v3450
  %4143 = vmatpush1.msra.mxu0 %v3449
  %4144 = vmatprep.subr.mxu0 %v3448
  %4145 = vmatpush1.msra.mxu0 %v3447
  %4146 = vmatprep.subr.mxu0 %v3446
  %4147 = vmatpush1.msra.mxu0 %v3445
  %4148 = vmatprep.subr.mxu0 %v3444
  %4149 = vmatpush1.msra.mxu0 %v3443
  %4150 = vmatprep.subr.mxu0 0.0
  %4151 = vmatpush2.msra.mxu0 0.0
  %4152 = vmatprep.subr.mxu0 0.0
  %4153 = vmatpush2.msra.mxu0 0.0
  %4154 = vmatprep.subr.mxu0 0.0
  %4155 = vmatpush2.msra.mxu0 0.0
  %4156 = vmatprep.subr.mxu0 0.0
  %4157 = vmatpush2.msra.mxu0 0.0
  %4158 = vmatprep.subr.mxu0 0.0
  %4159 = vmatpush2.msra.mxu0 0.0
  %4160 = vmatprep.subr.mxu0 0.0
  %4161 = vmatpush2.msra.mxu0 0.0
  %4162 = vmatprep.subr.mxu0 0.0
  %4163 = vmatpush2.msra.mxu0 0.0
  %4164 = vmatprep.subr.mxu0 0.0
  %4165 = vmatpush2.msra.mxu0 0.0
  %4166 = vmatprep.subr.mxu0 0.0
  %4167 = vmatpush2.msra.mxu0 0.0
  %4168 = vmatprep.subr.mxu0 0.0
  %4169 = vmatpush2.msra.mxu0 0.0
  %4170 = vmatprep.subr.mxu0 0.0
  %4171 = vmatpush2.msra.mxu0 0.0
  %4172 = vmatprep.subr.mxu0 0.0
  %4173 = vmatpush2.msra.mxu0 0.0
  %4174 = vmatprep.subr.mxu0 0.0
  %4175 = vmatpush2.msra.mxu0 0.0
  %4176 = vmatprep.subr.mxu0 0.0
  %4177 = vmatpush2.msra.mxu0 0.0
  %4178 = vmatprep.subr.mxu0 0.0
  %4179 = vmatpush2.msra.mxu0 0.0
  %4180 = vmatprep.subr.mxu0 0.0
  %4181 = vmatpush2.msra.mxu0 0.0
  %4182 = vmatprep.mubr.f32.mxu0 0.0
  %4183 = vmatmul.mubr.f32.gmra.mxu0 %v4045
  %v4184 = vpop.f32.mrf.mxu0
  %v4185 = vadd.f32 %v4114, %v4184
  %v4186 = vpop.f32.mrf.mxu0
  %v4187 = vadd.f32 %v4116, %v4186
  %4188 = vdwg.mxu0
  %v4189 = vadd.f32 %v4042, %v4185
  %v4190 = vadd.f32 %v4043, %v4187
  %v4191 = vld [vmem:[%s6] sm:$0x3]
  %v4193 = vlaneseq
  %v4194 = vshrl.u32 %v4193, 7
  %v4195 = vsub.s32 0, %v4194
  %v4196 = vrot.slane %v4191, %v4195
  %v4197 = vlaneseq
  %v4198 = vshrl.u32 %v4197, 7
  %v4199 = vsub.s32 1, %v4198
  %v4200 = vrot.slane %v4191, %v4199
  %v4203 = vadd.f32 %v4189, %v4196
  %v4204 = vadd.f32 %v4190, %v4200
  %v4205 = vmax.f32 %v4203, 0.0
  %v4206 = vmax.f32 %v4204, 0.0
  %v4207 = vld [vmem:[%s7] sm:$0xff]
  %v4208 = vld [vmem:[%s7 + $0x8] sm:$0xff]
  %v4209 = vld [vmem:[%s7 + $0x10] sm:$0xff]
  %v4210 = vld [vmem:[%s7 + $0x18] sm:$0xff]
  %v4211 = vld [vmem:[%s7 + $0x20] sm:$0xff]
  %v4212 = vld [vmem:[%s7 + $0x28] sm:$0xff]
  %v4213 = vld [vmem:[%s7 + $0x30] sm:$0xff]
  %v4214 = vld [vmem:[%s7 + $0x38] sm:$0xff]
  %v4215 = vld [vmem:[%s7 + $0x40] sm:$0xff]
  %v4216 = vld [vmem:[%s7 + $0x48] sm:$0xff]
  %v4217 = vld [vmem:[%s7 + $0x50] sm:$0xff]
  %v4218 = vld [vmem:[%s7 + $0x58] sm:$0xff]
  %v4219 = vld [vmem:[%s7 + $0x60] sm:$0xff]
  %v4220 = vld [vmem:[%s7 + $0x68] sm:$0xff]
  %v4221 = vld [vmem:[%s7 + $0x70] sm:$0xff]
  %v4222 = vld [vmem:[%s7 + $0x78] sm:$0xff]
  %v4223 = vld [vmem:[%s7 + $0x80] sm:$0xff]
  %v4224 = vld [vmem:[%s7 + $0x88] sm:$0xff]
  %v4225 = vld [vmem:[%s7 + $0x90] sm:$0xff]
  %v4226 = vld [vmem:[%s7 + $0x98] sm:$0xff]
  %v4227 = vld [vmem:[%s7 + $0xa0] sm:$0xff]
  %v4228 = vld [vmem:[%s7 + $0xa8] sm:$0xff]
  %v4229 = vld [vmem:[%s7 + $0xb0] sm:$0xff]
  %v4230 = vld [vmem:[%s7 + $0xb8] sm:$0xff]
  %v4231 = vld [vmem:[%s7 + $0xc0] sm:$0xff]
  %v4232 = vld [vmem:[%s7 + $0xc8] sm:$0xff]
  %v4233 = vld [vmem:[%s7 + $0xd0] sm:$0xff]
  %v4234 = vld [vmem:[%s7 + $0xd8] sm:$0xff]
  %v4235 = vld [vmem:[%s7 + $0xe0] sm:$0xff]
  %v4236 = vld [vmem:[%s7 + $0xe8] sm:$0xff]
  %v4237 = vld [vmem:[%s7 + $0xf0] sm:$0xff]
  %v4238 = vld [vmem:[%s7 + $0xf8] sm:$0xff]
  %v4239 = vld [vmem:[%s8] sm:$0x1]
  %v4241 = vlaneseq
  %v4242 = vshrl.u32 %v4241, 7
  %v4243 = vsub.s32 0, %v4242
  %v4244 = vrot.slane %v4239, %v4243
  %4246 = vmatprep.subr.mxu0 0.0
  %4247 = vmatpush1.msra.mxu0 %v4222
  %4248 = vmatprep.subr.mxu0 0.0
  %4249 = vmatpush1.msra.mxu0 %v4221
  %4250 = vmatprep.subr.mxu0 0.0
  %4251 = vmatpush1.msra.mxu0 %v4220
  %4252 = vmatprep.subr.mxu0 0.0
  %4253 = vmatpush1.msra.mxu0 %v4219
  %4254 = vmatprep.subr.mxu0 0.0
  %4255 = vmatpush1.msra.mxu0 %v4218
  %4256 = vmatprep.subr.mxu0 0.0
  %4257 = vmatpush1.msra.mxu0 %v4217
  %4258 = vmatprep.subr.mxu0 0.0
  %4259 = vmatpush1.msra.mxu0 %v4216
  %4260 = vmatprep.subr.mxu0 0.0
  %4261 = vmatpush1.msra.mxu0 %v4215
  %4262 = vmatprep.subr.mxu0 0.0
  %4263 = vmatpush1.msra.mxu0 %v4214
  %4264 = vmatprep.subr.mxu0 0.0
  %4265 = vmatpush1.msra.mxu0 %v4213
  %4266 = vmatprep.subr.mxu0 0.0
  %4267 = vmatpush1.msra.mxu0 %v4212
  %4268 = vmatprep.subr.mxu0 0.0
  %4269 = vmatpush1.msra.mxu0 %v4211
  %4270 = vmatprep.subr.mxu0 0.0
  %4271 = vmatpush1.msra.mxu0 %v4210
  %4272 = vmatprep.subr.mxu0 0.0
  %4273 = vmatpush1.msra.mxu0 %v4209
  %4274 = vmatprep.subr.mxu0 0.0
  %4275 = vmatpush1.msra.mxu0 %v4208
  %4276 = vmatprep.subr.mxu0 0.0
  %4277 = vmatpush1.msra.mxu0 %v4207
  %4278 = vmatprep.subr.mxu0 0.0
  %4279 = vmatpush2.msra.mxu0 %v4238
  %4280 = vmatprep.subr.mxu0 0.0
  %4281 = vmatpush2.msra.mxu0 %v4237
  %4282 = vmatprep.subr.mxu0 0.0
  %4283 = vmatpush2.msra.mxu0 %v4236
  %4284 = vmatprep.subr.mxu0 0.0
  %4285 = vmatpush2.msra.mxu0 %v4235
  %4286 = vmatprep.subr.mxu0 0.0
  %4287 = vmatpush2.msra.mxu0 %v4234
  %4288 = vmatprep.subr.mxu0 0.0
  %4289 = vmatpush2.msra.mxu0 %v4233
  %4290 = vmatprep.subr.mxu0 0.0
  %4291 = vmatpush2.msra.mxu0 %v4232
  %4292 = vmatprep.subr.mxu0 0.0
  %4293 = vmatpush2.msra.mxu0 %v4231
  %4294 = vmatprep.subr.mxu0 0.0
  %4295 = vmatpush2.msra.mxu0 %v4230
  %4296 = vmatprep.subr.mxu0 0.0
  %4297 = vmatpush2.msra.mxu0 %v4229
  %4298 = vmatprep.subr.mxu0 0.0
  %4299 = vmatpush2.msra.mxu0 %v4228
  %4300 = vmatprep.subr.mxu0 0.0
  %4301 = vmatpush2.msra.mxu0 %v4227
  %4302 = vmatprep.subr.mxu0 0.0
  %4303 = vmatpush2.msra.mxu0 %v4226
  %4304 = vmatprep.subr.mxu0 0.0
  %4305 = vmatpush2.msra.mxu0 %v4225
  %4306 = vmatprep.subr.mxu0 0.0
  %4307 = vmatpush2.msra.mxu0 %v4224
  %4308 = vmatprep.subr.mxu0 0.0
  %4309 = vmatpush2.msra.mxu0 %v4223
  %4310 = vmatprep.mubr.f32.mxu0 %v4206
  %4311 = vmatmul.mubr.f32.gmra.mxu0 %v4205
  %v4312 = vpop.f32.mrf.mxu0
  %v4313 = vadd.f32 %v4244, %v4312
  %v4314 = vpop.f32.mrf.mxu0
  %4315 = vdwg.mxu0
  %4316 = vst [vmem:[%s9] sm:$0xff] %v4313
  // Predicated region
  $region38: #{net_forward.1} parent=0 // pred_check
    _
  $region39: #{net_forward.1} parent=0 // pred_check_branch
    %4318 = sbr.rel (0) target = $region41
  $region40: #{net_forward.1} parent=0 // pred_region
    _
  $region41: #{net_forward.1} parent=0 // pred_fallthru
    _
  // Predicated region
  $region42: #{net_forward.1} parent=0 // pred_check
    _
  $region43: #{net_forward.1} parent=0 // pred_check_branch
    %4320 = sbr.rel (0) target = $region45
  $region44: #{net_forward.1} parent=0 // pred_region
    _
  $region45: #{net_forward.1} parent=0 // pred_fallthru
    _

</llo_original>
